<compile_context>
chip_gen: v7x
topology: tpu7x:2x2x1
jax: 0.10.0
libtpu: 0.0.40
codegen_flags: <defaults>
</compile_context>

<pallas_src>
import jax
import jax.numpy as jnp
from jax.experimental import pallas as pl
from jax.experimental.pallas import tpu as pltpu


def _leaky_relu(x, slope=0.2):
    return jnp.where(x > 0, x, slope * x)


def _pad_axis(a, target, axis):
    pad = target - a.shape[axis]
    if pad <= 0:
        return a
    widths = [(0, 0)] * a.ndim
    widths[axis] = (0, pad)
    return jnp.pad(a, widths)


def discriminator_kernel(x_ref, w1_ref, b1_ref, w2_ref, b2_ref, w3_ref, b3_ref,
                         o_ref):
    # Three MXU matmuls (bf16 inputs, f32 accumulation) + VPU/EUP elementwise.
    x = x_ref[...]                                                  # bf16 (tm, 896)

    h1 = jnp.dot(x, w1_ref[...], preferred_element_type=jnp.float32)
    h1 = _leaky_relu(h1 + b1_ref[...]).astype(jnp.bfloat16)         # (tm, 256)

    h2 = jnp.dot(h1, w2_ref[...], preferred_element_type=jnp.float32)
    h2 = _leaky_relu(h2 + b2_ref[...]).astype(jnp.bfloat16)         # (tm, 256)

    h3 = jnp.dot(h2, w3_ref[...], preferred_element_type=jnp.float32)
    h3 = h3 + b3_ref[...]                                           # (tm, 128)

    o_ref[...] = jax.nn.sigmoid(h3).astype(o_ref.dtype)


def discriminator_forward(x, params, *, batch_tile=256):
    """x: [B, 784] float32 -> [B, 1] float32."""
    w1, b1, w2, b2, w3, b3 = params
    B, D_in = x.shape
    H = w1.shape[1]

    D_pad = ((D_in + 127) // 128) * 128          # 784 -> 896 (7 * 128)
    OUT_PAD = 128                                # lane-dense final layer
    B_pad = ((B + batch_tile - 1) // batch_tile) * batch_tile

    # Pad + cast activations/weights to bf16 (f32 biases for accuracy).
    x_p = _pad_axis(_pad_axis(x, B_pad, 0), D_pad, 1).astype(jnp.bfloat16)
    w1_p = _pad_axis(w1, D_pad, 0).astype(jnp.bfloat16)              # (896, 256)
    w2_p = w2.astype(jnp.bfloat16)                                   # (256, 256)
    w3_p = _pad_axis(w3, OUT_PAD, 1).astype(jnp.bfloat16)            # (256, 128)
    b1_p = jnp.reshape(b1, (1, H)).astype(jnp.float32)
    b2_p = jnp.reshape(b2, (1, H)).astype(jnp.float32)
    b3_p = _pad_axis(jnp.reshape(b3, (1, -1)), OUT_PAD, 1).astype(jnp.float32)

    grid = (B_pad // batch_tile,)

    in_specs = [
        pl.BlockSpec((batch_tile, D_pad), lambda i: (i, 0)),   # x tile
        pl.BlockSpec((D_pad, H), lambda i: (0, 0)),            # W1 (resident)
        pl.BlockSpec((1, H), lambda i: (0, 0)),                # b1
        pl.BlockSpec((H, H), lambda i: (0, 0)),                # W2
        pl.BlockSpec((1, H), lambda i: (0, 0)),                # b2
        pl.BlockSpec((H, OUT_PAD), lambda i: (0, 0)),          # W3 (padded)
        pl.BlockSpec((1, OUT_PAD), lambda i: (0, 0)),          # b3 (padded)
    ]
    out_spec = pl.BlockSpec((batch_tile, OUT_PAD), lambda i: (i, 0))

    flops = 2 * B_pad * (D_pad * H + H * H + H * OUT_PAD)
    bytes_accessed = (
        B_pad * D_pad * 2                               # x (bf16)
        + (D_pad * H + H * H + H * OUT_PAD) * 2         # weights (bf16)
        + (2 * H + OUT_PAD) * 4                         # biases (f32)
        + B_pad * OUT_PAD * 4                           # output (f32)
    )
    cost = pl.CostEstimate(flops=flops,
                           transcendentals=B_pad * OUT_PAD,
                           bytes_accessed=bytes_accessed)

    out = pl.pallas_call(
        discriminator_kernel,
        out_shape=jax.ShapeDtypeStruct((B_pad, OUT_PAD), jnp.float32),
        grid_spec=pltpu.PrefetchScalarGridSpec(
            num_scalar_prefetch=0,
            grid=grid,
            in_specs=in_specs,
            out_specs=out_spec,
        ),
        compiler_params=pltpu.CompilerParams(
            dimension_semantics=("parallel",)),
        cost_estimate=cost,
    )(x_p, w1_p, b1_p, w2_p, b2_p, w3_p, b3_p)

    return out[:B, :1]


def init_params(key, d_in=784, hidden=256, d_out=1):
    """Deterministic synthetic parameters (shapes match the nn.Module)."""
    k1, k2, k3, k4, k5, k6 = jax.random.split(key, 6)
    w1 = jax.random.normal(k1, (d_in, hidden), jnp.float32) * (1.0 / jnp.sqrt(d_in))
    b1 = jax.random.normal(k2, (1, hidden), jnp.float32) * 0.01
    w2 = jax.random.normal(k3, (hidden, hidden), jnp.float32) * (1.0 / jnp.sqrt(hidden))
    b2 = jax.random.normal(k4, (1, hidden), jnp.float32) * 0.01
    w3 = jax.random.normal(k5, (hidden, d_out), jnp.float32) * (1.0 / jnp.sqrt(hidden))
    b3 = jax.random.normal(k6, (1, d_out), jnp.float32) * 0.01
    return (w1, b1, w2, b2, w3, b3)


def reference_forward(x, params):
    """Plain-JAX reference mimicking the kernel's bf16-input / f32-acc numerics."""
    w1, b1, w2, b2, w3, b3 = params

    def bf(a):
        return a.astype(jnp.bfloat16).astype(jnp.float32)

    h1 = _leaky_relu(bf(x) @ bf(w1) + b1)
    h2 = _leaky_relu(bf(h1) @ bf(w2) + b2)
    return jax.nn.sigmoid(bf(h2) @ bf(w3) + b3)


if __name__ == "__main__":
    key = jax.random.PRNGKey(0)
    kx, kp = jax.random.split(key)

    B = 8  # small test batch; wrapper pads up to the batch tile internally
    x = jax.random.normal(kx, (B, 784), jnp.float32)
    params = init_params(kp)

    out = discriminator_forward(x, params, batch_tile=256)
    out = jax.block_until_ready(out)

    ref = reference_forward(x, params)
    assert out.shape == (B, 1)
    assert jnp.allclose(out, ref, atol=2e-2, rtol=2e-2), "mismatch vs reference"

    print("KERNEL_OK")
</pallas_src>

<mosaic_0001>
module attributes {stable_mosaic.version = 11 : i64} {
  func.func @discriminator_kernel(%arg0: i32, %arg1: memref<256x896xbf16, #tpu.memory_space<vmem>>, %arg2: memref<896x256xbf16, #tpu.memory_space<vmem>>, %arg3: memref<1x256xf32, #tpu.memory_space<vmem>>, %arg4: memref<256x256xbf16, #tpu.memory_space<vmem>>, %arg5: memref<1x256xf32, #tpu.memory_space<vmem>>, %arg6: memref<256x128xbf16, #tpu.memory_space<vmem>>, %arg7: memref<1x128xf32, #tpu.memory_space<vmem>>, %arg8: memref<256x128xf32, #tpu.memory_space<vmem>>) attributes {dimension_semantics = [#tpu.dimension_semantics<parallel>], iteration_bounds = array<i64: 1>, scalar_prefetch = 0 : i64, scratch_operands = 0 : i64, tpu.core_type = #tpu.core_type<tc>, window_params = [{transform_indices = @transform_0, window_bounds = array<i64: 256, 896>}, {pipeline_mode = #tpu.pipeline_mode<synchronous>, transform_indices = @transform_1, window_bounds = array<i64: 896, 256>}, {pipeline_mode = #tpu.pipeline_mode<synchronous>, transform_indices = @transform_2, window_bounds = array<i64: 1, 256>}, {pipeline_mode = #tpu.pipeline_mode<synchronous>, transform_indices = @transform_3, window_bounds = array<i64: 256, 256>}, {pipeline_mode = #tpu.pipeline_mode<synchronous>, transform_indices = @transform_4, window_bounds = array<i64: 1, 256>}, {pipeline_mode = #tpu.pipeline_mode<synchronous>, transform_indices = @transform_5, window_bounds = array<i64: 256, 128>}, {pipeline_mode = #tpu.pipeline_mode<synchronous>, transform_indices = @transform_6, window_bounds = array<i64: 1, 128>}, {transform_indices = @transform_7, window_bounds = array<i64: 256, 128>}]} {
    %c0 = arith.constant 0 : index
    %c0_0 = arith.constant 0 : index
    %0 = vector.load %arg1[%c0, %c0_0] : memref<256x896xbf16, #tpu.memory_space<vmem>>, vector<256x896xbf16>
    %c0_1 = arith.constant 0 : index
    %c0_2 = arith.constant 0 : index
    %1 = vector.load %arg2[%c0_1, %c0_2] : memref<896x256xbf16, #tpu.memory_space<vmem>>, vector<896x256xbf16>
    %cst = arith.constant dense<0.000000e+00> : vector<256x256xf32>
    %2 = tpu.matmul %0, %1, %cst {dimension_numbers = #tpu.dot_dimension_numbers<[1], [0], [0], [1], [0, 0, 1, 1], [], []>} : vector<256x896xbf16>, vector<896x256xbf16>, vector<256x256xf32> -> vector<256x256xf32>
    %c0_3 = arith.constant 0 : index
    %c0_4 = arith.constant 0 : index
    %3 = vector.load %arg3[%c0_3, %c0_4] : memref<1x256xf32, #tpu.memory_space<vmem>>, vector<1x256xf32>
    %4 = vector.broadcast %3 : vector<1x256xf32> to vector<256x256xf32>
    %5 = arith.addf %2, %4 : vector<256x256xf32>
    %cst_5 = arith.constant 0.000000e+00 : f32
    %6 = vector.broadcast %cst_5 : f32 to vector<256x256xf32>
    %7 = arith.cmpf ogt, %5, %6 : vector<256x256xf32>
    %cst_6 = arith.constant 2.000000e-01 : f32
    %8 = vector.broadcast %cst_6 : f32 to vector<256x256xf32>
    %9 = arith.mulf %8, %5 : vector<256x256xf32>
    %10 = arith.select %7, %5, %9 : vector<256x256xi1>, vector<256x256xf32>
    %11 = arith.truncf %10 : vector<256x256xf32> to vector<256x256xbf16>
    %c0_7 = arith.constant 0 : index
    %c0_8 = arith.constant 0 : index
    %12 = vector.load %arg4[%c0_7, %c0_8] : memref<256x256xbf16, #tpu.memory_space<vmem>>, vector<256x256xbf16>
    %cst_9 = arith.constant dense<0.000000e+00> : vector<256x256xf32>
    %13 = tpu.matmul %11, %12, %cst_9 {dimension_numbers = #tpu.dot_dimension_numbers<[1], [0], [0], [1], [0, 0, 1, 1], [], []>} : vector<256x256xbf16>, vector<256x256xbf16>, vector<256x256xf32> -> vector<256x256xf32>
    %c0_10 = arith.constant 0 : index
    %c0_11 = arith.constant 0 : index
    %14 = vector.load %arg5[%c0_10, %c0_11] : memref<1x256xf32, #tpu.memory_space<vmem>>, vector<1x256xf32>
    %15 = vector.broadcast %14 : vector<1x256xf32> to vector<256x256xf32>
    %16 = arith.addf %13, %15 : vector<256x256xf32>
    %cst_12 = arith.constant 0.000000e+00 : f32
    %17 = vector.broadcast %cst_12 : f32 to vector<256x256xf32>
    %18 = arith.cmpf ogt, %16, %17 : vector<256x256xf32>
    %cst_13 = arith.constant 2.000000e-01 : f32
    %19 = vector.broadcast %cst_13 : f32 to vector<256x256xf32>
    %20 = arith.mulf %19, %16 : vector<256x256xf32>
    %21 = arith.select %18, %16, %20 : vector<256x256xi1>, vector<256x256xf32>
    %22 = arith.truncf %21 : vector<256x256xf32> to vector<256x256xbf16>
    %c0_14 = arith.constant 0 : index
    %c0_15 = arith.constant 0 : index
    %23 = vector.load %arg6[%c0_14, %c0_15] : memref<256x128xbf16, #tpu.memory_space<vmem>>, vector<256x128xbf16>
    %cst_16 = arith.constant dense<0.000000e+00> : vector<256x128xf32>
    %24 = tpu.matmul %22, %23, %cst_16 {dimension_numbers = #tpu.dot_dimension_numbers<[1], [0], [0], [1], [0, 0, 1, 1], [], []>} : vector<256x256xbf16>, vector<256x128xbf16>, vector<256x128xf32> -> vector<256x128xf32>
    %c0_17 = arith.constant 0 : index
    %c0_18 = arith.constant 0 : index
    %25 = vector.load %arg7[%c0_17, %c0_18] : memref<1x128xf32, #tpu.memory_space<vmem>>, vector<1x128xf32>
    %26 = vector.broadcast %25 : vector<1x128xf32> to vector<256x128xf32>
    %27 = arith.addf %24, %26 : vector<256x128xf32>
    %28 = arith.negf %27 : vector<256x128xf32>
    %29 = math.exp %28 : vector<256x128xf32>
    %cst_19 = arith.constant 1.000000e+00 : f32
    %30 = vector.broadcast %cst_19 : f32 to vector<256x128xf32>
    %31 = arith.addf %30, %29 : vector<256x128xf32>
    %32 = arith.divf %30, %31 : vector<256x128xf32>
    %c0_20 = arith.constant 0 : index
    %c0_21 = arith.constant 0 : index
    %33 = vector.load %arg8[%c0_20, %c0_21] : memref<256x128xf32, #tpu.memory_space<vmem>>, vector<256x128xf32>
    tpu.vector_store %arg8[%c0_20, %c0_21], %32 {strides = array<i32>} : memref<256x128xf32, #tpu.memory_space<vmem>>, vector<256x128xf32>,
    return
  }
  func.func @transform_0(%arg0: i32) -> (i32, i32) {
    %c0_i32 = arith.constant 0 : i32
    %c0_i32_0 = arith.constant 0 : i32
    return %arg0, %c0_i32 : i32, i32
  }
  func.func @transform_1(%arg0: i32) -> (i32, i32) {
    %c0_i32 = arith.constant 0 : i32
    %c0_i32_0 = arith.constant 0 : i32
    %c0_i32_1 = arith.constant 0 : i32
    return %c0_i32, %c0_i32_0 : i32, i32
  }
  func.func @transform_2(%arg0: i32) -> (i32, i32) {
    %c0_i32 = arith.constant 0 : i32
    %c0_i32_0 = arith.constant 0 : i32
    %c0_i32_1 = arith.constant 0 : i32
    return %c0_i32, %c0_i32_0 : i32, i32
  }
  func.func @transform_3(%arg0: i32) -> (i32, i32) {
    %c0_i32 = arith.constant 0 : i32
    %c0_i32_0 = arith.constant 0 : i32
    %c0_i32_1 = arith.constant 0 : i32
    return %c0_i32, %c0_i32_0 : i32, i32
  }
  func.func @transform_4(%arg0: i32) -> (i32, i32) {
    %c0_i32 = arith.constant 0 : i32
    %c0_i32_0 = arith.constant 0 : i32
    %c0_i32_1 = arith.constant 0 : i32
    return %c0_i32, %c0_i32_0 : i32, i32
  }
  func.func @transform_5(%arg0: i32) -> (i32, i32) {
    %c0_i32 = arith.constant 0 : i32
    %c0_i32_0 = arith.constant 0 : i32
    %c0_i32_1 = arith.constant 0 : i32
    return %c0_i32, %c0_i32_0 : i32, i32
  }
  func.func @transform_6(%arg0: i32) -> (i32, i32) {
    %c0_i32 = arith.constant 0 : i32
    %c0_i32_0 = arith.constant 0 : i32
    %c0_i32_1 = arith.constant 0 : i32
    return %c0_i32, %c0_i32_0 : i32, i32
  }
  func.func @transform_7(%arg0: i32) -> (i32, i32) {
    %c0_i32 = arith.constant 0 : i32
    %c0_i32_0 = arith.constant 0 : i32
    return %arg0, %c0_i32 : i32, i32
  }
}

</mosaic_0001>

<llo_original>
// kernel: tpu_custom_call.1
$region0: #{tpu_custom_call.1}
  #allocation0 [shape = 'u32[]', space=smem, size = 0x4, offset = 0x4, fixed_abs, tag = 'smem constant byte address 0x4 - core index']
  #allocation1 [shape = 'u32[144,128]{1,0:T(1,128)}', space=vmem, size = 0x12000, scoped, tag = 'internal scratch']
  %s0 = inlined_call_operand.hbm [shape: bf16[256,896], index: 0, kind: input, shape index: {}]
  %s1 = inlined_call_operand.hbm [shape: bf16[896,256], index: 1, kind: input, shape index: {}]
  %s2 = inlined_call_operand.vmem [shape: f32[1,256], index: 2, kind: input, shape index: {}]
  %s3 = inlined_call_operand.hbm [shape: bf16[256,256], index: 3, kind: input, shape index: {}]
  %s4 = inlined_call_operand.vmem [shape: f32[1,256], index: 4, kind: input, shape index: {}]
  %s5 = inlined_call_operand.hbm [shape: bf16[256,128], index: 5, kind: input, shape index: {}]
  %s6 = inlined_call_operand.vmem [shape: f32[1,128], index: 6, kind: input, shape index: {}]
  %s7 = inlined_call_operand.hbm [shape: f32[256,128], index: 7, kind: output, shape index: {}]
  %s8 = sld [smem:[#allocation0]]
  $region54: #{tpu_custom_call.1} parent=0
    _
  %s10 = ssub.s32 1, %s8
  %s11 = scalar_select 0, %s10, %s8
  $region1: #{tpu_custom_call.1} parent=0
    #allocation2 [shape = 'u8[458752]{0}', space=vmem, size = 0x70000, scoped, tag = 'input window, operand 0, single buffered']
    #allocation3 [shape = 's32[1]{0}', space=sflag, size = 0x4, scoped, tag = 'scoped memory for tpu_custom_call.1']
    #allocation4 [shape = 's32[1]{0}', space=sflag, size = 0x4, scoped, tag = 'scoped memory for tpu_custom_call.1']
    #allocation5 [shape = 'u8[458752]{0}', space=vmem, size = 0x70000, scoped, tag = 'input window, operand 1, single buffered']
    #allocation6 [shape = 's32[1]{0}', space=sflag, size = 0x4, scoped, tag = 'scoped memory for tpu_custom_call.1']
    #allocation7 [shape = 'u8[131072]{0}', space=vmem, size = 0x20000, scoped, tag = 'input window, operand 3, single buffered']
    #allocation8 [shape = 'u8[65536]{0}', space=vmem, size = 0x10000, scoped, tag = 'input window, operand 5, single buffered']
    #allocation9 [shape = 's32[1]{0}', space=sflag, size = 0x4, scoped, tag = 'scoped memory for tpu_custom_call.1']
    #allocation10 [shape = 'u8[131072]{0}', space=vmem, size = 0x20000, scoped, tag = 'output window, operand 0, single buffered']
    %12 = vsyncpa [#allocation3], 0
    %13 = vsyncpa [#allocation6], 0
    %14 = vsyncpa [#allocation9], 0
    %15 = vsyncpa [#allocation4], 0
    // Predicated region
    $region2: #{tpu_custom_call.1} parent=1 // pred_check
      _
    $region3: #{tpu_custom_call.1} parent=1 // pred_check_branch
      %17 = sbr.rel (0) target = $region5
    $region4: #{tpu_custom_call.1} parent=1 // pred_region
      %s19 = ssub.s32 14336, 14336
      %20 = vsyncadd [#allocation3], %s19
      %s21 = sshll.u32 [#allocation2], 4
      %s22 = int_to_ptr.vmem [resolvable:$true] %s21
      %27 = dma.hbm_to_vmem [thread:$0]  %s0, 14336, %s22, [#allocation3], 448, 448, 28
    $region5: #{tpu_custom_call.1} parent=1 // pred_fallthru
      _
    // Predicated region
    $region6: #{tpu_custom_call.1} parent=1 // pred_check
      _
    $region7: #{tpu_custom_call.1} parent=1 // pred_check_branch
      %29 = sbr.rel (0) target = $region9
    $region8: #{tpu_custom_call.1} parent=1 // pred_region
      %s31 = ssub.s32 14336, 14336
      %32 = vsyncadd [#allocation6], %s31
      %s33 = sshll.u32 [#allocation5], 4
      %s34 = int_to_ptr.vmem [resolvable:$true] %s33
      %39 = dma.hbm_to_vmem [thread:$0]  %s1, 14336, %s34, [#allocation6], 128, 128, 8
    $region9: #{tpu_custom_call.1} parent=1 // pred_fallthru
      _
    // Predicated region
    $region10: #{tpu_custom_call.1} parent=1 // pred_check
      _
    $region11: #{tpu_custom_call.1} parent=1 // pred_check_branch
      %41 = sbr.rel (0) target = $region13
    $region12: #{tpu_custom_call.1} parent=1 // pred_region
      _
    $region13: #{tpu_custom_call.1} parent=1 // pred_fallthru
      _
    // Predicated region
    $region14: #{tpu_custom_call.1} parent=1 // pred_check
      _
    $region15: #{tpu_custom_call.1} parent=1 // pred_check_branch
      %43 = sbr.rel (0) target = $region17
    $region16: #{tpu_custom_call.1} parent=1 // pred_region
      %s45 = ssub.s32 4096, 4096
      %46 = vsyncadd [#allocation6], %s45
      %s47 = sshll.u32 [#allocation7], 4
      %s48 = int_to_ptr.vmem [resolvable:$true] %s47
      %53 = dma.hbm_to_vmem [thread:$0]  %s3, 4096, %s48, [#allocation6], 128, 128, 8
    $region17: #{tpu_custom_call.1} parent=1 // pred_fallthru
      _
    // Predicated region
    $region18: #{tpu_custom_call.1} parent=1 // pred_check
      _
    $region19: #{tpu_custom_call.1} parent=1 // pred_check_branch
      %55 = sbr.rel (0) target = $region21
    $region20: #{tpu_custom_call.1} parent=1 // pred_region
      _
    $region21: #{tpu_custom_call.1} parent=1 // pred_fallthru
      _
    // Predicated region
    $region22: #{tpu_custom_call.1} parent=1 // pred_check
      _
    $region23: #{tpu_custom_call.1} parent=1 // pred_check_branch
      %57 = sbr.rel (0) target = $region25
    $region24: #{tpu_custom_call.1} parent=1 // pred_region
      %s59 = ssub.s32 2048, 2048
      %60 = vsyncadd [#allocation9], %s59
      %s61 = sshll.u32 [#allocation8], 4
      %s62 = int_to_ptr.vmem [resolvable:$true] %s61
      %67 = dma.hbm_to_vmem [thread:$0]  %s5, 2048, %s62, [#allocation9], 64, 64, 4
    $region25: #{tpu_custom_call.1} parent=1 // pred_fallthru
      _
    // Predicated region
    $region26: #{tpu_custom_call.1} parent=1 // pred_check
      _
    $region27: #{tpu_custom_call.1} parent=1 // pred_check_branch
      %69 = sbr.rel (0) target = $region29
    $region28: #{tpu_custom_call.1} parent=1 // pred_region
      _
    $region29: #{tpu_custom_call.1} parent=1 // pred_fallthru
      _
    // Predicated region
    $region30: #{tpu_custom_call.1} parent=1 // pred_check
      _
    $region31: #{tpu_custom_call.1} parent=1 // pred_check_branch
      %71 = sbr.rel (0) target = $region33
    $region32: #{tpu_custom_call.1} parent=1 // pred_region
      %72 = dma.done [#allocation3], 14336
    $region33: #{tpu_custom_call.1} parent=1 // pred_fallthru
      _
    // Predicated region
    $region34: #{tpu_custom_call.1} parent=1 // pred_check
      _
    $region35: #{tpu_custom_call.1} parent=1 // pred_check_branch
      %74 = sbr.rel (0) target = $region37
    $region36: #{tpu_custom_call.1} parent=1 // pred_region
      %75 = dma.done [#allocation6], 14336
    $region37: #{tpu_custom_call.1} parent=1 // pred_fallthru
      _
    // Predicated region
    $region38: #{tpu_custom_call.1} parent=1 // pred_check
      _
    $region39: #{tpu_custom_call.1} parent=1 // pred_check_branch
      %77 = sbr.rel (0) target = $region41
    $region40: #{tpu_custom_call.1} parent=1 // pred_region
      %78 = dma.done [#allocation6], 4096
    $region41: #{tpu_custom_call.1} parent=1 // pred_fallthru
      _
    // Predicated region
    $region42: #{tpu_custom_call.1} parent=1 // pred_check
      _
    $region43: #{tpu_custom_call.1} parent=1 // pred_check_branch
      %80 = sbr.rel (0) target = $region45
    $region44: #{tpu_custom_call.1} parent=1 // pred_region
      %81 = dma.done [#allocation9], 2048
    $region45: #{tpu_custom_call.1} parent=1 // pred_fallthru
      _
    %v83 = vld [vmem:[#allocation2] sm:$0xff]
    %v84 = vld [vmem:[#allocation2 + $0x8] sm:$0xff]
    %v85 = vld [vmem:[#allocation2 + $0x10] sm:$0xff]
    %v86 = vld [vmem:[#allocation2 + $0x18] sm:$0xf]
    %v87 = vld [vmem:[#allocation2 + $0x1c] sm:$0xff]
    %v88 = vld [vmem:[#allocation2 + $0x24] sm:$0xff]
    %v89 = vld [vmem:[#allocation2 + $0x2c] sm:$0xff]
    %v90 = vld [vmem:[#allocation2 + $0x34] sm:$0xf]
    %v91 = vld [vmem:[#allocation2 + $0x38] sm:$0xff]
    %v92 = vld [vmem:[#allocation2 + $0x40] sm:$0xff]
    %v93 = vld [vmem:[#allocation2 + $0x48] sm:$0xff]
    %v94 = vld [vmem:[#allocation2 + $0x50] sm:$0xf]
    %v95 = vld [vmem:[#allocation2 + $0x54] sm:$0xff]
    %v96 = vld [vmem:[#allocation2 + $0x5c] sm:$0xff]
    %v97 = vld [vmem:[#allocation2 + $0x64] sm:$0xff]
    %v98 = vld [vmem:[#allocation2 + $0x6c] sm:$0xf]
    %v99 = vld [vmem:[#allocation2 + $0x70] sm:$0xff]
    %v100 = vld [vmem:[#allocation2 + $0x78] sm:$0xff]
    %v101 = vld [vmem:[#allocation2 + $0x80] sm:$0xff]
    %v102 = vld [vmem:[#allocation2 + $0x88] sm:$0xf]
    %v103 = vld [vmem:[#allocation2 + $0x8c] sm:$0xff]
    %v104 = vld [vmem:[#allocation2 + $0x94] sm:$0xff]
    %v105 = vld [vmem:[#allocation2 + $0x9c] sm:$0xff]
    %v106 = vld [vmem:[#allocation2 + $0xa4] sm:$0xf]
    %v107 = vld [vmem:[#allocation2 + $0xa8] sm:$0xff]
    %v108 = vld [vmem:[#allocation2 + $0xb0] sm:$0xff]
    %v109 = vld [vmem:[#allocation2 + $0xb8] sm:$0xff]
    %v110 = vld [vmem:[#allocation2 + $0xc0] sm:$0xf]
    %v111 = vld [vmem:[#allocation2 + $0xc4] sm:$0xff]
    %v112 = vld [vmem:[#allocation2 + $0xcc] sm:$0xff]
    %v113 = vld [vmem:[#allocation2 + $0xd4] sm:$0xff]
    %v114 = vld [vmem:[#allocation2 + $0xdc] sm:$0xf]
    %v115 = vld [vmem:[#allocation2 + $0xe0] sm:$0xff]
    %v116 = vld [vmem:[#allocation2 + $0xe8] sm:$0xff]
    %v117 = vld [vmem:[#allocation2 + $0xf0] sm:$0xff]
    %v118 = vld [vmem:[#allocation2 + $0xf8] sm:$0xf]
    %v119 = vld [vmem:[#allocation2 + $0xfc] sm:$0xff]
    %v120 = vld [vmem:[#allocation2 + $0x104] sm:$0xff]
    %v121 = vld [vmem:[#allocation2 + $0x10c] sm:$0xff]
    %v122 = vld [vmem:[#allocation2 + $0x114] sm:$0xf]
    %v123 = vld [vmem:[#allocation2 + $0x118] sm:$0xff]
    %v124 = vld [vmem:[#allocation2 + $0x120] sm:$0xff]
    %v125 = vld [vmem:[#allocation2 + $0x128] sm:$0xff]
    %v126 = vld [vmem:[#allocation2 + $0x130] sm:$0xf]
    %v127 = vld [vmem:[#allocation2 + $0x134] sm:$0xff]
    %v128 = vld [vmem:[#allocation2 + $0x13c] sm:$0xff]
    %v129 = vld [vmem:[#allocation2 + $0x144] sm:$0xff]
    %v130 = vld [vmem:[#allocation2 + $0x14c] sm:$0xf]
    %v131 = vld [vmem:[#allocation2 + $0x150] sm:$0xff]
    %v132 = vld [vmem:[#allocation2 + $0x158] sm:$0xff]
    %v133 = vld [vmem:[#allocation2 + $0x160] sm:$0xff]
    %v134 = vld [vmem:[#allocation2 + $0x168] sm:$0xf]
    %v135 = vld [vmem:[#allocation2 + $0x16c] sm:$0xff]
    %v136 = vld [vmem:[#allocation2 + $0x174] sm:$0xff]
    %v137 = vld [vmem:[#allocation2 + $0x17c] sm:$0xff]
    %v138 = vld [vmem:[#allocation2 + $0x184] sm:$0xf]
    %v139 = vld [vmem:[#allocation2 + $0x188] sm:$0xff]
    %v140 = vld [vmem:[#allocation2 + $0x190] sm:$0xff]
    %v141 = vld [vmem:[#allocation2 + $0x198] sm:$0xff]
    %v142 = vld [vmem:[#allocation2 + $0x1a0] sm:$0xf]
    %v143 = vld [vmem:[#allocation2 + $0x1a4] sm:$0xff]
    %v144 = vld [vmem:[#allocation2 + $0x1ac] sm:$0xff]
    %v145 = vld [vmem:[#allocation2 + $0x1b4] sm:$0xff]
    %v146 = vld [vmem:[#allocation2 + $0x1bc] sm:$0xf]
    %v147 = vld [vmem:[#allocation2 + $0x1c0] sm:$0xff]
    %v148 = vld [vmem:[#allocation2 + $0x1c8] sm:$0xff]
    %v149 = vld [vmem:[#allocation2 + $0x1d0] sm:$0xff]
    %v150 = vld [vmem:[#allocation2 + $0x1d8] sm:$0xf]
    %v151 = vld [vmem:[#allocation2 + $0x1dc] sm:$0xff]
    %v152 = vld [vmem:[#allocation2 + $0x1e4] sm:$0xff]
    %v153 = vld [vmem:[#allocation2 + $0x1ec] sm:$0xff]
    %v154 = vld [vmem:[#allocation2 + $0x1f4] sm:$0xf]
    %v155 = vld [vmem:[#allocation2 + $0x1f8] sm:$0xff]
    %v156 = vld [vmem:[#allocation2 + $0x200] sm:$0xff]
    %v157 = vld [vmem:[#allocation2 + $0x208] sm:$0xff]
    %v158 = vld [vmem:[#allocation2 + $0x210] sm:$0xf]
    %v159 = vld [vmem:[#allocation2 + $0x214] sm:$0xff]
    %v160 = vld [vmem:[#allocation2 + $0x21c] sm:$0xff]
    %v161 = vld [vmem:[#allocation2 + $0x224] sm:$0xff]
    %v162 = vld [vmem:[#allocation2 + $0x22c] sm:$0xf]
    %v163 = vld [vmem:[#allocation2 + $0x230] sm:$0xff]
    %v164 = vld [vmem:[#allocation2 + $0x238] sm:$0xff]
    %v165 = vld [vmem:[#allocation2 + $0x240] sm:$0xff]
    %v166 = vld [vmem:[#allocation2 + $0x248] sm:$0xf]
    %v167 = vld [vmem:[#allocation2 + $0x24c] sm:$0xff]
    %v168 = vld [vmem:[#allocation2 + $0x254] sm:$0xff]
    %v169 = vld [vmem:[#allocation2 + $0x25c] sm:$0xff]
    %v170 = vld [vmem:[#allocation2 + $0x264] sm:$0xf]
    %v171 = vld [vmem:[#allocation2 + $0x268] sm:$0xff]
    %v172 = vld [vmem:[#allocation2 + $0x270] sm:$0xff]
    %v173 = vld [vmem:[#allocation2 + $0x278] sm:$0xff]
    %v174 = vld [vmem:[#allocation2 + $0x280] sm:$0xf]
    %v175 = vld [vmem:[#allocation2 + $0x284] sm:$0xff]
    %v176 = vld [vmem:[#allocation2 + $0x28c] sm:$0xff]
    %v177 = vld [vmem:[#allocation2 + $0x294] sm:$0xff]
    %v178 = vld [vmem:[#allocation2 + $0x29c] sm:$0xf]
    %v179 = vld [vmem:[#allocation2 + $0x2a0] sm:$0xff]
    %v180 = vld [vmem:[#allocation2 + $0x2a8] sm:$0xff]
    %v181 = vld [vmem:[#allocation2 + $0x2b0] sm:$0xff]
    %v182 = vld [vmem:[#allocation2 + $0x2b8] sm:$0xf]
    %v183 = vld [vmem:[#allocation2 + $0x2bc] sm:$0xff]
    %v184 = vld [vmem:[#allocation2 + $0x2c4] sm:$0xff]
    %v185 = vld [vmem:[#allocation2 + $0x2cc] sm:$0xff]
    %v186 = vld [vmem:[#allocation2 + $0x2d4] sm:$0xf]
    %v187 = vld [vmem:[#allocation2 + $0x2d8] sm:$0xff]
    %v188 = vld [vmem:[#allocation2 + $0x2e0] sm:$0xff]
    %v189 = vld [vmem:[#allocation2 + $0x2e8] sm:$0xff]
    %v190 = vld [vmem:[#allocation2 + $0x2f0] sm:$0xf]
    %v191 = vld [vmem:[#allocation2 + $0x2f4] sm:$0xff]
    %v192 = vld [vmem:[#allocation2 + $0x2fc] sm:$0xff]
    %v193 = vld [vmem:[#allocation2 + $0x304] sm:$0xff]
    %v194 = vld [vmem:[#allocation2 + $0x30c] sm:$0xf]
    %v195 = vld [vmem:[#allocation2 + $0x310] sm:$0xff]
    %v196 = vld [vmem:[#allocation2 + $0x318] sm:$0xff]
    %v197 = vld [vmem:[#allocation2 + $0x320] sm:$0xff]
    %v198 = vld [vmem:[#allocation2 + $0x328] sm:$0xf]
    %v199 = vld [vmem:[#allocation2 + $0x32c] sm:$0xff]
    %v200 = vld [vmem:[#allocation2 + $0x334] sm:$0xff]
    %v201 = vld [vmem:[#allocation2 + $0x33c] sm:$0xff]
    %v202 = vld [vmem:[#allocation2 + $0x344] sm:$0xf]
    %v203 = vld [vmem:[#allocation2 + $0x348] sm:$0xff]
    %v204 = vld [vmem:[#allocation2 + $0x350] sm:$0xff]
    %v205 = vld [vmem:[#allocation2 + $0x358] sm:$0xff]
    %v206 = vld [vmem:[#allocation2 + $0x360] sm:$0xf]
    %v207 = vld [vmem:[#allocation2 + $0x364] sm:$0xff]
    %v208 = vld [vmem:[#allocation2 + $0x36c] sm:$0xff]
    %v209 = vld [vmem:[#allocation2 + $0x374] sm:$0xff]
    %v210 = vld [vmem:[#allocation2 + $0x37c] sm:$0xf]
    %v211 = vld [vmem:[#allocation5] sm:$0xff]
    %v212 = vld [vmem:[#allocation5 + $0x8] sm:$0xff]
    %v213 = vld [vmem:[#allocation5 + $0x10] sm:$0xff]
    %v214 = vld [vmem:[#allocation5 + $0x18] sm:$0xff]
    %v215 = vld [vmem:[#allocation5 + $0x20] sm:$0xff]
    %v216 = vld [vmem:[#allocation5 + $0x28] sm:$0xff]
    %v217 = vld [vmem:[#allocation5 + $0x30] sm:$0xff]
    %v218 = vld [vmem:[#allocation5 + $0x38] sm:$0xff]
    %v219 = vld [vmem:[#allocation5 + $0x40] sm:$0xff]
    %v220 = vld [vmem:[#allocation5 + $0x48] sm:$0xff]
    %v221 = vld [vmem:[#allocation5 + $0x50] sm:$0xff]
    %v222 = vld [vmem:[#allocation5 + $0x58] sm:$0xff]
    %v223 = vld [vmem:[#allocation5 + $0x60] sm:$0xff]
    %v224 = vld [vmem:[#allocation5 + $0x68] sm:$0xff]
    %v225 = vld [vmem:[#allocation5 + $0x70] sm:$0xff]
    %v226 = vld [vmem:[#allocation5 + $0x78] sm:$0xff]
    %v227 = vld [vmem:[#allocation5 + $0x80] sm:$0xff]
    %v228 = vld [vmem:[#allocation5 + $0x88] sm:$0xff]
    %v229 = vld [vmem:[#allocation5 + $0x90] sm:$0xff]
    %v230 = vld [vmem:[#allocation5 + $0x98] sm:$0xff]
    %v231 = vld [vmem:[#allocation5 + $0xa0] sm:$0xff]
    %v232 = vld [vmem:[#allocation5 + $0xa8] sm:$0xff]
    %v233 = vld [vmem:[#allocation5 + $0xb0] sm:$0xff]
    %v234 = vld [vmem:[#allocation5 + $0xb8] sm:$0xff]
    %v235 = vld [vmem:[#allocation5 + $0xc0] sm:$0xff]
    %v236 = vld [vmem:[#allocation5 + $0xc8] sm:$0xff]
    %v237 = vld [vmem:[#allocation5 + $0xd0] sm:$0xff]
    %v238 = vld [vmem:[#allocation5 + $0xd8] sm:$0xff]
    %v239 = vld [vmem:[#allocation5 + $0xe0] sm:$0xff]
    %v240 = vld [vmem:[#allocation5 + $0xe8] sm:$0xff]
    %v241 = vld [vmem:[#allocation5 + $0xf0] sm:$0xff]
    %v242 = vld [vmem:[#allocation5 + $0xf8] sm:$0xff]
    %v243 = vld [vmem:[#allocation5 + $0x100] sm:$0xff]
    %v244 = vld [vmem:[#allocation5 + $0x108] sm:$0xff]
    %v245 = vld [vmem:[#allocation5 + $0x110] sm:$0xff]
    %v246 = vld [vmem:[#allocation5 + $0x118] sm:$0xff]
    %v247 = vld [vmem:[#allocation5 + $0x120] sm:$0xff]
    %v248 = vld [vmem:[#allocation5 + $0x128] sm:$0xff]
    %v249 = vld [vmem:[#allocation5 + $0x130] sm:$0xff]
    %v250 = vld [vmem:[#allocation5 + $0x138] sm:$0xff]
    %v251 = vld [vmem:[#allocation5 + $0x140] sm:$0xff]
    %v252 = vld [vmem:[#allocation5 + $0x148] sm:$0xff]
    %v253 = vld [vmem:[#allocation5 + $0x150] sm:$0xff]
    %v254 = vld [vmem:[#allocation5 + $0x158] sm:$0xff]
    %v255 = vld [vmem:[#allocation5 + $0x160] sm:$0xff]
    %v256 = vld [vmem:[#allocation5 + $0x168] sm:$0xff]
    %v257 = vld [vmem:[#allocation5 + $0x170] sm:$0xff]
    %v258 = vld [vmem:[#allocation5 + $0x178] sm:$0xff]
    %v259 = vld [vmem:[#allocation5 + $0x180] sm:$0xff]
    %v260 = vld [vmem:[#allocation5 + $0x188] sm:$0xff]
    %v261 = vld [vmem:[#allocation5 + $0x190] sm:$0xff]
    %v262 = vld [vmem:[#allocation5 + $0x198] sm:$0xff]
    %v263 = vld [vmem:[#allocation5 + $0x1a0] sm:$0xff]
    %v264 = vld [vmem:[#allocation5 + $0x1a8] sm:$0xff]
    %v265 = vld [vmem:[#allocation5 + $0x1b0] sm:$0xff]
    %v266 = vld [vmem:[#allocation5 + $0x1b8] sm:$0xff]
    %v267 = vld [vmem:[#allocation5 + $0x1c0] sm:$0xff]
    %v268 = vld [vmem:[#allocation5 + $0x1c8] sm:$0xff]
    %v269 = vld [vmem:[#allocation5 + $0x1d0] sm:$0xff]
    %v270 = vld [vmem:[#allocation5 + $0x1d8] sm:$0xff]
    %v271 = vld [vmem:[#allocation5 + $0x1e0] sm:$0xff]
    %v272 = vld [vmem:[#allocation5 + $0x1e8] sm:$0xff]
    %v273 = vld [vmem:[#allocation5 + $0x1f0] sm:$0xff]
    %v274 = vld [vmem:[#allocation5 + $0x1f8] sm:$0xff]
    %v275 = vld [vmem:[#allocation5 + $0x200] sm:$0xff]
    %v276 = vld [vmem:[#allocation5 + $0x208] sm:$0xff]
    %v277 = vld [vmem:[#allocation5 + $0x210] sm:$0xff]
    %v278 = vld [vmem:[#allocation5 + $0x218] sm:$0xff]
    %v279 = vld [vmem:[#allocation5 + $0x220] sm:$0xff]
    %v280 = vld [vmem:[#allocation5 + $0x228] sm:$0xff]
    %v281 = vld [vmem:[#allocation5 + $0x230] sm:$0xff]
    %v282 = vld [vmem:[#allocation5 + $0x238] sm:$0xff]
    %v283 = vld [vmem:[#allocation5 + $0x240] sm:$0xff]
    %v284 = vld [vmem:[#allocation5 + $0x248] sm:$0xff]
    %v285 = vld [vmem:[#allocation5 + $0x250] sm:$0xff]
    %v286 = vld [vmem:[#allocation5 + $0x258] sm:$0xff]
    %v287 = vld [vmem:[#allocation5 + $0x260] sm:$0xff]
    %v288 = vld [vmem:[#allocation5 + $0x268] sm:$0xff]
    %v289 = vld [vmem:[#allocation5 + $0x270] sm:$0xff]
    %v290 = vld [vmem:[#allocation5 + $0x278] sm:$0xff]
    %v291 = vld [vmem:[#allocation5 + $0x280] sm:$0xff]
    %v292 = vld [vmem:[#allocation5 + $0x288] sm:$0xff]
    %v293 = vld [vmem:[#allocation5 + $0x290] sm:$0xff]
    %v294 = vld [vmem:[#allocation5 + $0x298] sm:$0xff]
    %v295 = vld [vmem:[#allocation5 + $0x2a0] sm:$0xff]
    %v296 = vld [vmem:[#allocation5 + $0x2a8] sm:$0xff]
    %v297 = vld [vmem:[#allocation5 + $0x2b0] sm:$0xff]
    %v298 = vld [vmem:[#allocation5 + $0x2b8] sm:$0xff]
    %v299 = vld [vmem:[#allocation5 + $0x2c0] sm:$0xff]
    %v300 = vld [vmem:[#allocation5 + $0x2c8] sm:$0xff]
    %v301 = vld [vmem:[#allocation5 + $0x2d0] sm:$0xff]
    %v302 = vld [vmem:[#allocation5 + $0x2d8] sm:$0xff]
    %v303 = vld [vmem:[#allocation5 + $0x2e0] sm:$0xff]
    %v304 = vld [vmem:[#allocation5 + $0x2e8] sm:$0xff]
    %v305 = vld [vmem:[#allocation5 + $0x2f0] sm:$0xff]
    %v306 = vld [vmem:[#allocation5 + $0x2f8] sm:$0xff]
    %v307 = vld [vmem:[#allocation5 + $0x300] sm:$0xff]
    %v308 = vld [vmem:[#allocation5 + $0x308] sm:$0xff]
    %v309 = vld [vmem:[#allocation5 + $0x310] sm:$0xff]
    %v310 = vld [vmem:[#allocation5 + $0x318] sm:$0xff]
    %v311 = vld [vmem:[#allocation5 + $0x320] sm:$0xff]
    %v312 = vld [vmem:[#allocation5 + $0x328] sm:$0xff]
    %v313 = vld [vmem:[#allocation5 + $0x330] sm:$0xff]
    %v314 = vld [vmem:[#allocation5 + $0x338] sm:$0xff]
    %v315 = vld [vmem:[#allocation5 + $0x340] sm:$0xff]
    %v316 = vld [vmem:[#allocation5 + $0x348] sm:$0xff]
    %v317 = vld [vmem:[#allocation5 + $0x350] sm:$0xff]
    %v318 = vld [vmem:[#allocation5 + $0x358] sm:$0xff]
    %v319 = vld [vmem:[#allocation5 + $0x360] sm:$0xff]
    %v320 = vld [vmem:[#allocation5 + $0x368] sm:$0xff]
    %v321 = vld [vmem:[#allocation5 + $0x370] sm:$0xff]
    %v322 = vld [vmem:[#allocation5 + $0x378] sm:$0xff]
    %v323 = vld [vmem:[%s2] sm:$0x3]
    %v325 = vlaneseq
    %v326 = vshrl.u32 %v325, 7
    %v327 = vsub.s32 0, %v326
    %v328 = vrot.slane %v323, %v327
    %v329 = vlaneseq
    %v330 = vshrl.u32 %v329, 7
    %v331 = vsub.s32 1, %v330
    %v332 = vrot.slane %v323, %v331
    %v463 = vunpack.c.l.b16 %v83
    %v464 = vunpack.c.h.b16 %v83
    %v465 = vunpack.c.l.b16 %v84
    %v466 = vunpack.c.h.b16 %v84
    %v467 = vunpack.c.l.b16 %v85
    %v468 = vunpack.c.h.b16 %v85
    %v469 = vunpack.c.l.b16 %v86
    %v470 = vunpack.c.l.b16 %v87
    %v471 = vunpack.c.h.b16 %v87
    %v472 = vunpack.c.l.b16 %v88
    %v473 = vunpack.c.h.b16 %v88
    %v474 = vunpack.c.l.b16 %v89
    %v475 = vunpack.c.h.b16 %v89
    %v476 = vunpack.c.l.b16 %v90
    %v477 = vunpack.c.l.b16 %v91
    %v478 = vunpack.c.h.b16 %v91
    %v479 = vunpack.c.l.b16 %v92
    %v480 = vunpack.c.h.b16 %v92
    %v481 = vunpack.c.l.b16 %v93
    %v482 = vunpack.c.h.b16 %v93
    %v483 = vunpack.c.l.b16 %v94
    %v484 = vunpack.c.l.b16 %v95
    %v485 = vunpack.c.h.b16 %v95
    %v486 = vunpack.c.l.b16 %v96
    %v487 = vunpack.c.h.b16 %v96
    %v488 = vunpack.c.l.b16 %v97
    %v489 = vunpack.c.h.b16 %v97
    %v490 = vunpack.c.l.b16 %v98
    %v491 = vunpack.c.l.b16 %v99
    %v492 = vunpack.c.h.b16 %v99
    %v493 = vunpack.c.l.b16 %v100
    %v494 = vunpack.c.h.b16 %v100
    %v495 = vunpack.c.l.b16 %v101
    %v496 = vunpack.c.h.b16 %v101
    %v497 = vunpack.c.l.b16 %v102
    %v498 = vunpack.c.l.b16 %v103
    %v499 = vunpack.c.h.b16 %v103
    %v500 = vunpack.c.l.b16 %v104
    %v501 = vunpack.c.h.b16 %v104
    %v502 = vunpack.c.l.b16 %v105
    %v503 = vunpack.c.h.b16 %v105
    %v504 = vunpack.c.l.b16 %v106
    %v505 = vunpack.c.l.b16 %v107
    %v506 = vunpack.c.h.b16 %v107
    %v507 = vunpack.c.l.b16 %v108
    %v508 = vunpack.c.h.b16 %v108
    %v509 = vunpack.c.l.b16 %v109
    %v510 = vunpack.c.h.b16 %v109
    %v511 = vunpack.c.l.b16 %v110
    %v512 = vunpack.c.l.b16 %v111
    %v513 = vunpack.c.h.b16 %v111
    %v514 = vunpack.c.l.b16 %v112
    %v515 = vunpack.c.h.b16 %v112
    %v516 = vunpack.c.l.b16 %v113
    %v517 = vunpack.c.h.b16 %v113
    %v518 = vunpack.c.l.b16 %v114
    %v519 = vunpack.c.l.b16 %v115
    %v520 = vunpack.c.h.b16 %v115
    %v521 = vunpack.c.l.b16 %v116
    %v522 = vunpack.c.h.b16 %v116
    %v523 = vunpack.c.l.b16 %v117
    %v524 = vunpack.c.h.b16 %v117
    %v525 = vunpack.c.l.b16 %v118
    %v526 = vunpack.c.l.b16 %v119
    %v527 = vunpack.c.h.b16 %v119
    %v528 = vunpack.c.l.b16 %v120
    %v529 = vunpack.c.h.b16 %v120
    %v530 = vunpack.c.l.b16 %v121
    %v531 = vunpack.c.h.b16 %v121
    %v532 = vunpack.c.l.b16 %v122
    %v533 = vunpack.c.l.b16 %v123
    %v534 = vunpack.c.h.b16 %v123
    %v535 = vunpack.c.l.b16 %v124
    %v536 = vunpack.c.h.b16 %v124
    %v537 = vunpack.c.l.b16 %v125
    %v538 = vunpack.c.h.b16 %v125
    %v539 = vunpack.c.l.b16 %v126
    %v540 = vunpack.c.l.b16 %v127
    %v541 = vunpack.c.h.b16 %v127
    %v542 = vunpack.c.l.b16 %v128
    %v543 = vunpack.c.h.b16 %v128
    %v544 = vunpack.c.l.b16 %v129
    %v545 = vunpack.c.h.b16 %v129
    %v546 = vunpack.c.l.b16 %v130
    %v547 = vunpack.c.l.b16 %v131
    %v548 = vunpack.c.h.b16 %v131
    %v549 = vunpack.c.l.b16 %v132
    %v550 = vunpack.c.h.b16 %v132
    %v551 = vunpack.c.l.b16 %v133
    %v552 = vunpack.c.h.b16 %v133
    %v553 = vunpack.c.l.b16 %v134
    %v554 = vunpack.c.l.b16 %v135
    %v555 = vunpack.c.h.b16 %v135
    %v556 = vunpack.c.l.b16 %v136
    %v557 = vunpack.c.h.b16 %v136
    %v558 = vunpack.c.l.b16 %v137
    %v559 = vunpack.c.h.b16 %v137
    %v560 = vunpack.c.l.b16 %v138
    %v561 = vunpack.c.l.b16 %v139
    %v562 = vunpack.c.h.b16 %v139
    %v563 = vunpack.c.l.b16 %v140
    %v564 = vunpack.c.h.b16 %v140
    %v565 = vunpack.c.l.b16 %v141
    %v566 = vunpack.c.h.b16 %v141
    %v567 = vunpack.c.l.b16 %v142
    %v568 = vunpack.c.l.b16 %v143
    %v569 = vunpack.c.h.b16 %v143
    %v570 = vunpack.c.l.b16 %v144
    %v571 = vunpack.c.h.b16 %v144
    %v572 = vunpack.c.l.b16 %v145
    %v573 = vunpack.c.h.b16 %v145
    %v574 = vunpack.c.l.b16 %v146
    %v575 = vunpack.c.l.b16 %v147
    %v576 = vunpack.c.h.b16 %v147
    %v577 = vunpack.c.l.b16 %v148
    %v578 = vunpack.c.h.b16 %v148
    %v579 = vunpack.c.l.b16 %v149
    %v580 = vunpack.c.h.b16 %v149
    %v581 = vunpack.c.l.b16 %v150
    %v582 = vunpack.c.l.b16 %v151
    %v583 = vunpack.c.h.b16 %v151
    %v584 = vunpack.c.l.b16 %v152
    %v585 = vunpack.c.h.b16 %v152
    %v586 = vunpack.c.l.b16 %v153
    %v587 = vunpack.c.h.b16 %v153
    %v588 = vunpack.c.l.b16 %v154
    %v589 = vunpack.c.l.b16 %v155
    %v590 = vunpack.c.h.b16 %v155
    %v591 = vunpack.c.l.b16 %v156
    %v592 = vunpack.c.h.b16 %v156
    %v593 = vunpack.c.l.b16 %v157
    %v594 = vunpack.c.h.b16 %v157
    %v595 = vunpack.c.l.b16 %v158
    %v596 = vunpack.c.l.b16 %v159
    %v597 = vunpack.c.h.b16 %v159
    %v598 = vunpack.c.l.b16 %v160
    %v599 = vunpack.c.h.b16 %v160
    %v600 = vunpack.c.l.b16 %v161
    %v601 = vunpack.c.h.b16 %v161
    %v602 = vunpack.c.l.b16 %v162
    %v603 = vunpack.c.l.b16 %v163
    %v604 = vunpack.c.h.b16 %v163
    %v605 = vunpack.c.l.b16 %v164
    %v606 = vunpack.c.h.b16 %v164
    %v607 = vunpack.c.l.b16 %v165
    %v608 = vunpack.c.h.b16 %v165
    %v609 = vunpack.c.l.b16 %v166
    %v610 = vunpack.c.l.b16 %v167
    %v611 = vunpack.c.h.b16 %v167
    %v612 = vunpack.c.l.b16 %v168
    %v613 = vunpack.c.h.b16 %v168
    %v614 = vunpack.c.l.b16 %v169
    %v615 = vunpack.c.h.b16 %v169
    %v616 = vunpack.c.l.b16 %v170
    %v617 = vunpack.c.l.b16 %v171
    %v618 = vunpack.c.h.b16 %v171
    %v619 = vunpack.c.l.b16 %v172
    %v620 = vunpack.c.h.b16 %v172
    %v621 = vunpack.c.l.b16 %v173
    %v622 = vunpack.c.h.b16 %v173
    %v623 = vunpack.c.l.b16 %v174
    %v624 = vunpack.c.l.b16 %v175
    %v625 = vunpack.c.h.b16 %v175
    %v626 = vunpack.c.l.b16 %v176
    %v627 = vunpack.c.h.b16 %v176
    %v628 = vunpack.c.l.b16 %v177
    %v629 = vunpack.c.h.b16 %v177
    %v630 = vunpack.c.l.b16 %v178
    %v631 = vunpack.c.l.b16 %v179
    %v632 = vunpack.c.h.b16 %v179
    %v633 = vunpack.c.l.b16 %v180
    %v634 = vunpack.c.h.b16 %v180
    %v635 = vunpack.c.l.b16 %v181
    %v636 = vunpack.c.h.b16 %v181
    %v637 = vunpack.c.l.b16 %v182
    %v638 = vunpack.c.l.b16 %v183
    %v639 = vunpack.c.h.b16 %v183
    %v640 = vunpack.c.l.b16 %v184
    %v641 = vunpack.c.h.b16 %v184
    %v642 = vunpack.c.l.b16 %v185
    %v643 = vunpack.c.h.b16 %v185
    %v644 = vunpack.c.l.b16 %v186
    %v645 = vunpack.c.l.b16 %v187
    %v646 = vunpack.c.h.b16 %v187
    %v647 = vunpack.c.l.b16 %v188
    %v648 = vunpack.c.h.b16 %v188
    %v649 = vunpack.c.l.b16 %v189
    %v650 = vunpack.c.h.b16 %v189
    %v651 = vunpack.c.l.b16 %v190
    %v652 = vunpack.c.l.b16 %v191
    %v653 = vunpack.c.h.b16 %v191
    %v654 = vunpack.c.l.b16 %v192
    %v655 = vunpack.c.h.b16 %v192
    %v656 = vunpack.c.l.b16 %v193
    %v657 = vunpack.c.h.b16 %v193
    %v658 = vunpack.c.l.b16 %v194
    %v659 = vunpack.c.l.b16 %v195
    %v660 = vunpack.c.h.b16 %v195
    %v661 = vunpack.c.l.b16 %v196
    %v662 = vunpack.c.h.b16 %v196
    %v663 = vunpack.c.l.b16 %v197
    %v664 = vunpack.c.h.b16 %v197
    %v665 = vunpack.c.l.b16 %v198
    %v666 = vunpack.c.l.b16 %v199
    %v667 = vunpack.c.h.b16 %v199
    %v668 = vunpack.c.l.b16 %v200
    %v669 = vunpack.c.h.b16 %v200
    %v670 = vunpack.c.l.b16 %v201
    %v671 = vunpack.c.h.b16 %v201
    %v672 = vunpack.c.l.b16 %v202
    %v673 = vunpack.c.l.b16 %v203
    %v674 = vunpack.c.h.b16 %v203
    %v675 = vunpack.c.l.b16 %v204
    %v676 = vunpack.c.h.b16 %v204
    %v677 = vunpack.c.l.b16 %v205
    %v678 = vunpack.c.h.b16 %v205
    %v679 = vunpack.c.l.b16 %v206
    %v680 = vunpack.c.l.b16 %v207
    %v681 = vunpack.c.h.b16 %v207
    %v682 = vunpack.c.l.b16 %v208
    %v683 = vunpack.c.h.b16 %v208
    %v684 = vunpack.c.l.b16 %v209
    %v685 = vunpack.c.h.b16 %v209
    %v686 = vunpack.c.l.b16 %v210
    %v687 = vpack.c.b16 %v470, %v463
    %v688 = vpack.c.b16 %v471, %v464
    %v689 = vpack.c.b16 %v472, %v465
    %v690 = vpack.c.b16 %v473, %v466
    %v691 = vpack.c.b16 %v474, %v467
    %v692 = vpack.c.b16 %v475, %v468
    %v693 = vpack.c.b16 %v476, %v469
    %v694 = vpack.c.b16 %v484, %v477
    %v695 = vpack.c.b16 %v485, %v478
    %v696 = vpack.c.b16 %v486, %v479
    %v697 = vpack.c.b16 %v487, %v480
    %v698 = vpack.c.b16 %v488, %v481
    %v699 = vpack.c.b16 %v489, %v482
    %v700 = vpack.c.b16 %v490, %v483
    %v701 = vpack.c.b16 %v498, %v491
    %v702 = vpack.c.b16 %v499, %v492
    %v703 = vpack.c.b16 %v500, %v493
    %v704 = vpack.c.b16 %v501, %v494
    %v705 = vpack.c.b16 %v502, %v495
    %v706 = vpack.c.b16 %v503, %v496
    %v707 = vpack.c.b16 %v504, %v497
    %v708 = vpack.c.b16 %v512, %v505
    %v709 = vpack.c.b16 %v513, %v506
    %v710 = vpack.c.b16 %v514, %v507
    %v711 = vpack.c.b16 %v515, %v508
    %v712 = vpack.c.b16 %v516, %v509
    %v713 = vpack.c.b16 %v517, %v510
    %v714 = vpack.c.b16 %v518, %v511
    %v715 = vpack.c.b16 %v526, %v519
    %v716 = vpack.c.b16 %v527, %v520
    %v717 = vpack.c.b16 %v528, %v521
    %v718 = vpack.c.b16 %v529, %v522
    %v719 = vpack.c.b16 %v530, %v523
    %v720 = vpack.c.b16 %v531, %v524
    %v721 = vpack.c.b16 %v532, %v525
    %v722 = vpack.c.b16 %v540, %v533
    %v723 = vpack.c.b16 %v541, %v534
    %v724 = vpack.c.b16 %v542, %v535
    %v725 = vpack.c.b16 %v543, %v536
    %v726 = vpack.c.b16 %v544, %v537
    %v727 = vpack.c.b16 %v545, %v538
    %v728 = vpack.c.b16 %v546, %v539
    %v729 = vpack.c.b16 %v554, %v547
    %v730 = vpack.c.b16 %v555, %v548
    %v731 = vpack.c.b16 %v556, %v549
    %v732 = vpack.c.b16 %v557, %v550
    %v733 = vpack.c.b16 %v558, %v551
    %v734 = vpack.c.b16 %v559, %v552
    %v735 = vpack.c.b16 %v560, %v553
    %v736 = vpack.c.b16 %v568, %v561
    %v737 = vpack.c.b16 %v569, %v562
    %v738 = vpack.c.b16 %v570, %v563
    %v739 = vpack.c.b16 %v571, %v564
    %v740 = vpack.c.b16 %v572, %v565
    %v741 = vpack.c.b16 %v573, %v566
    %v742 = vpack.c.b16 %v574, %v567
    %v743 = vpack.c.b16 %v582, %v575
    %v744 = vpack.c.b16 %v583, %v576
    %v745 = vpack.c.b16 %v584, %v577
    %v746 = vpack.c.b16 %v585, %v578
    %v747 = vpack.c.b16 %v586, %v579
    %v748 = vpack.c.b16 %v587, %v580
    %v749 = vpack.c.b16 %v588, %v581
    %v750 = vpack.c.b16 %v596, %v589
    %v751 = vpack.c.b16 %v597, %v590
    %v752 = vpack.c.b16 %v598, %v591
    %v753 = vpack.c.b16 %v599, %v592
    %v754 = vpack.c.b16 %v600, %v593
    %v755 = vpack.c.b16 %v601, %v594
    %v756 = vpack.c.b16 %v602, %v595
    %v757 = vpack.c.b16 %v610, %v603
    %v758 = vpack.c.b16 %v611, %v604
    %v759 = vpack.c.b16 %v612, %v605
    %v760 = vpack.c.b16 %v613, %v606
    %v761 = vpack.c.b16 %v614, %v607
    %v762 = vpack.c.b16 %v615, %v608
    %v763 = vpack.c.b16 %v616, %v609
    %v764 = vpack.c.b16 %v624, %v617
    %v765 = vpack.c.b16 %v625, %v618
    %v766 = vpack.c.b16 %v626, %v619
    %v767 = vpack.c.b16 %v627, %v620
    %v768 = vpack.c.b16 %v628, %v621
    %v769 = vpack.c.b16 %v629, %v622
    %v770 = vpack.c.b16 %v630, %v623
    %v771 = vpack.c.b16 %v638, %v631
    %v772 = vpack.c.b16 %v639, %v632
    %v773 = vpack.c.b16 %v640, %v633
    %v774 = vpack.c.b16 %v641, %v634
    %v775 = vpack.c.b16 %v642, %v635
    %v776 = vpack.c.b16 %v643, %v636
    %v777 = vpack.c.b16 %v644, %v637
    %v778 = vpack.c.b16 %v652, %v645
    %v779 = vpack.c.b16 %v653, %v646
    %v780 = vpack.c.b16 %v654, %v647
    %v781 = vpack.c.b16 %v655, %v648
    %v782 = vpack.c.b16 %v656, %v649
    %v783 = vpack.c.b16 %v657, %v650
    %v784 = vpack.c.b16 %v658, %v651
    %v785 = vpack.c.b16 %v666, %v659
    %v786 = vpack.c.b16 %v667, %v660
    %v787 = vpack.c.b16 %v668, %v661
    %v788 = vpack.c.b16 %v669, %v662
    %v789 = vpack.c.b16 %v670, %v663
    %v790 = vpack.c.b16 %v671, %v664
    %v791 = vpack.c.b16 %v672, %v665
    %v792 = vpack.c.b16 %v680, %v673
    %v793 = vpack.c.b16 %v681, %v674
    %v794 = vpack.c.b16 %v682, %v675
    %v795 = vpack.c.b16 %v683, %v676
    %v796 = vpack.c.b16 %v684, %v677
    %v797 = vpack.c.b16 %v685, %v678
    %v798 = vpack.c.b16 %v686, %v679
    %v1023 = vunpack.c.l.b16 %v211
    %v1024 = vunpack.c.h.b16 %v211
    %v1025 = vunpack.c.l.b16 %v212
    %v1026 = vunpack.c.h.b16 %v212
    %v1027 = vunpack.c.l.b16 %v213
    %v1028 = vunpack.c.h.b16 %v213
    %v1029 = vunpack.c.l.b16 %v214
    %v1030 = vunpack.c.h.b16 %v214
    %v1031 = vunpack.c.l.b16 %v215
    %v1032 = vunpack.c.h.b16 %v215
    %v1033 = vunpack.c.l.b16 %v216
    %v1034 = vunpack.c.h.b16 %v216
    %v1035 = vunpack.c.l.b16 %v217
    %v1036 = vunpack.c.h.b16 %v217
    %v1037 = vunpack.c.l.b16 %v218
    %v1038 = vunpack.c.h.b16 %v218
    %v1039 = vunpack.c.l.b16 %v219
    %v1040 = vunpack.c.h.b16 %v219
    %v1041 = vunpack.c.l.b16 %v220
    %v1042 = vunpack.c.h.b16 %v220
    %v1043 = vunpack.c.l.b16 %v221
    %v1044 = vunpack.c.h.b16 %v221
    %v1045 = vunpack.c.l.b16 %v222
    %v1046 = vunpack.c.h.b16 %v222
    %v1047 = vunpack.c.l.b16 %v223
    %v1048 = vunpack.c.h.b16 %v223
    %v1049 = vunpack.c.l.b16 %v224
    %v1050 = vunpack.c.h.b16 %v224
    %v1051 = vunpack.c.l.b16 %v225
    %v1052 = vunpack.c.h.b16 %v225
    %v1053 = vunpack.c.l.b16 %v226
    %v1054 = vunpack.c.h.b16 %v226
    %v1055 = vunpack.c.l.b16 %v227
    %v1056 = vunpack.c.h.b16 %v227
    %v1057 = vunpack.c.l.b16 %v228
    %v1058 = vunpack.c.h.b16 %v228
    %v1059 = vunpack.c.l.b16 %v229
    %v1060 = vunpack.c.h.b16 %v229
    %v1061 = vunpack.c.l.b16 %v230
    %v1062 = vunpack.c.h.b16 %v230
    %v1063 = vunpack.c.l.b16 %v231
    %v1064 = vunpack.c.h.b16 %v231
    %v1065 = vunpack.c.l.b16 %v232
    %v1066 = vunpack.c.h.b16 %v232
    %v1067 = vunpack.c.l.b16 %v233
    %v1068 = vunpack.c.h.b16 %v233
    %v1069 = vunpack.c.l.b16 %v234
    %v1070 = vunpack.c.h.b16 %v234
    %v1071 = vunpack.c.l.b16 %v235
    %v1072 = vunpack.c.h.b16 %v235
    %v1073 = vunpack.c.l.b16 %v236
    %v1074 = vunpack.c.h.b16 %v236
    %v1075 = vunpack.c.l.b16 %v237
    %v1076 = vunpack.c.h.b16 %v237
    %v1077 = vunpack.c.l.b16 %v238
    %v1078 = vunpack.c.h.b16 %v238
    %v1079 = vunpack.c.l.b16 %v239
    %v1080 = vunpack.c.h.b16 %v239
    %v1081 = vunpack.c.l.b16 %v240
    %v1082 = vunpack.c.h.b16 %v240
    %v1083 = vunpack.c.l.b16 %v241
    %v1084 = vunpack.c.h.b16 %v241
    %v1085 = vunpack.c.l.b16 %v242
    %v1086 = vunpack.c.h.b16 %v242
    %v1087 = vunpack.c.l.b16 %v243
    %v1088 = vunpack.c.h.b16 %v243
    %v1089 = vunpack.c.l.b16 %v244
    %v1090 = vunpack.c.h.b16 %v244
    %v1091 = vunpack.c.l.b16 %v245
    %v1092 = vunpack.c.h.b16 %v245
    %v1093 = vunpack.c.l.b16 %v246
    %v1094 = vunpack.c.h.b16 %v246
    %v1095 = vunpack.c.l.b16 %v247
    %v1096 = vunpack.c.h.b16 %v247
    %v1097 = vunpack.c.l.b16 %v248
    %v1098 = vunpack.c.h.b16 %v248
    %v1099 = vunpack.c.l.b16 %v249
    %v1100 = vunpack.c.h.b16 %v249
    %v1101 = vunpack.c.l.b16 %v250
    %v1102 = vunpack.c.h.b16 %v250
    %v1103 = vunpack.c.l.b16 %v251
    %v1104 = vunpack.c.h.b16 %v251
    %v1105 = vunpack.c.l.b16 %v252
    %v1106 = vunpack.c.h.b16 %v252
    %v1107 = vunpack.c.l.b16 %v253
    %v1108 = vunpack.c.h.b16 %v253
    %v1109 = vunpack.c.l.b16 %v254
    %v1110 = vunpack.c.h.b16 %v254
    %v1111 = vunpack.c.l.b16 %v255
    %v1112 = vunpack.c.h.b16 %v255
    %v1113 = vunpack.c.l.b16 %v256
    %v1114 = vunpack.c.h.b16 %v256
    %v1115 = vunpack.c.l.b16 %v257
    %v1116 = vunpack.c.h.b16 %v257
    %v1117 = vunpack.c.l.b16 %v258
    %v1118 = vunpack.c.h.b16 %v258
    %v1119 = vunpack.c.l.b16 %v259
    %v1120 = vunpack.c.h.b16 %v259
    %v1121 = vunpack.c.l.b16 %v260
    %v1122 = vunpack.c.h.b16 %v260
    %v1123 = vunpack.c.l.b16 %v261
    %v1124 = vunpack.c.h.b16 %v261
    %v1125 = vunpack.c.l.b16 %v262
    %v1126 = vunpack.c.h.b16 %v262
    %v1127 = vunpack.c.l.b16 %v263
    %v1128 = vunpack.c.h.b16 %v263
    %v1129 = vunpack.c.l.b16 %v264
    %v1130 = vunpack.c.h.b16 %v264
    %v1131 = vunpack.c.l.b16 %v265
    %v1132 = vunpack.c.h.b16 %v265
    %v1133 = vunpack.c.l.b16 %v266
    %v1134 = vunpack.c.h.b16 %v266
    %v1135 = vunpack.c.l.b16 %v267
    %v1136 = vunpack.c.h.b16 %v267
    %v1137 = vunpack.c.l.b16 %v268
    %v1138 = vunpack.c.h.b16 %v268
    %v1139 = vunpack.c.l.b16 %v269
    %v1140 = vunpack.c.h.b16 %v269
    %v1141 = vunpack.c.l.b16 %v270
    %v1142 = vunpack.c.h.b16 %v270
    %v1143 = vunpack.c.l.b16 %v271
    %v1144 = vunpack.c.h.b16 %v271
    %v1145 = vunpack.c.l.b16 %v272
    %v1146 = vunpack.c.h.b16 %v272
    %v1147 = vunpack.c.l.b16 %v273
    %v1148 = vunpack.c.h.b16 %v273
    %v1149 = vunpack.c.l.b16 %v274
    %v1150 = vunpack.c.h.b16 %v274
    %v1151 = vunpack.c.l.b16 %v275
    %v1152 = vunpack.c.h.b16 %v275
    %v1153 = vunpack.c.l.b16 %v276
    %v1154 = vunpack.c.h.b16 %v276
    %v1155 = vunpack.c.l.b16 %v277
    %v1156 = vunpack.c.h.b16 %v277
    %v1157 = vunpack.c.l.b16 %v278
    %v1158 = vunpack.c.h.b16 %v278
    %v1159 = vunpack.c.l.b16 %v279
    %v1160 = vunpack.c.h.b16 %v279
    %v1161 = vunpack.c.l.b16 %v280
    %v1162 = vunpack.c.h.b16 %v280
    %v1163 = vunpack.c.l.b16 %v281
    %v1164 = vunpack.c.h.b16 %v281
    %v1165 = vunpack.c.l.b16 %v282
    %v1166 = vunpack.c.h.b16 %v282
    %v1167 = vunpack.c.l.b16 %v283
    %v1168 = vunpack.c.h.b16 %v283
    %v1169 = vunpack.c.l.b16 %v284
    %v1170 = vunpack.c.h.b16 %v284
    %v1171 = vunpack.c.l.b16 %v285
    %v1172 = vunpack.c.h.b16 %v285
    %v1173 = vunpack.c.l.b16 %v286
    %v1174 = vunpack.c.h.b16 %v286
    %v1175 = vunpack.c.l.b16 %v287
    %v1176 = vunpack.c.h.b16 %v287
    %v1177 = vunpack.c.l.b16 %v288
    %v1178 = vunpack.c.h.b16 %v288
    %v1179 = vunpack.c.l.b16 %v289
    %v1180 = vunpack.c.h.b16 %v289
    %v1181 = vunpack.c.l.b16 %v290
    %v1182 = vunpack.c.h.b16 %v290
    %v1183 = vunpack.c.l.b16 %v291
    %v1184 = vunpack.c.h.b16 %v291
    %v1185 = vunpack.c.l.b16 %v292
    %v1186 = vunpack.c.h.b16 %v292
    %v1187 = vunpack.c.l.b16 %v293
    %v1188 = vunpack.c.h.b16 %v293
    %v1189 = vunpack.c.l.b16 %v294
    %v1190 = vunpack.c.h.b16 %v294
    %v1191 = vunpack.c.l.b16 %v295
    %v1192 = vunpack.c.h.b16 %v295
    %v1193 = vunpack.c.l.b16 %v296
    %v1194 = vunpack.c.h.b16 %v296
    %v1195 = vunpack.c.l.b16 %v297
    %v1196 = vunpack.c.h.b16 %v297
    %v1197 = vunpack.c.l.b16 %v298
    %v1198 = vunpack.c.h.b16 %v298
    %v1199 = vunpack.c.l.b16 %v299
    %v1200 = vunpack.c.h.b16 %v299
    %v1201 = vunpack.c.l.b16 %v300
    %v1202 = vunpack.c.h.b16 %v300
    %v1203 = vunpack.c.l.b16 %v301
    %v1204 = vunpack.c.h.b16 %v301
    %v1205 = vunpack.c.l.b16 %v302
    %v1206 = vunpack.c.h.b16 %v302
    %v1207 = vunpack.c.l.b16 %v303
    %v1208 = vunpack.c.h.b16 %v303
    %v1209 = vunpack.c.l.b16 %v304
    %v1210 = vunpack.c.h.b16 %v304
    %v1211 = vunpack.c.l.b16 %v305
    %v1212 = vunpack.c.h.b16 %v305
    %v1213 = vunpack.c.l.b16 %v306
    %v1214 = vunpack.c.h.b16 %v306
    %v1215 = vunpack.c.l.b16 %v307
    %v1216 = vunpack.c.h.b16 %v307
    %v1217 = vunpack.c.l.b16 %v308
    %v1218 = vunpack.c.h.b16 %v308
    %v1219 = vunpack.c.l.b16 %v309
    %v1220 = vunpack.c.h.b16 %v309
    %v1221 = vunpack.c.l.b16 %v310
    %v1222 = vunpack.c.h.b16 %v310
    %v1223 = vunpack.c.l.b16 %v311
    %v1224 = vunpack.c.h.b16 %v311
    %v1225 = vunpack.c.l.b16 %v312
    %v1226 = vunpack.c.h.b16 %v312
    %v1227 = vunpack.c.l.b16 %v313
    %v1228 = vunpack.c.h.b16 %v313
    %v1229 = vunpack.c.l.b16 %v314
    %v1230 = vunpack.c.h.b16 %v314
    %v1231 = vunpack.c.l.b16 %v315
    %v1232 = vunpack.c.h.b16 %v315
    %v1233 = vunpack.c.l.b16 %v316
    %v1234 = vunpack.c.h.b16 %v316
    %v1235 = vunpack.c.l.b16 %v317
    %v1236 = vunpack.c.h.b16 %v317
    %v1237 = vunpack.c.l.b16 %v318
    %v1238 = vunpack.c.h.b16 %v318
    %v1239 = vunpack.c.l.b16 %v319
    %v1240 = vunpack.c.h.b16 %v319
    %v1241 = vunpack.c.l.b16 %v320
    %v1242 = vunpack.c.h.b16 %v320
    %v1243 = vunpack.c.l.b16 %v321
    %v1244 = vunpack.c.h.b16 %v321
    %v1245 = vunpack.c.l.b16 %v322
    %v1246 = vunpack.c.h.b16 %v322
    %v1247 = vpack.c.b16 %v1025, %v1023
    %v1248 = vpack.c.b16 %v1026, %v1024
    %v1249 = vpack.c.b16 %v1029, %v1027
    %v1250 = vpack.c.b16 %v1030, %v1028
    %v1251 = vpack.c.b16 %v1033, %v1031
    %v1252 = vpack.c.b16 %v1034, %v1032
    %v1253 = vpack.c.b16 %v1037, %v1035
    %v1254 = vpack.c.b16 %v1038, %v1036
    %v1255 = vpack.c.b16 %v1041, %v1039
    %v1256 = vpack.c.b16 %v1042, %v1040
    %v1257 = vpack.c.b16 %v1045, %v1043
    %v1258 = vpack.c.b16 %v1046, %v1044
    %v1259 = vpack.c.b16 %v1049, %v1047
    %v1260 = vpack.c.b16 %v1050, %v1048
    %v1261 = vpack.c.b16 %v1053, %v1051
    %v1262 = vpack.c.b16 %v1054, %v1052
    %v1263 = vpack.c.b16 %v1057, %v1055
    %v1264 = vpack.c.b16 %v1058, %v1056
    %v1265 = vpack.c.b16 %v1061, %v1059
    %v1266 = vpack.c.b16 %v1062, %v1060
    %v1267 = vpack.c.b16 %v1065, %v1063
    %v1268 = vpack.c.b16 %v1066, %v1064
    %v1269 = vpack.c.b16 %v1069, %v1067
    %v1270 = vpack.c.b16 %v1070, %v1068
    %v1271 = vpack.c.b16 %v1073, %v1071
    %v1272 = vpack.c.b16 %v1074, %v1072
    %v1273 = vpack.c.b16 %v1077, %v1075
    %v1274 = vpack.c.b16 %v1078, %v1076
    %v1275 = vpack.c.b16 %v1081, %v1079
    %v1276 = vpack.c.b16 %v1082, %v1080
    %v1277 = vpack.c.b16 %v1085, %v1083
    %v1278 = vpack.c.b16 %v1086, %v1084
    %v1279 = vpack.c.b16 %v1089, %v1087
    %v1280 = vpack.c.b16 %v1090, %v1088
    %v1281 = vpack.c.b16 %v1093, %v1091
    %v1282 = vpack.c.b16 %v1094, %v1092
    %v1283 = vpack.c.b16 %v1097, %v1095
    %v1284 = vpack.c.b16 %v1098, %v1096
    %v1285 = vpack.c.b16 %v1101, %v1099
    %v1286 = vpack.c.b16 %v1102, %v1100
    %v1287 = vpack.c.b16 %v1105, %v1103
    %v1288 = vpack.c.b16 %v1106, %v1104
    %v1289 = vpack.c.b16 %v1109, %v1107
    %v1290 = vpack.c.b16 %v1110, %v1108
    %v1291 = vpack.c.b16 %v1113, %v1111
    %v1292 = vpack.c.b16 %v1114, %v1112
    %v1293 = vpack.c.b16 %v1117, %v1115
    %v1294 = vpack.c.b16 %v1118, %v1116
    %v1295 = vpack.c.b16 %v1121, %v1119
    %v1296 = vpack.c.b16 %v1122, %v1120
    %v1297 = vpack.c.b16 %v1125, %v1123
    %v1298 = vpack.c.b16 %v1126, %v1124
    %v1299 = vpack.c.b16 %v1129, %v1127
    %v1300 = vpack.c.b16 %v1130, %v1128
    %v1301 = vpack.c.b16 %v1133, %v1131
    %v1302 = vpack.c.b16 %v1134, %v1132
    %v1303 = vpack.c.b16 %v1137, %v1135
    %v1304 = vpack.c.b16 %v1138, %v1136
    %v1305 = vpack.c.b16 %v1141, %v1139
    %v1306 = vpack.c.b16 %v1142, %v1140
    %v1307 = vpack.c.b16 %v1145, %v1143
    %v1308 = vpack.c.b16 %v1146, %v1144
    %v1309 = vpack.c.b16 %v1149, %v1147
    %v1310 = vpack.c.b16 %v1150, %v1148
    %v1311 = vpack.c.b16 %v1153, %v1151
    %v1312 = vpack.c.b16 %v1154, %v1152
    %v1313 = vpack.c.b16 %v1157, %v1155
    %v1314 = vpack.c.b16 %v1158, %v1156
    %v1315 = vpack.c.b16 %v1161, %v1159
    %v1316 = vpack.c.b16 %v1162, %v1160
    %v1317 = vpack.c.b16 %v1165, %v1163
    %v1318 = vpack.c.b16 %v1166, %v1164
    %v1319 = vpack.c.b16 %v1169, %v1167
    %v1320 = vpack.c.b16 %v1170, %v1168
    %v1321 = vpack.c.b16 %v1173, %v1171
    %v1322 = vpack.c.b16 %v1174, %v1172
    %v1323 = vpack.c.b16 %v1177, %v1175
    %v1324 = vpack.c.b16 %v1178, %v1176
    %v1325 = vpack.c.b16 %v1181, %v1179
    %v1326 = vpack.c.b16 %v1182, %v1180
    %v1327 = vpack.c.b16 %v1185, %v1183
    %v1328 = vpack.c.b16 %v1186, %v1184
    %v1329 = vpack.c.b16 %v1189, %v1187
    %v1330 = vpack.c.b16 %v1190, %v1188
    %v1331 = vpack.c.b16 %v1193, %v1191
    %v1332 = vpack.c.b16 %v1194, %v1192
    %v1333 = vpack.c.b16 %v1197, %v1195
    %v1334 = vpack.c.b16 %v1198, %v1196
    %v1335 = vpack.c.b16 %v1201, %v1199
    %v1336 = vpack.c.b16 %v1202, %v1200
    %v1337 = vpack.c.b16 %v1205, %v1203
    %v1338 = vpack.c.b16 %v1206, %v1204
    %v1339 = vpack.c.b16 %v1209, %v1207
    %v1340 = vpack.c.b16 %v1210, %v1208
    %v1341 = vpack.c.b16 %v1213, %v1211
    %v1342 = vpack.c.b16 %v1214, %v1212
    %v1343 = vpack.c.b16 %v1217, %v1215
    %v1344 = vpack.c.b16 %v1218, %v1216
    %v1345 = vpack.c.b16 %v1221, %v1219
    %v1346 = vpack.c.b16 %v1222, %v1220
    %v1347 = vpack.c.b16 %v1225, %v1223
    %v1348 = vpack.c.b16 %v1226, %v1224
    %v1349 = vpack.c.b16 %v1229, %v1227
    %v1350 = vpack.c.b16 %v1230, %v1228
    %v1351 = vpack.c.b16 %v1233, %v1231
    %v1352 = vpack.c.b16 %v1234, %v1232
    %v1353 = vpack.c.b16 %v1237, %v1235
    %v1354 = vpack.c.b16 %v1238, %v1236
    %v1355 = vpack.c.b16 %v1241, %v1239
    %v1356 = vpack.c.b16 %v1242, %v1240
    %v1357 = vpack.c.b16 %v1245, %v1243
    %v1358 = vpack.c.b16 %v1246, %v1244
    %1471 = vmatprep.subr.bf16.mxu0 %v1248
    %1472 = vmatpush1.bf16.msra.mxu0 %v1247
    %1473 = vmatprep.subr.bf16.mxu0 %v1250
    %1474 = vmatpush1.bf16.msra.mxu0 %v1249
    %1475 = vmatprep.subr.bf16.mxu0 %v1252
    %1476 = vmatpush1.bf16.msra.mxu0 %v1251
    %1477 = vmatprep.subr.bf16.mxu0 %v1254
    %1478 = vmatpush1.bf16.msra.mxu0 %v1253
    %1479 = vmatprep.subr.bf16.mxu0 %v1256
    %1480 = vmatpush1.bf16.msra.mxu0 %v1255
    %1481 = vmatprep.subr.bf16.mxu0 %v1258
    %1482 = vmatpush1.bf16.msra.mxu0 %v1257
    %1483 = vmatprep.subr.bf16.mxu0 %v1260
    %1484 = vmatpush1.bf16.msra.mxu0 %v1259
    %1485 = vmatprep.subr.bf16.mxu0 %v1262
    %1486 = vmatpush1.bf16.msra.mxu0 %v1261
    %1487 = vmatprep.subr.bf16.mxu0 %v1264
    %1488 = vmatpush1.bf16.msra.mxu0 %v1263
    %1489 = vmatprep.subr.bf16.mxu0 %v1266
    %1490 = vmatpush1.bf16.msra.mxu0 %v1265
    %1491 = vmatprep.subr.bf16.mxu0 %v1268
    %1492 = vmatpush1.bf16.msra.mxu0 %v1267
    %1493 = vmatprep.subr.bf16.mxu0 %v1270
    %1494 = vmatpush1.bf16.msra.mxu0 %v1269
    %1495 = vmatprep.subr.bf16.mxu0 %v1272
    %1496 = vmatpush1.bf16.msra.mxu0 %v1271
    %1497 = vmatprep.subr.bf16.mxu0 %v1274
    %1498 = vmatpush1.bf16.msra.mxu0 %v1273
    %1499 = vmatprep.subr.bf16.mxu0 %v1276
    %1500 = vmatpush1.bf16.msra.mxu0 %v1275
    %1501 = vmatprep.subr.bf16.mxu0 %v1278
    %1502 = vmatpush1.bf16.msra.mxu0 %v1277
    %1503 = vmatprep.mubr.bf16.mxu0 %v688
    %1504 = vmatmul.mubr.bf16.gmra.mrb[0].mxu0 %v687
    %v1505 = vpop.f32.mrb[0].mxu0
    %v1506 = vadd.f32 %v328, %v1505
    %v1507 = vpop.f32.mrb[0].mxu0
    %v1508 = vadd.f32 %v332, %v1507
    %v1509 = vpop.f32.mrb[0].mxu0
    %v1510 = vadd.f32 %v328, %v1509
    %v1511 = vpop.f32.mrb[0].mxu0
    %v1512 = vadd.f32 %v332, %v1511
    %1513 = vmatprep.mubr.bf16.mxu0 %v695
    %1514 = vmatmul.mubr.bf16.gmra.mrb[0].mxu0 %v694
    %v1515 = vpop.f32.mrb[0].mxu0
    %v1516 = vadd.f32 %v328, %v1515
    %v1517 = vpop.f32.mrb[0].mxu0
    %v1518 = vadd.f32 %v332, %v1517
    %v1519 = vpop.f32.mrb[0].mxu0
    %v1520 = vadd.f32 %v328, %v1519
    %v1521 = vpop.f32.mrb[0].mxu0
    %v1522 = vadd.f32 %v332, %v1521
    %1523 = vmatprep.mubr.bf16.mxu0 %v702
    %1524 = vmatmul.mubr.bf16.gmra.mrb[0].mxu0 %v701
    %v1525 = vpop.f32.mrb[0].mxu0
    %v1526 = vadd.f32 %v328, %v1525
    %v1527 = vpop.f32.mrb[0].mxu0
    %v1528 = vadd.f32 %v332, %v1527
    %v1529 = vpop.f32.mrb[0].mxu0
    %v1530 = vadd.f32 %v328, %v1529
    %v1531 = vpop.f32.mrb[0].mxu0
    %v1532 = vadd.f32 %v332, %v1531
    %1533 = vmatprep.mubr.bf16.mxu0 %v709
    %1534 = vmatmul.mubr.bf16.gmra.mrb[0].mxu0 %v708
    %v1535 = vpop.f32.mrb[0].mxu0
    %v1536 = vadd.f32 %v328, %v1535
    %v1537 = vpop.f32.mrb[0].mxu0
    %v1538 = vadd.f32 %v332, %v1537
    %v1539 = vpop.f32.mrb[0].mxu0
    %v1540 = vadd.f32 %v328, %v1539
    %v1541 = vpop.f32.mrb[0].mxu0
    %v1542 = vadd.f32 %v332, %v1541
    %1543 = vmatprep.mubr.bf16.mxu0 %v716
    %1544 = vmatmul.mubr.bf16.gmra.mrb[0].mxu0 %v715
    %v1545 = vpop.f32.mrb[0].mxu0
    %v1546 = vadd.f32 %v328, %v1545
    %v1547 = vpop.f32.mrb[0].mxu0
    %v1548 = vadd.f32 %v332, %v1547
    %v1549 = vpop.f32.mrb[0].mxu0
    %v1550 = vadd.f32 %v328, %v1549
    %v1551 = vpop.f32.mrb[0].mxu0
    %v1552 = vadd.f32 %v332, %v1551
    %1553 = vmatprep.mubr.bf16.mxu0 %v723
    %1554 = vmatmul.mubr.bf16.gmra.mrb[0].mxu0 %v722
    %v1555 = vpop.f32.mrb[0].mxu0
    %v1556 = vadd.f32 %v328, %v1555
    %v1557 = vpop.f32.mrb[0].mxu0
    %v1558 = vadd.f32 %v332, %v1557
    %v1559 = vpop.f32.mrb[0].mxu0
    %v1560 = vadd.f32 %v328, %v1559
    %v1561 = vpop.f32.mrb[0].mxu0
    %v1562 = vadd.f32 %v332, %v1561
    %1563 = vmatprep.mubr.bf16.mxu0 %v730
    %1564 = vmatmul.mubr.bf16.gmra.mrb[0].mxu0 %v729
    %v1565 = vpop.f32.mrb[0].mxu0
    %v1566 = vadd.f32 %v328, %v1565
    %v1567 = vpop.f32.mrb[0].mxu0
    %v1568 = vadd.f32 %v332, %v1567
    %v1569 = vpop.f32.mrb[0].mxu0
    %v1570 = vadd.f32 %v328, %v1569
    %v1571 = vpop.f32.mrb[0].mxu0
    %v1572 = vadd.f32 %v332, %v1571
    %1573 = vmatprep.mubr.bf16.mxu0 %v737
    %1574 = vmatmul.mubr.bf16.gmra.mrb[0].mxu0 %v736
    %v1575 = vpop.f32.mrb[0].mxu0
    %v1576 = vadd.f32 %v328, %v1575
    %v1577 = vpop.f32.mrb[0].mxu0
    %v1578 = vadd.f32 %v332, %v1577
    %v1579 = vpop.f32.mrb[0].mxu0
    %v1580 = vadd.f32 %v328, %v1579
    %v1581 = vpop.f32.mrb[0].mxu0
    %v1582 = vadd.f32 %v332, %v1581
    %1583 = vmatprep.mubr.bf16.mxu0 %v744
    %1584 = vmatmul.mubr.bf16.gmra.mrb[0].mxu0 %v743
    %v1585 = vpop.f32.mrb[0].mxu0
    %v1586 = vadd.f32 %v328, %v1585
    %v1587 = vpop.f32.mrb[0].mxu0
    %v1588 = vadd.f32 %v332, %v1587
    %v1589 = vpop.f32.mrb[0].mxu0
    %v1590 = vadd.f32 %v328, %v1589
    %v1591 = vpop.f32.mrb[0].mxu0
    %v1592 = vadd.f32 %v332, %v1591
    %1593 = vmatprep.mubr.bf16.mxu0 %v751
    %1594 = vmatmul.mubr.bf16.gmra.mrb[0].mxu0 %v750
    %v1595 = vpop.f32.mrb[0].mxu0
    %v1596 = vadd.f32 %v328, %v1595
    %v1597 = vpop.f32.mrb[0].mxu0
    %v1598 = vadd.f32 %v332, %v1597
    %v1599 = vpop.f32.mrb[0].mxu0
    %v1600 = vadd.f32 %v328, %v1599
    %v1601 = vpop.f32.mrb[0].mxu0
    %v1602 = vadd.f32 %v332, %v1601
    %1603 = vmatprep.mubr.bf16.mxu0 %v758
    %1604 = vmatmul.mubr.bf16.gmra.mrb[0].mxu0 %v757
    %v1605 = vpop.f32.mrb[0].mxu0
    %v1606 = vadd.f32 %v328, %v1605
    %v1607 = vpop.f32.mrb[0].mxu0
    %v1608 = vadd.f32 %v332, %v1607
    %v1609 = vpop.f32.mrb[0].mxu0
    %v1610 = vadd.f32 %v328, %v1609
    %v1611 = vpop.f32.mrb[0].mxu0
    %v1612 = vadd.f32 %v332, %v1611
    %1613 = vmatprep.mubr.bf16.mxu0 %v765
    %1614 = vmatmul.mubr.bf16.gmra.mrb[0].mxu0 %v764
    %v1615 = vpop.f32.mrb[0].mxu0
    %v1616 = vadd.f32 %v328, %v1615
    %v1617 = vpop.f32.mrb[0].mxu0
    %v1618 = vadd.f32 %v332, %v1617
    %v1619 = vpop.f32.mrb[0].mxu0
    %v1620 = vadd.f32 %v328, %v1619
    %v1621 = vpop.f32.mrb[0].mxu0
    %v1622 = vadd.f32 %v332, %v1621
    %1623 = vmatprep.mubr.bf16.mxu0 %v772
    %1624 = vmatmul.mubr.bf16.gmra.mrb[0].mxu0 %v771
    %v1625 = vpop.f32.mrb[0].mxu0
    %v1626 = vadd.f32 %v328, %v1625
    %v1627 = vpop.f32.mrb[0].mxu0
    %v1628 = vadd.f32 %v332, %v1627
    %v1629 = vpop.f32.mrb[0].mxu0
    %v1630 = vadd.f32 %v328, %v1629
    %v1631 = vpop.f32.mrb[0].mxu0
    %v1632 = vadd.f32 %v332, %v1631
    %1633 = vmatprep.mubr.bf16.mxu0 %v779
    %1634 = vmatmul.mubr.bf16.gmra.mrb[0].mxu0 %v778
    %v1635 = vpop.f32.mrb[0].mxu0
    %v1636 = vadd.f32 %v328, %v1635
    %v1637 = vpop.f32.mrb[0].mxu0
    %v1638 = vadd.f32 %v332, %v1637
    %v1639 = vpop.f32.mrb[0].mxu0
    %v1640 = vadd.f32 %v328, %v1639
    %v1641 = vpop.f32.mrb[0].mxu0
    %v1642 = vadd.f32 %v332, %v1641
    %1643 = vmatprep.mubr.bf16.mxu0 %v786
    %1644 = vmatmul.mubr.bf16.gmra.mrb[0].mxu0 %v785
    %v1645 = vpop.f32.mrb[0].mxu0
    %v1646 = vadd.f32 %v328, %v1645
    %v1647 = vpop.f32.mrb[0].mxu0
    %v1648 = vadd.f32 %v332, %v1647
    %v1649 = vpop.f32.mrb[0].mxu0
    %v1650 = vadd.f32 %v328, %v1649
    %v1651 = vpop.f32.mrb[0].mxu0
    %v1652 = vadd.f32 %v332, %v1651
    %1653 = vmatprep.mubr.bf16.mxu0 %v793
    %1654 = vmatmul.mubr.bf16.gmra.mrb[0].mxu0 %v792
    %v1655 = vpop.f32.mrb[0].mxu0
    %v1656 = vadd.f32 %v328, %v1655
    %v1657 = vpop.f32.mrb[0].mxu0
    %v1658 = vadd.f32 %v332, %v1657
    %v1659 = vpop.f32.mrb[0].mxu0
    %v1660 = vadd.f32 %v328, %v1659
    %v1661 = vpop.f32.mrb[0].mxu0
    %v1662 = vadd.f32 %v332, %v1661
    %1663 = vdwg.mxu0
    %1664 = vmatprep.subr.bf16.mxu0 %v1280
    %1665 = vmatpush1.bf16.msra.mxu0 %v1279
    %1666 = vmatprep.subr.bf16.mxu0 %v1282
    %1667 = vmatpush1.bf16.msra.mxu0 %v1281
    %1668 = vmatprep.subr.bf16.mxu0 %v1284
    %1669 = vmatpush1.bf16.msra.mxu0 %v1283
    %1670 = vmatprep.subr.bf16.mxu0 %v1286
    %1671 = vmatpush1.bf16.msra.mxu0 %v1285
    %1672 = vmatprep.subr.bf16.mxu0 %v1288
    %1673 = vmatpush1.bf16.msra.mxu0 %v1287
    %1674 = vmatprep.subr.bf16.mxu0 %v1290
    %1675 = vmatpush1.bf16.msra.mxu0 %v1289
    %1676 = vmatprep.subr.bf16.mxu0 %v1292
    %1677 = vmatpush1.bf16.msra.mxu0 %v1291
    %1678 = vmatprep.subr.bf16.mxu0 %v1294
    %1679 = vmatpush1.bf16.msra.mxu0 %v1293
    %1680 = vmatprep.subr.bf16.mxu0 %v1296
    %1681 = vmatpush1.bf16.msra.mxu0 %v1295
    %1682 = vmatprep.subr.bf16.mxu0 %v1298
    %1683 = vmatpush1.bf16.msra.mxu0 %v1297
    %1684 = vmatprep.subr.bf16.mxu0 %v1300
    %1685 = vmatpush1.bf16.msra.mxu0 %v1299
    %1686 = vmatprep.subr.bf16.mxu0 %v1302
    %1687 = vmatpush1.bf16.msra.mxu0 %v1301
    %1688 = vmatprep.subr.bf16.mxu0 %v1304
    %1689 = vmatpush1.bf16.msra.mxu0 %v1303
    %1690 = vmatprep.subr.bf16.mxu0 %v1306
    %1691 = vmatpush1.bf16.msra.mxu0 %v1305
    %1692 = vmatprep.subr.bf16.mxu0 %v1308
    %1693 = vmatpush1.bf16.msra.mxu0 %v1307
    %1694 = vmatprep.subr.bf16.mxu0 %v1310
    %1695 = vmatpush1.bf16.msra.mxu0 %v1309
    %1696 = vmatprep.mubr.bf16.mxu0 %v690
    %1697 = vmatmul.mubr.bf16.gmra.mrb[0].mxu0 %v689
    %v1698 = vpop.f32.mrb[0].mxu0
    %v1699 = vadd.f32 %v1506, %v1698
    %v1700 = vpop.f32.mrb[0].mxu0
    %v1701 = vadd.f32 %v1508, %v1700
    %v1702 = vpop.f32.mrb[0].mxu0
    %v1703 = vadd.f32 %v1510, %v1702
    %v1704 = vpop.f32.mrb[0].mxu0
    %v1705 = vadd.f32 %v1512, %v1704
    %1706 = vmatprep.mubr.bf16.mxu0 %v697
    %1707 = vmatmul.mubr.bf16.gmra.mrb[0].mxu0 %v696
    %v1708 = vpop.f32.mrb[0].mxu0
    %v1709 = vadd.f32 %v1516, %v1708
    %v1710 = vpop.f32.mrb[0].mxu0
    %v1711 = vadd.f32 %v1518, %v1710
    %v1712 = vpop.f32.mrb[0].mxu0
    %v1713 = vadd.f32 %v1520, %v1712
    %v1714 = vpop.f32.mrb[0].mxu0
    %v1715 = vadd.f32 %v1522, %v1714
    %1716 = vmatprep.mubr.bf16.mxu0 %v704
    %1717 = vmatmul.mubr.bf16.gmra.mrb[0].mxu0 %v703
    %v1718 = vpop.f32.mrb[0].mxu0
    %v1719 = vadd.f32 %v1526, %v1718
    %v1720 = vpop.f32.mrb[0].mxu0
    %v1721 = vadd.f32 %v1528, %v1720
    %v1722 = vpop.f32.mrb[0].mxu0
    %v1723 = vadd.f32 %v1530, %v1722
    %v1724 = vpop.f32.mrb[0].mxu0
    %v1725 = vadd.f32 %v1532, %v1724
    %1726 = vmatprep.mubr.bf16.mxu0 %v711
    %1727 = vmatmul.mubr.bf16.gmra.mrb[0].mxu0 %v710
    %v1728 = vpop.f32.mrb[0].mxu0
    %v1729 = vadd.f32 %v1536, %v1728
    %v1730 = vpop.f32.mrb[0].mxu0
    %v1731 = vadd.f32 %v1538, %v1730
    %v1732 = vpop.f32.mrb[0].mxu0
    %v1733 = vadd.f32 %v1540, %v1732
    %v1734 = vpop.f32.mrb[0].mxu0
    %v1735 = vadd.f32 %v1542, %v1734
    %1736 = vmatprep.mubr.bf16.mxu0 %v718
    %1737 = vmatmul.mubr.bf16.gmra.mrb[0].mxu0 %v717
    %v1738 = vpop.f32.mrb[0].mxu0
    %v1739 = vadd.f32 %v1546, %v1738
    %v1740 = vpop.f32.mrb[0].mxu0
    %v1741 = vadd.f32 %v1548, %v1740
    %v1742 = vpop.f32.mrb[0].mxu0
    %v1743 = vadd.f32 %v1550, %v1742
    %v1744 = vpop.f32.mrb[0].mxu0
    %v1745 = vadd.f32 %v1552, %v1744
    %1746 = vmatprep.mubr.bf16.mxu0 %v725
    %1747 = vmatmul.mubr.bf16.gmra.mrb[0].mxu0 %v724
    %v1748 = vpop.f32.mrb[0].mxu0
    %v1749 = vadd.f32 %v1556, %v1748
    %v1750 = vpop.f32.mrb[0].mxu0
    %v1751 = vadd.f32 %v1558, %v1750
    %v1752 = vpop.f32.mrb[0].mxu0
    %v1753 = vadd.f32 %v1560, %v1752
    %v1754 = vpop.f32.mrb[0].mxu0
    %v1755 = vadd.f32 %v1562, %v1754
    %1756 = vmatprep.mubr.bf16.mxu0 %v732
    %1757 = vmatmul.mubr.bf16.gmra.mrb[0].mxu0 %v731
    %v1758 = vpop.f32.mrb[0].mxu0
    %v1759 = vadd.f32 %v1566, %v1758
    %v1760 = vpop.f32.mrb[0].mxu0
    %v1761 = vadd.f32 %v1568, %v1760
    %v1762 = vpop.f32.mrb[0].mxu0
    %v1763 = vadd.f32 %v1570, %v1762
    %v1764 = vpop.f32.mrb[0].mxu0
    %v1765 = vadd.f32 %v1572, %v1764
    %1766 = vmatprep.mubr.bf16.mxu0 %v739
    %1767 = vmatmul.mubr.bf16.gmra.mrb[0].mxu0 %v738
    %v1768 = vpop.f32.mrb[0].mxu0
    %v1769 = vadd.f32 %v1576, %v1768
    %v1770 = vpop.f32.mrb[0].mxu0
    %v1771 = vadd.f32 %v1578, %v1770
    %v1772 = vpop.f32.mrb[0].mxu0
    %v1773 = vadd.f32 %v1580, %v1772
    %v1774 = vpop.f32.mrb[0].mxu0
    %v1775 = vadd.f32 %v1582, %v1774
    %1776 = vmatprep.mubr.bf16.mxu0 %v746
    %1777 = vmatmul.mubr.bf16.gmra.mrb[0].mxu0 %v745
    %v1778 = vpop.f32.mrb[0].mxu0
    %v1779 = vadd.f32 %v1586, %v1778
    %v1780 = vpop.f32.mrb[0].mxu0
    %v1781 = vadd.f32 %v1588, %v1780
    %v1782 = vpop.f32.mrb[0].mxu0
    %v1783 = vadd.f32 %v1590, %v1782
    %v1784 = vpop.f32.mrb[0].mxu0
    %v1785 = vadd.f32 %v1592, %v1784
    %1786 = vmatprep.mubr.bf16.mxu0 %v753
    %1787 = vmatmul.mubr.bf16.gmra.mrb[0].mxu0 %v752
    %v1788 = vpop.f32.mrb[0].mxu0
    %v1789 = vadd.f32 %v1596, %v1788
    %v1790 = vpop.f32.mrb[0].mxu0
    %v1791 = vadd.f32 %v1598, %v1790
    %v1792 = vpop.f32.mrb[0].mxu0
    %v1793 = vadd.f32 %v1600, %v1792
    %v1794 = vpop.f32.mrb[0].mxu0
    %v1795 = vadd.f32 %v1602, %v1794
    %1796 = vmatprep.mubr.bf16.mxu0 %v760
    %1797 = vmatmul.mubr.bf16.gmra.mrb[0].mxu0 %v759
    %v1798 = vpop.f32.mrb[0].mxu0
    %v1799 = vadd.f32 %v1606, %v1798
    %v1800 = vpop.f32.mrb[0].mxu0
    %v1801 = vadd.f32 %v1608, %v1800
    %v1802 = vpop.f32.mrb[0].mxu0
    %v1803 = vadd.f32 %v1610, %v1802
    %v1804 = vpop.f32.mrb[0].mxu0
    %v1805 = vadd.f32 %v1612, %v1804
    %1806 = vmatprep.mubr.bf16.mxu0 %v767
    %1807 = vmatmul.mubr.bf16.gmra.mrb[0].mxu0 %v766
    %v1808 = vpop.f32.mrb[0].mxu0
    %v1809 = vadd.f32 %v1616, %v1808
    %v1810 = vpop.f32.mrb[0].mxu0
    %v1811 = vadd.f32 %v1618, %v1810
    %v1812 = vpop.f32.mrb[0].mxu0
    %v1813 = vadd.f32 %v1620, %v1812
    %v1814 = vpop.f32.mrb[0].mxu0
    %v1815 = vadd.f32 %v1622, %v1814
    %1816 = vmatprep.mubr.bf16.mxu0 %v774
    %1817 = vmatmul.mubr.bf16.gmra.mrb[0].mxu0 %v773
    %v1818 = vpop.f32.mrb[0].mxu0
    %v1819 = vadd.f32 %v1626, %v1818
    %v1820 = vpop.f32.mrb[0].mxu0
    %v1821 = vadd.f32 %v1628, %v1820
    %v1822 = vpop.f32.mrb[0].mxu0
    %v1823 = vadd.f32 %v1630, %v1822
    %v1824 = vpop.f32.mrb[0].mxu0
    %v1825 = vadd.f32 %v1632, %v1824
    %1826 = vmatprep.mubr.bf16.mxu0 %v781
    %1827 = vmatmul.mubr.bf16.gmra.mrb[0].mxu0 %v780
    %v1828 = vpop.f32.mrb[0].mxu0
    %v1829 = vadd.f32 %v1636, %v1828
    %v1830 = vpop.f32.mrb[0].mxu0
    %v1831 = vadd.f32 %v1638, %v1830
    %v1832 = vpop.f32.mrb[0].mxu0
    %v1833 = vadd.f32 %v1640, %v1832
    %v1834 = vpop.f32.mrb[0].mxu0
    %v1835 = vadd.f32 %v1642, %v1834
    %1836 = vmatprep.mubr.bf16.mxu0 %v788
    %1837 = vmatmul.mubr.bf16.gmra.mrb[0].mxu0 %v787
    %v1838 = vpop.f32.mrb[0].mxu0
    %v1839 = vadd.f32 %v1646, %v1838
    %v1840 = vpop.f32.mrb[0].mxu0
    %v1841 = vadd.f32 %v1648, %v1840
    %v1842 = vpop.f32.mrb[0].mxu0
    %v1843 = vadd.f32 %v1650, %v1842
    %v1844 = vpop.f32.mrb[0].mxu0
    %v1845 = vadd.f32 %v1652, %v1844
    %1846 = vmatprep.mubr.bf16.mxu0 %v795
    %1847 = vmatmul.mubr.bf16.gmra.mrb[0].mxu0 %v794
    %v1848 = vpop.f32.mrb[0].mxu0
    %v1849 = vadd.f32 %v1656, %v1848
    %v1850 = vpop.f32.mrb[0].mxu0
    %v1851 = vadd.f32 %v1658, %v1850
    %v1852 = vpop.f32.mrb[0].mxu0
    %v1853 = vadd.f32 %v1660, %v1852
    %v1854 = vpop.f32.mrb[0].mxu0
    %v1855 = vadd.f32 %v1662, %v1854
    %1856 = vdwg.mxu0
    %1857 = vmatprep.subr.bf16.mxu0 %v1312
    %1858 = vmatpush1.bf16.msra.mxu0 %v1311
    %1859 = vmatprep.subr.bf16.mxu0 %v1314
    %1860 = vmatpush1.bf16.msra.mxu0 %v1313
    %1861 = vmatprep.subr.bf16.mxu0 %v1316
    %1862 = vmatpush1.bf16.msra.mxu0 %v1315
    %1863 = vmatprep.subr.bf16.mxu0 %v1318
    %1864 = vmatpush1.bf16.msra.mxu0 %v1317
    %1865 = vmatprep.subr.bf16.mxu0 %v1320
    %1866 = vmatpush1.bf16.msra.mxu0 %v1319
    %1867 = vmatprep.subr.bf16.mxu0 %v1322
    %1868 = vmatpush1.bf16.msra.mxu0 %v1321
    %1869 = vmatprep.subr.bf16.mxu0 %v1324
    %1870 = vmatpush1.bf16.msra.mxu0 %v1323
    %1871 = vmatprep.subr.bf16.mxu0 %v1326
    %1872 = vmatpush1.bf16.msra.mxu0 %v1325
    %1873 = vmatprep.subr.bf16.mxu0 %v1328
    %1874 = vmatpush1.bf16.msra.mxu0 %v1327
    %1875 = vmatprep.subr.bf16.mxu0 %v1330
    %1876 = vmatpush1.bf16.msra.mxu0 %v1329
    %1877 = vmatprep.subr.bf16.mxu0 %v1332
    %1878 = vmatpush1.bf16.msra.mxu0 %v1331
    %1879 = vmatprep.subr.bf16.mxu0 %v1334
    %1880 = vmatpush1.bf16.msra.mxu0 %v1333
    %1881 = vmatprep.subr.bf16.mxu0 %v1336
    %1882 = vmatpush1.bf16.msra.mxu0 %v1335
    %1883 = vmatprep.subr.bf16.mxu0 %v1338
    %1884 = vmatpush1.bf16.msra.mxu0 %v1337
    %1885 = vmatprep.subr.bf16.mxu0 %v1340
    %1886 = vmatpush1.bf16.msra.mxu0 %v1339
    %1887 = vmatprep.subr.bf16.mxu0 %v1342
    %1888 = vmatpush1.bf16.msra.mxu0 %v1341
    %1889 = vmatprep.mubr.bf16.mxu0 %v692
    %1890 = vmatmul.mubr.bf16.gmra.mrb[0].mxu0 %v691
    %v1891 = vpop.f32.mrb[0].mxu0
    %v1892 = vadd.f32 %v1699, %v1891
    %v1893 = vpop.f32.mrb[0].mxu0
    %v1894 = vadd.f32 %v1701, %v1893
    %v1895 = vpop.f32.mrb[0].mxu0
    %v1896 = vadd.f32 %v1703, %v1895
    %v1897 = vpop.f32.mrb[0].mxu0
    %v1898 = vadd.f32 %v1705, %v1897
    %1899 = vmatprep.mubr.bf16.mxu0 %v699
    %1900 = vmatmul.mubr.bf16.gmra.mrb[0].mxu0 %v698
    %v1901 = vpop.f32.mrb[0].mxu0
    %v1902 = vadd.f32 %v1709, %v1901
    %v1903 = vpop.f32.mrb[0].mxu0
    %v1904 = vadd.f32 %v1711, %v1903
    %v1905 = vpop.f32.mrb[0].mxu0
    %v1906 = vadd.f32 %v1713, %v1905
    %v1907 = vpop.f32.mrb[0].mxu0
    %v1908 = vadd.f32 %v1715, %v1907
    %1909 = vmatprep.mubr.bf16.mxu0 %v706
    %1910 = vmatmul.mubr.bf16.gmra.mrb[0].mxu0 %v705
    %v1911 = vpop.f32.mrb[0].mxu0
    %v1912 = vadd.f32 %v1719, %v1911
    %v1913 = vpop.f32.mrb[0].mxu0
    %v1914 = vadd.f32 %v1721, %v1913
    %v1915 = vpop.f32.mrb[0].mxu0
    %v1916 = vadd.f32 %v1723, %v1915
    %v1917 = vpop.f32.mrb[0].mxu0
    %v1918 = vadd.f32 %v1725, %v1917
    %1919 = vmatprep.mubr.bf16.mxu0 %v713
    %1920 = vmatmul.mubr.bf16.gmra.mrb[0].mxu0 %v712
    %v1921 = vpop.f32.mrb[0].mxu0
    %v1922 = vadd.f32 %v1729, %v1921
    %v1923 = vpop.f32.mrb[0].mxu0
    %v1924 = vadd.f32 %v1731, %v1923
    %v1925 = vpop.f32.mrb[0].mxu0
    %v1926 = vadd.f32 %v1733, %v1925
    %v1927 = vpop.f32.mrb[0].mxu0
    %v1928 = vadd.f32 %v1735, %v1927
    %1929 = vmatprep.mubr.bf16.mxu0 %v720
    %1930 = vmatmul.mubr.bf16.gmra.mrb[0].mxu0 %v719
    %v1931 = vpop.f32.mrb[0].mxu0
    %v1932 = vadd.f32 %v1739, %v1931
    %v1933 = vpop.f32.mrb[0].mxu0
    %v1934 = vadd.f32 %v1741, %v1933
    %v1935 = vpop.f32.mrb[0].mxu0
    %v1936 = vadd.f32 %v1743, %v1935
    %v1937 = vpop.f32.mrb[0].mxu0
    %v1938 = vadd.f32 %v1745, %v1937
    %1939 = vmatprep.mubr.bf16.mxu0 %v727
    %1940 = vmatmul.mubr.bf16.gmra.mrb[0].mxu0 %v726
    %v1941 = vpop.f32.mrb[0].mxu0
    %v1942 = vadd.f32 %v1749, %v1941
    %v1943 = vpop.f32.mrb[0].mxu0
    %v1944 = vadd.f32 %v1751, %v1943
    %v1945 = vpop.f32.mrb[0].mxu0
    %v1946 = vadd.f32 %v1753, %v1945
    %v1947 = vpop.f32.mrb[0].mxu0
    %v1948 = vadd.f32 %v1755, %v1947
    %1949 = vmatprep.mubr.bf16.mxu0 %v734
    %1950 = vmatmul.mubr.bf16.gmra.mrb[0].mxu0 %v733
    %v1951 = vpop.f32.mrb[0].mxu0
    %v1952 = vadd.f32 %v1759, %v1951
    %v1953 = vpop.f32.mrb[0].mxu0
    %v1954 = vadd.f32 %v1761, %v1953
    %v1955 = vpop.f32.mrb[0].mxu0
    %v1956 = vadd.f32 %v1763, %v1955
    %v1957 = vpop.f32.mrb[0].mxu0
    %v1958 = vadd.f32 %v1765, %v1957
    %1959 = vmatprep.mubr.bf16.mxu0 %v741
    %1960 = vmatmul.mubr.bf16.gmra.mrb[0].mxu0 %v740
    %v1961 = vpop.f32.mrb[0].mxu0
    %v1962 = vadd.f32 %v1769, %v1961
    %v1963 = vpop.f32.mrb[0].mxu0
    %v1964 = vadd.f32 %v1771, %v1963
    %v1965 = vpop.f32.mrb[0].mxu0
    %v1966 = vadd.f32 %v1773, %v1965
    %v1967 = vpop.f32.mrb[0].mxu0
    %v1968 = vadd.f32 %v1775, %v1967
    %1969 = vmatprep.mubr.bf16.mxu0 %v748
    %1970 = vmatmul.mubr.bf16.gmra.mrb[0].mxu0 %v747
    %v1971 = vpop.f32.mrb[0].mxu0
    %v1972 = vadd.f32 %v1779, %v1971
    %v1973 = vpop.f32.mrb[0].mxu0
    %v1974 = vadd.f32 %v1781, %v1973
    %v1975 = vpop.f32.mrb[0].mxu0
    %v1976 = vadd.f32 %v1783, %v1975
    %v1977 = vpop.f32.mrb[0].mxu0
    %v1978 = vadd.f32 %v1785, %v1977
    %1979 = vmatprep.mubr.bf16.mxu0 %v755
    %1980 = vmatmul.mubr.bf16.gmra.mrb[0].mxu0 %v754
    %v1981 = vpop.f32.mrb[0].mxu0
    %v1982 = vadd.f32 %v1789, %v1981
    %v1983 = vpop.f32.mrb[0].mxu0
    %v1984 = vadd.f32 %v1791, %v1983
    %v1985 = vpop.f32.mrb[0].mxu0
    %v1986 = vadd.f32 %v1793, %v1985
    %v1987 = vpop.f32.mrb[0].mxu0
    %v1988 = vadd.f32 %v1795, %v1987
    %1989 = vmatprep.mubr.bf16.mxu0 %v762
    %1990 = vmatmul.mubr.bf16.gmra.mrb[0].mxu0 %v761
    %v1991 = vpop.f32.mrb[0].mxu0
    %v1992 = vadd.f32 %v1799, %v1991
    %v1993 = vpop.f32.mrb[0].mxu0
    %v1994 = vadd.f32 %v1801, %v1993
    %v1995 = vpop.f32.mrb[0].mxu0
    %v1996 = vadd.f32 %v1803, %v1995
    %v1997 = vpop.f32.mrb[0].mxu0
    %v1998 = vadd.f32 %v1805, %v1997
    %1999 = vmatprep.mubr.bf16.mxu0 %v769
    %2000 = vmatmul.mubr.bf16.gmra.mrb[0].mxu0 %v768
    %v2001 = vpop.f32.mrb[0].mxu0
    %v2002 = vadd.f32 %v1809, %v2001
    %v2003 = vpop.f32.mrb[0].mxu0
    %v2004 = vadd.f32 %v1811, %v2003
    %v2005 = vpop.f32.mrb[0].mxu0
    %v2006 = vadd.f32 %v1813, %v2005
    %v2007 = vpop.f32.mrb[0].mxu0
    %v2008 = vadd.f32 %v1815, %v2007
    %2009 = vmatprep.mubr.bf16.mxu0 %v776
    %2010 = vmatmul.mubr.bf16.gmra.mrb[0].mxu0 %v775
    %v2011 = vpop.f32.mrb[0].mxu0
    %v2012 = vadd.f32 %v1819, %v2011
    %v2013 = vpop.f32.mrb[0].mxu0
    %v2014 = vadd.f32 %v1821, %v2013
    %v2015 = vpop.f32.mrb[0].mxu0
    %v2016 = vadd.f32 %v1823, %v2015
    %v2017 = vpop.f32.mrb[0].mxu0
    %v2018 = vadd.f32 %v1825, %v2017
    %2019 = vmatprep.mubr.bf16.mxu0 %v783
    %2020 = vmatmul.mubr.bf16.gmra.mrb[0].mxu0 %v782
    %v2021 = vpop.f32.mrb[0].mxu0
    %v2022 = vadd.f32 %v1829, %v2021
    %v2023 = vpop.f32.mrb[0].mxu0
    %v2024 = vadd.f32 %v1831, %v2023
    %v2025 = vpop.f32.mrb[0].mxu0
    %v2026 = vadd.f32 %v1833, %v2025
    %v2027 = vpop.f32.mrb[0].mxu0
    %v2028 = vadd.f32 %v1835, %v2027
    %2029 = vmatprep.mubr.bf16.mxu0 %v790
    %2030 = vmatmul.mubr.bf16.gmra.mrb[0].mxu0 %v789
    %v2031 = vpop.f32.mrb[0].mxu0
    %v2032 = vadd.f32 %v1839, %v2031
    %v2033 = vpop.f32.mrb[0].mxu0
    %v2034 = vadd.f32 %v1841, %v2033
    %v2035 = vpop.f32.mrb[0].mxu0
    %v2036 = vadd.f32 %v1843, %v2035
    %v2037 = vpop.f32.mrb[0].mxu0
    %v2038 = vadd.f32 %v1845, %v2037
    %2039 = vmatprep.mubr.bf16.mxu0 %v797
    %2040 = vmatmul.mubr.bf16.gmra.mrb[0].mxu0 %v796
    %v2041 = vpop.f32.mrb[0].mxu0
    %v2042 = vadd.f32 %v1849, %v2041
    %v2043 = vpop.f32.mrb[0].mxu0
    %v2044 = vadd.f32 %v1851, %v2043
    %v2045 = vpop.f32.mrb[0].mxu0
    %v2046 = vadd.f32 %v1853, %v2045
    %v2047 = vpop.f32.mrb[0].mxu0
    %v2048 = vadd.f32 %v1855, %v2047
    %2049 = vdwg.mxu0
    %2050 = vmatprep.subr.bf16.mxu0 %v1344
    %2051 = vmatpush1.bf16.msra.mxu0 %v1343
    %2052 = vmatprep.subr.bf16.mxu0 %v1346
    %2053 = vmatpush1.bf16.msra.mxu0 %v1345
    %2054 = vmatprep.subr.bf16.mxu0 %v1348
    %2055 = vmatpush1.bf16.msra.mxu0 %v1347
    %2056 = vmatprep.subr.bf16.mxu0 %v1350
    %2057 = vmatpush1.bf16.msra.mxu0 %v1349
    %2058 = vmatprep.subr.bf16.mxu0 %v1352
    %2059 = vmatpush1.bf16.msra.mxu0 %v1351
    %2060 = vmatprep.subr.bf16.mxu0 %v1354
    %2061 = vmatpush1.bf16.msra.mxu0 %v1353
    %2062 = vmatprep.subr.bf16.mxu0 %v1356
    %2063 = vmatpush1.bf16.msra.mxu0 %v1355
    %2064 = vmatprep.subr.bf16.mxu0 %v1358
    %2065 = vmatpush1.bf16.msra.mxu0 %v1357
    %2066 = vmatprep.subr.bf16.mxu0 0
    %2067 = vmatpush1.bf16.msra.mxu0 0
    %2068 = vmatprep.subr.bf16.mxu0 0
    %2069 = vmatpush1.bf16.msra.mxu0 0
    %2070 = vmatprep.subr.bf16.mxu0 0
    %2071 = vmatpush1.bf16.msra.mxu0 0
    %2072 = vmatprep.subr.bf16.mxu0 0
    %2073 = vmatpush1.bf16.msra.mxu0 0
    %2074 = vmatprep.subr.bf16.mxu0 0
    %2075 = vmatpush1.bf16.msra.mxu0 0
    %2076 = vmatprep.subr.bf16.mxu0 0
    %2077 = vmatpush1.bf16.msra.mxu0 0
    %2078 = vmatprep.subr.bf16.mxu0 0
    %2079 = vmatpush1.bf16.msra.mxu0 0
    %2080 = vmatprep.subr.bf16.mxu0 0
    %2081 = vmatpush1.bf16.msra.mxu0 0
    %2082 = vmatprep.mubr.bf16.mxu0 0
    %2083 = vmatmul.mubr.bf16.gmra.mrb[0].mxu0 %v693
    %v2084 = vpop.f32.mrb[0].mxu0
    %v2085 = vadd.f32 %v1892, %v2084
    %v2086 = vpop.f32.mrb[0].mxu0
    %v2087 = vadd.f32 %v1894, %v2086
    %v2088 = vpop.f32.mrb[0].mxu0
    %v2089 = vadd.f32 %v1896, %v2088
    %v2090 = vpop.f32.mrb[0].mxu0
    %v2091 = vadd.f32 %v1898, %v2090
    %2092 = vmatprep.mubr.bf16.mxu0 0
    %2093 = vmatmul.mubr.bf16.gmra.mrb[0].mxu0 %v700
    %v2094 = vpop.f32.mrb[0].mxu0
    %v2095 = vadd.f32 %v1902, %v2094
    %v2096 = vpop.f32.mrb[0].mxu0
    %v2097 = vadd.f32 %v1904, %v2096
    %v2098 = vpop.f32.mrb[0].mxu0
    %v2099 = vadd.f32 %v1906, %v2098
    %v2100 = vpop.f32.mrb[0].mxu0
    %v2101 = vadd.f32 %v1908, %v2100
    %2102 = vmatprep.mubr.bf16.mxu0 0
    %2103 = vmatmul.mubr.bf16.gmra.mrb[0].mxu0 %v707
    %v2104 = vpop.f32.mrb[0].mxu0
    %v2105 = vadd.f32 %v1912, %v2104
    %v2106 = vpop.f32.mrb[0].mxu0
    %v2107 = vadd.f32 %v1914, %v2106
    %v2108 = vpop.f32.mrb[0].mxu0
    %v2109 = vadd.f32 %v1916, %v2108
    %v2110 = vpop.f32.mrb[0].mxu0
    %v2111 = vadd.f32 %v1918, %v2110
    %2112 = vmatprep.mubr.bf16.mxu0 0
    %2113 = vmatmul.mubr.bf16.gmra.mrb[0].mxu0 %v714
    %v2114 = vpop.f32.mrb[0].mxu0
    %v2115 = vadd.f32 %v1922, %v2114
    %v2116 = vpop.f32.mrb[0].mxu0
    %v2117 = vadd.f32 %v1924, %v2116
    %v2118 = vpop.f32.mrb[0].mxu0
    %v2119 = vadd.f32 %v1926, %v2118
    %v2120 = vpop.f32.mrb[0].mxu0
    %v2121 = vadd.f32 %v1928, %v2120
    %2122 = vmatprep.mubr.bf16.mxu0 0
    %2123 = vmatmul.mubr.bf16.gmra.mrb[0].mxu0 %v721
    %v2124 = vpop.f32.mrb[0].mxu0
    %v2125 = vadd.f32 %v1932, %v2124
    %v2126 = vpop.f32.mrb[0].mxu0
    %v2127 = vadd.f32 %v1934, %v2126
    %v2128 = vpop.f32.mrb[0].mxu0
    %v2129 = vadd.f32 %v1936, %v2128
    %v2130 = vpop.f32.mrb[0].mxu0
    %v2131 = vadd.f32 %v1938, %v2130
    %2132 = vmatprep.mubr.bf16.mxu0 0
    %2133 = vmatmul.mubr.bf16.gmra.mrb[0].mxu0 %v728
    %v2134 = vpop.f32.mrb[0].mxu0
    %v2135 = vadd.f32 %v1942, %v2134
    %v2136 = vpop.f32.mrb[0].mxu0
    %v2137 = vadd.f32 %v1944, %v2136
    %v2138 = vpop.f32.mrb[0].mxu0
    %v2139 = vadd.f32 %v1946, %v2138
    %v2140 = vpop.f32.mrb[0].mxu0
    %v2141 = vadd.f32 %v1948, %v2140
    %2142 = vmatprep.mubr.bf16.mxu0 0
    %2143 = vmatmul.mubr.bf16.gmra.mrb[0].mxu0 %v735
    %v2144 = vpop.f32.mrb[0].mxu0
    %v2145 = vadd.f32 %v1952, %v2144
    %v2146 = vpop.f32.mrb[0].mxu0
    %v2147 = vadd.f32 %v1954, %v2146
    %v2148 = vpop.f32.mrb[0].mxu0
    %v2149 = vadd.f32 %v1956, %v2148
    %v2150 = vpop.f32.mrb[0].mxu0
    %v2151 = vadd.f32 %v1958, %v2150
    %2152 = vmatprep.mubr.bf16.mxu0 0
    %2153 = vmatmul.mubr.bf16.gmra.mrb[0].mxu0 %v742
    %v2154 = vpop.f32.mrb[0].mxu0
    %v2155 = vadd.f32 %v1962, %v2154
    %v2156 = vpop.f32.mrb[0].mxu0
    %v2157 = vadd.f32 %v1964, %v2156
    %v2158 = vpop.f32.mrb[0].mxu0
    %v2159 = vadd.f32 %v1966, %v2158
    %v2160 = vpop.f32.mrb[0].mxu0
    %v2161 = vadd.f32 %v1968, %v2160
    %2162 = vmatprep.mubr.bf16.mxu0 0
    %2163 = vmatmul.mubr.bf16.gmra.mrb[0].mxu0 %v749
    %v2164 = vpop.f32.mrb[0].mxu0
    %v2165 = vadd.f32 %v1972, %v2164
    %v2166 = vpop.f32.mrb[0].mxu0
    %v2167 = vadd.f32 %v1974, %v2166
    %v2168 = vpop.f32.mrb[0].mxu0
    %v2169 = vadd.f32 %v1976, %v2168
    %v2170 = vpop.f32.mrb[0].mxu0
    %v2171 = vadd.f32 %v1978, %v2170
    %2172 = vmatprep.mubr.bf16.mxu0 0
    %2173 = vmatmul.mubr.bf16.gmra.mrb[0].mxu0 %v756
    %v2174 = vpop.f32.mrb[0].mxu0
    %v2175 = vadd.f32 %v1982, %v2174
    %v2176 = vpop.f32.mrb[0].mxu0
    %v2177 = vadd.f32 %v1984, %v2176
    %v2178 = vpop.f32.mrb[0].mxu0
    %v2179 = vadd.f32 %v1986, %v2178
    %v2180 = vpop.f32.mrb[0].mxu0
    %v2181 = vadd.f32 %v1988, %v2180
    %2182 = vmatprep.mubr.bf16.mxu0 0
    %2183 = vmatmul.mubr.bf16.gmra.mrb[0].mxu0 %v763
    %v2184 = vpop.f32.mrb[0].mxu0
    %v2185 = vadd.f32 %v1992, %v2184
    %v2186 = vpop.f32.mrb[0].mxu0
    %v2187 = vadd.f32 %v1994, %v2186
    %v2188 = vpop.f32.mrb[0].mxu0
    %v2189 = vadd.f32 %v1996, %v2188
    %v2190 = vpop.f32.mrb[0].mxu0
    %v2191 = vadd.f32 %v1998, %v2190
    %2192 = vmatprep.mubr.bf16.mxu0 0
    %2193 = vmatmul.mubr.bf16.gmra.mrb[0].mxu0 %v770
    %v2194 = vpop.f32.mrb[0].mxu0
    %v2195 = vadd.f32 %v2002, %v2194
    %v2196 = vpop.f32.mrb[0].mxu0
    %v2197 = vadd.f32 %v2004, %v2196
    %v2198 = vpop.f32.mrb[0].mxu0
    %v2199 = vadd.f32 %v2006, %v2198
    %v2200 = vpop.f32.mrb[0].mxu0
    %v2201 = vadd.f32 %v2008, %v2200
    %2202 = vmatprep.mubr.bf16.mxu0 0
    %2203 = vmatmul.mubr.bf16.gmra.mrb[0].mxu0 %v777
    %v2204 = vpop.f32.mrb[0].mxu0
    %v2205 = vadd.f32 %v2012, %v2204
    %v2206 = vpop.f32.mrb[0].mxu0
    %v2207 = vadd.f32 %v2014, %v2206
    %v2208 = vpop.f32.mrb[0].mxu0
    %v2209 = vadd.f32 %v2016, %v2208
    %v2210 = vpop.f32.mrb[0].mxu0
    %v2211 = vadd.f32 %v2018, %v2210
    %2212 = vmatprep.mubr.bf16.mxu0 0
    %2213 = vmatmul.mubr.bf16.gmra.mrb[0].mxu0 %v784
    %v2214 = vpop.f32.mrb[0].mxu0
    %v2215 = vadd.f32 %v2022, %v2214
    %v2216 = vpop.f32.mrb[0].mxu0
    %v2217 = vadd.f32 %v2024, %v2216
    %v2218 = vpop.f32.mrb[0].mxu0
    %v2219 = vadd.f32 %v2026, %v2218
    %v2220 = vpop.f32.mrb[0].mxu0
    %v2221 = vadd.f32 %v2028, %v2220
    %2222 = vmatprep.mubr.bf16.mxu0 0
    %2223 = vmatmul.mubr.bf16.gmra.mrb[0].mxu0 %v791
    %v2224 = vpop.f32.mrb[0].mxu0
    %v2225 = vadd.f32 %v2032, %v2224
    %v2226 = vpop.f32.mrb[0].mxu0
    %v2227 = vadd.f32 %v2034, %v2226
    %v2228 = vpop.f32.mrb[0].mxu0
    %v2229 = vadd.f32 %v2036, %v2228
    %v2230 = vpop.f32.mrb[0].mxu0
    %v2231 = vadd.f32 %v2038, %v2230
    %2232 = vmatprep.mubr.bf16.mxu0 0
    %2233 = vmatmul.mubr.bf16.gmra.mrb[0].mxu0 %v798
    %v2234 = vpop.f32.mrb[0].mxu0
    %v2235 = vadd.f32 %v2042, %v2234
    %v2236 = vpop.f32.mrb[0].mxu0
    %v2237 = vadd.f32 %v2044, %v2236
    %v2238 = vpop.f32.mrb[0].mxu0
    %v2239 = vadd.f32 %v2046, %v2238
    %v2240 = vpop.f32.mrb[0].mxu0
    %v2241 = vadd.f32 %v2048, %v2240
    %2242 = vdwg.mxu0
    %vm2243 = vcmp.gt.f32.partialorder %v2085, 0.0
    %vm2244 = vcmp.gt.f32.partialorder %v2087, 0.0
    %vm2245 = vcmp.gt.f32.partialorder %v2089, 0.0
    %vm2246 = vcmp.gt.f32.partialorder %v2091, 0.0
    %vm2247 = vcmp.gt.f32.partialorder %v2095, 0.0
    %vm2248 = vcmp.gt.f32.partialorder %v2097, 0.0
    %vm2249 = vcmp.gt.f32.partialorder %v2099, 0.0
    %vm2250 = vcmp.gt.f32.partialorder %v2101, 0.0
    %vm2251 = vcmp.gt.f32.partialorder %v2105, 0.0
    %vm2252 = vcmp.gt.f32.partialorder %v2107, 0.0
    %vm2253 = vcmp.gt.f32.partialorder %v2109, 0.0
    %vm2254 = vcmp.gt.f32.partialorder %v2111, 0.0
    %vm2255 = vcmp.gt.f32.partialorder %v2115, 0.0
    %vm2256 = vcmp.gt.f32.partialorder %v2117, 0.0
    %vm2257 = vcmp.gt.f32.partialorder %v2119, 0.0
    %vm2258 = vcmp.gt.f32.partialorder %v2121, 0.0
    %vm2259 = vcmp.gt.f32.partialorder %v2125, 0.0
    %vm2260 = vcmp.gt.f32.partialorder %v2127, 0.0
    %vm2261 = vcmp.gt.f32.partialorder %v2129, 0.0
    %vm2262 = vcmp.gt.f32.partialorder %v2131, 0.0
    %vm2263 = vcmp.gt.f32.partialorder %v2135, 0.0
    %vm2264 = vcmp.gt.f32.partialorder %v2137, 0.0
    %vm2265 = vcmp.gt.f32.partialorder %v2139, 0.0
    %vm2266 = vcmp.gt.f32.partialorder %v2141, 0.0
    %vm2267 = vcmp.gt.f32.partialorder %v2145, 0.0
    %vm2268 = vcmp.gt.f32.partialorder %v2147, 0.0
    %vm2269 = vcmp.gt.f32.partialorder %v2149, 0.0
    %vm2270 = vcmp.gt.f32.partialorder %v2151, 0.0
    %vm2271 = vcmp.gt.f32.partialorder %v2155, 0.0
    %vm2272 = vcmp.gt.f32.partialorder %v2157, 0.0
    %vm2273 = vcmp.gt.f32.partialorder %v2159, 0.0
    %vm2274 = vcmp.gt.f32.partialorder %v2161, 0.0
    %vm2275 = vcmp.gt.f32.partialorder %v2165, 0.0
    %vm2276 = vcmp.gt.f32.partialorder %v2167, 0.0
    %vm2277 = vcmp.gt.f32.partialorder %v2169, 0.0
    %vm2278 = vcmp.gt.f32.partialorder %v2171, 0.0
    %vm2279 = vcmp.gt.f32.partialorder %v2175, 0.0
    %vm2280 = vcmp.gt.f32.partialorder %v2177, 0.0
    %vm2281 = vcmp.gt.f32.partialorder %v2179, 0.0
    %vm2282 = vcmp.gt.f32.partialorder %v2181, 0.0
    %vm2283 = vcmp.gt.f32.partialorder %v2185, 0.0
    %vm2284 = vcmp.gt.f32.partialorder %v2187, 0.0
    %vm2285 = vcmp.gt.f32.partialorder %v2189, 0.0
    %vm2286 = vcmp.gt.f32.partialorder %v2191, 0.0
    %vm2287 = vcmp.gt.f32.partialorder %v2195, 0.0
    %vm2288 = vcmp.gt.f32.partialorder %v2197, 0.0
    %vm2289 = vcmp.gt.f32.partialorder %v2199, 0.0
    %vm2290 = vcmp.gt.f32.partialorder %v2201, 0.0
    %vm2291 = vcmp.gt.f32.partialorder %v2205, 0.0
    %vm2292 = vcmp.gt.f32.partialorder %v2207, 0.0
    %vm2293 = vcmp.gt.f32.partialorder %v2209, 0.0
    %vm2294 = vcmp.gt.f32.partialorder %v2211, 0.0
    %vm2295 = vcmp.gt.f32.partialorder %v2215, 0.0
    %vm2296 = vcmp.gt.f32.partialorder %v2217, 0.0
    %vm2297 = vcmp.gt.f32.partialorder %v2219, 0.0
    %vm2298 = vcmp.gt.f32.partialorder %v2221, 0.0
    %vm2299 = vcmp.gt.f32.partialorder %v2225, 0.0
    %vm2300 = vcmp.gt.f32.partialorder %v2227, 0.0
    %vm2301 = vcmp.gt.f32.partialorder %v2229, 0.0
    %vm2302 = vcmp.gt.f32.partialorder %v2231, 0.0
    %vm2303 = vcmp.gt.f32.partialorder %v2235, 0.0
    %vm2304 = vcmp.gt.f32.partialorder %v2237, 0.0
    %vm2305 = vcmp.gt.f32.partialorder %v2239, 0.0
    %vm2306 = vcmp.gt.f32.partialorder %v2241, 0.0
    %v2307 = vmul.f32 %v2085, 0.2
    %v2308 = vmul.f32 %v2087, 0.2
    %v2309 = vmul.f32 %v2089, 0.2
    %v2310 = vmul.f32 %v2091, 0.2
    %v2311 = vmul.f32 %v2095, 0.2
    %v2312 = vmul.f32 %v2097, 0.2
    %v2313 = vmul.f32 %v2099, 0.2
    %v2314 = vmul.f32 %v2101, 0.2
    %v2315 = vmul.f32 %v2105, 0.2
    %v2316 = vmul.f32 %v2107, 0.2
    %v2317 = vmul.f32 %v2109, 0.2
    %v2318 = vmul.f32 %v2111, 0.2
    %v2319 = vmul.f32 %v2115, 0.2
    %v2320 = vmul.f32 %v2117, 0.2
    %v2321 = vmul.f32 %v2119, 0.2
    %v2322 = vmul.f32 %v2121, 0.2
    %v2323 = vmul.f32 %v2125, 0.2
    %v2324 = vmul.f32 %v2127, 0.2
    %v2325 = vmul.f32 %v2129, 0.2
    %v2326 = vmul.f32 %v2131, 0.2
    %v2327 = vmul.f32 %v2135, 0.2
    %v2328 = vmul.f32 %v2137, 0.2
    %v2329 = vmul.f32 %v2139, 0.2
    %v2330 = vmul.f32 %v2141, 0.2
    %v2331 = vmul.f32 %v2145, 0.2
    %v2332 = vmul.f32 %v2147, 0.2
    %v2333 = vmul.f32 %v2149, 0.2
    %v2334 = vmul.f32 %v2151, 0.2
    %v2335 = vmul.f32 %v2155, 0.2
    %v2336 = vmul.f32 %v2157, 0.2
    %v2337 = vmul.f32 %v2159, 0.2
    %v2338 = vmul.f32 %v2161, 0.2
    %v2339 = vmul.f32 %v2165, 0.2
    %v2340 = vmul.f32 %v2167, 0.2
    %v2341 = vmul.f32 %v2169, 0.2
    %v2342 = vmul.f32 %v2171, 0.2
    %v2343 = vmul.f32 %v2175, 0.2
    %v2344 = vmul.f32 %v2177, 0.2
    %v2345 = vmul.f32 %v2179, 0.2
    %v2346 = vmul.f32 %v2181, 0.2
    %v2347 = vmul.f32 %v2185, 0.2
    %v2348 = vmul.f32 %v2187, 0.2
    %v2349 = vmul.f32 %v2189, 0.2
    %v2350 = vmul.f32 %v2191, 0.2
    %v2351 = vmul.f32 %v2195, 0.2
    %v2352 = vmul.f32 %v2197, 0.2
    %v2353 = vmul.f32 %v2199, 0.2
    %v2354 = vmul.f32 %v2201, 0.2
    %v2355 = vmul.f32 %v2205, 0.2
    %v2356 = vmul.f32 %v2207, 0.2
    %v2357 = vmul.f32 %v2209, 0.2
    %v2358 = vmul.f32 %v2211, 0.2
    %v2359 = vmul.f32 %v2215, 0.2
    %v2360 = vmul.f32 %v2217, 0.2
    %v2361 = vmul.f32 %v2219, 0.2
    %v2362 = vmul.f32 %v2221, 0.2
    %v2363 = vmul.f32 %v2225, 0.2
    %v2364 = vmul.f32 %v2227, 0.2
    %v2365 = vmul.f32 %v2229, 0.2
    %v2366 = vmul.f32 %v2231, 0.2
    %v2367 = vmul.f32 %v2235, 0.2
    %v2368 = vmul.f32 %v2237, 0.2
    %v2369 = vmul.f32 %v2239, 0.2
    %v2370 = vmul.f32 %v2241, 0.2
    %v2371 = vsel %vm2243, %v2085, %v2307
    %v2372 = vsel %vm2244, %v2087, %v2308
    %v2373 = vsel %vm2245, %v2089, %v2309
    %v2374 = vsel %vm2246, %v2091, %v2310
    %v2375 = vsel %vm2247, %v2095, %v2311
    %v2376 = vsel %vm2248, %v2097, %v2312
    %v2377 = vsel %vm2249, %v2099, %v2313
    %v2378 = vsel %vm2250, %v2101, %v2314
    %v2379 = vsel %vm2251, %v2105, %v2315
    %v2380 = vsel %vm2252, %v2107, %v2316
    %v2381 = vsel %vm2253, %v2109, %v2317
    %v2382 = vsel %vm2254, %v2111, %v2318
    %v2383 = vsel %vm2255, %v2115, %v2319
    %v2384 = vsel %vm2256, %v2117, %v2320
    %v2385 = vsel %vm2257, %v2119, %v2321
    %v2386 = vsel %vm2258, %v2121, %v2322
    %v2387 = vsel %vm2259, %v2125, %v2323
    %v2388 = vsel %vm2260, %v2127, %v2324
    %v2389 = vsel %vm2261, %v2129, %v2325
    %v2390 = vsel %vm2262, %v2131, %v2326
    %v2391 = vsel %vm2263, %v2135, %v2327
    %v2392 = vsel %vm2264, %v2137, %v2328
    %v2393 = vsel %vm2265, %v2139, %v2329
    %v2394 = vsel %vm2266, %v2141, %v2330
    %v2395 = vsel %vm2267, %v2145, %v2331
    %v2396 = vsel %vm2268, %v2147, %v2332
    %v2397 = vsel %vm2269, %v2149, %v2333
    %v2398 = vsel %vm2270, %v2151, %v2334
    %v2399 = vsel %vm2271, %v2155, %v2335
    %v2400 = vsel %vm2272, %v2157, %v2336
    %v2401 = vsel %vm2273, %v2159, %v2337
    %v2402 = vsel %vm2274, %v2161, %v2338
    %v2403 = vsel %vm2275, %v2165, %v2339
    %v2404 = vsel %vm2276, %v2167, %v2340
    %v2405 = vsel %vm2277, %v2169, %v2341
    %v2406 = vsel %vm2278, %v2171, %v2342
    %v2407 = vsel %vm2279, %v2175, %v2343
    %v2408 = vsel %vm2280, %v2177, %v2344
    %v2409 = vsel %vm2281, %v2179, %v2345
    %v2410 = vsel %vm2282, %v2181, %v2346
    %v2411 = vsel %vm2283, %v2185, %v2347
    %v2412 = vsel %vm2284, %v2187, %v2348
    %v2413 = vsel %vm2285, %v2189, %v2349
    %v2414 = vsel %vm2286, %v2191, %v2350
    %v2415 = vsel %vm2287, %v2195, %v2351
    %v2416 = vsel %vm2288, %v2197, %v2352
    %v2417 = vsel %vm2289, %v2199, %v2353
    %v2418 = vsel %vm2290, %v2201, %v2354
    %v2419 = vsel %vm2291, %v2205, %v2355
    %v2420 = vsel %vm2292, %v2207, %v2356
    %v2421 = vsel %vm2293, %v2209, %v2357
    %v2422 = vsel %vm2294, %v2211, %v2358
    %v2423 = vsel %vm2295, %v2215, %v2359
    %v2424 = vsel %vm2296, %v2217, %v2360
    %v2425 = vsel %vm2297, %v2219, %v2361
    %v2426 = vsel %vm2298, %v2221, %v2362
    %v2427 = vsel %vm2299, %v2225, %v2363
    %v2428 = vsel %vm2300, %v2227, %v2364
    %v2429 = vsel %vm2301, %v2229, %v2365
    %v2430 = vsel %vm2302, %v2231, %v2366
    %v2431 = vsel %vm2303, %v2235, %v2367
    %v2432 = vsel %vm2304, %v2237, %v2368
    %v2433 = vsel %vm2305, %v2239, %v2369
    %v2434 = vsel %vm2306, %v2241, %v2370
    %v2435 = vpack.c.bf16 %v2373, %v2371
    %v2436 = vpack.c.bf16 %v2374, %v2372
    %v2437 = vpack.c.bf16 %v2377, %v2375
    %v2438 = vpack.c.bf16 %v2378, %v2376
    %v2439 = vpack.c.bf16 %v2381, %v2379
    %v2440 = vpack.c.bf16 %v2382, %v2380
    %v2441 = vpack.c.bf16 %v2385, %v2383
    %v2442 = vpack.c.bf16 %v2386, %v2384
    %v2443 = vpack.c.bf16 %v2389, %v2387
    %v2444 = vpack.c.bf16 %v2390, %v2388
    %v2445 = vpack.c.bf16 %v2393, %v2391
    %v2446 = vpack.c.bf16 %v2394, %v2392
    %v2447 = vpack.c.bf16 %v2397, %v2395
    %v2448 = vpack.c.bf16 %v2398, %v2396
    %v2449 = vpack.c.bf16 %v2401, %v2399
    %v2450 = vpack.c.bf16 %v2402, %v2400
    %v2451 = vpack.c.bf16 %v2405, %v2403
    %v2452 = vpack.c.bf16 %v2406, %v2404
    %v2453 = vpack.c.bf16 %v2409, %v2407
    %v2454 = vpack.c.bf16 %v2410, %v2408
    %v2455 = vpack.c.bf16 %v2413, %v2411
    %v2456 = vpack.c.bf16 %v2414, %v2412
    %v2457 = vpack.c.bf16 %v2417, %v2415
    %v2458 = vpack.c.bf16 %v2418, %v2416
    %v2459 = vpack.c.bf16 %v2421, %v2419
    %v2460 = vpack.c.bf16 %v2422, %v2420
    %v2461 = vpack.c.bf16 %v2425, %v2423
    %v2462 = vpack.c.bf16 %v2426, %v2424
    %v2463 = vpack.c.bf16 %v2429, %v2427
    %v2464 = vpack.c.bf16 %v2430, %v2428
    %v2465 = vpack.c.bf16 %v2433, %v2431
    %v2466 = vpack.c.bf16 %v2434, %v2432
    %v2467 = vld [vmem:[#allocation7] sm:$0xff]
    %v2468 = vld [vmem:[#allocation7 + $0x8] sm:$0xff]
    %v2469 = vld [vmem:[#allocation7 + $0x10] sm:$0xff]
    %v2470 = vld [vmem:[#allocation7 + $0x18] sm:$0xff]
    %v2471 = vld [vmem:[#allocation7 + $0x20] sm:$0xff]
    %v2472 = vld [vmem:[#allocation7 + $0x28] sm:$0xff]
    %v2473 = vld [vmem:[#allocation7 + $0x30] sm:$0xff]
    %v2474 = vld [vmem:[#allocation7 + $0x38] sm:$0xff]
    %v2475 = vld [vmem:[#allocation7 + $0x40] sm:$0xff]
    %v2476 = vld [vmem:[#allocation7 + $0x48] sm:$0xff]
    %v2477 = vld [vmem:[#allocation7 + $0x50] sm:$0xff]
    %v2478 = vld [vmem:[#allocation7 + $0x58] sm:$0xff]
    %v2479 = vld [vmem:[#allocation7 + $0x60] sm:$0xff]
    %v2480 = vld [vmem:[#allocation7 + $0x68] sm:$0xff]
    %v2481 = vld [vmem:[#allocation7 + $0x70] sm:$0xff]
    %v2482 = vld [vmem:[#allocation7 + $0x78] sm:$0xff]
    %v2483 = vld [vmem:[#allocation7 + $0x80] sm:$0xff]
    %v2484 = vld [vmem:[#allocation7 + $0x88] sm:$0xff]
    %v2485 = vld [vmem:[#allocation7 + $0x90] sm:$0xff]
    %v2486 = vld [vmem:[#allocation7 + $0x98] sm:$0xff]
    %v2487 = vld [vmem:[#allocation7 + $0xa0] sm:$0xff]
    %v2488 = vld [vmem:[#allocation7 + $0xa8] sm:$0xff]
    %v2489 = vld [vmem:[#allocation7 + $0xb0] sm:$0xff]
    %v2490 = vld [vmem:[#allocation7 + $0xb8] sm:$0xff]
    %v2491 = vld [vmem:[#allocation7 + $0xc0] sm:$0xff]
    %v2492 = vld [vmem:[#allocation7 + $0xc8] sm:$0xff]
    %v2493 = vld [vmem:[#allocation7 + $0xd0] sm:$0xff]
    %v2494 = vld [vmem:[#allocation7 + $0xd8] sm:$0xff]
    %v2495 = vld [vmem:[#allocation7 + $0xe0] sm:$0xff]
    %v2496 = vld [vmem:[#allocation7 + $0xe8] sm:$0xff]
    %v2497 = vld [vmem:[#allocation7 + $0xf0] sm:$0xff]
    %v2498 = vld [vmem:[#allocation7 + $0xf8] sm:$0xff]
    %v2499 = vld [vmem:[%s4] sm:$0x3]
    %v2501 = vlaneseq
    %v2502 = vshrl.u32 %v2501, 7
    %v2503 = vsub.s32 0, %v2502
    %v2504 = vrot.slane %v2499, %v2503
    %v2505 = vlaneseq
    %v2506 = vshrl.u32 %v2505, 7
    %v2507 = vsub.s32 1, %v2506
    %v2508 = vrot.slane %v2499, %v2507
    %v2543 = vunpack.c.l.b16 %v2467
    %v2544 = vunpack.c.h.b16 %v2467
    %v2545 = vunpack.c.l.b16 %v2468
    %v2546 = vunpack.c.h.b16 %v2468
    %v2547 = vunpack.c.l.b16 %v2469
    %v2548 = vunpack.c.h.b16 %v2469
    %v2549 = vunpack.c.l.b16 %v2470
    %v2550 = vunpack.c.h.b16 %v2470
    %v2551 = vunpack.c.l.b16 %v2471
    %v2552 = vunpack.c.h.b16 %v2471
    %v2553 = vunpack.c.l.b16 %v2472
    %v2554 = vunpack.c.h.b16 %v2472
    %v2555 = vunpack.c.l.b16 %v2473
    %v2556 = vunpack.c.h.b16 %v2473
    %v2557 = vunpack.c.l.b16 %v2474
    %v2558 = vunpack.c.h.b16 %v2474
    %v2559 = vunpack.c.l.b16 %v2475
    %v2560 = vunpack.c.h.b16 %v2475
    %v2561 = vunpack.c.l.b16 %v2476
    %v2562 = vunpack.c.h.b16 %v2476
    %v2563 = vunpack.c.l.b16 %v2477
    %v2564 = vunpack.c.h.b16 %v2477
    %v2565 = vunpack.c.l.b16 %v2478
    %v2566 = vunpack.c.h.b16 %v2478
    %v2567 = vunpack.c.l.b16 %v2479
    %v2568 = vunpack.c.h.b16 %v2479
    %v2569 = vunpack.c.l.b16 %v2480
    %v2570 = vunpack.c.h.b16 %v2480
    %v2571 = vunpack.c.l.b16 %v2481
    %v2572 = vunpack.c.h.b16 %v2481
    %v2573 = vunpack.c.l.b16 %v2482
    %v2574 = vunpack.c.h.b16 %v2482
    %v2575 = vunpack.c.l.b16 %v2483
    %v2576 = vunpack.c.h.b16 %v2483
    %v2577 = vunpack.c.l.b16 %v2484
    %v2578 = vunpack.c.h.b16 %v2484
    %v2579 = vunpack.c.l.b16 %v2485
    %v2580 = vunpack.c.h.b16 %v2485
    %v2581 = vunpack.c.l.b16 %v2486
    %v2582 = vunpack.c.h.b16 %v2486
    %v2583 = vunpack.c.l.b16 %v2487
    %v2584 = vunpack.c.h.b16 %v2487
    %v2585 = vunpack.c.l.b16 %v2488
    %v2586 = vunpack.c.h.b16 %v2488
    %v2587 = vunpack.c.l.b16 %v2489
    %v2588 = vunpack.c.h.b16 %v2489
    %v2589 = vunpack.c.l.b16 %v2490
    %v2590 = vunpack.c.h.b16 %v2490
    %v2591 = vunpack.c.l.b16 %v2491
    %v2592 = vunpack.c.h.b16 %v2491
    %v2593 = vunpack.c.l.b16 %v2492
    %v2594 = vunpack.c.h.b16 %v2492
    %v2595 = vunpack.c.l.b16 %v2493
    %v2596 = vunpack.c.h.b16 %v2493
    %v2597 = vunpack.c.l.b16 %v2494
    %v2598 = vunpack.c.h.b16 %v2494
    %v2599 = vunpack.c.l.b16 %v2495
    %v2600 = vunpack.c.h.b16 %v2495
    %v2601 = vunpack.c.l.b16 %v2496
    %v2602 = vunpack.c.h.b16 %v2496
    %v2603 = vunpack.c.l.b16 %v2497
    %v2604 = vunpack.c.h.b16 %v2497
    %v2605 = vunpack.c.l.b16 %v2498
    %v2606 = vunpack.c.h.b16 %v2498
    %v2607 = vpack.c.b16 %v2545, %v2543
    %v2608 = vpack.c.b16 %v2546, %v2544
    %v2609 = vpack.c.b16 %v2549, %v2547
    %v2610 = vpack.c.b16 %v2550, %v2548
    %v2611 = vpack.c.b16 %v2553, %v2551
    %v2612 = vpack.c.b16 %v2554, %v2552
    %v2613 = vpack.c.b16 %v2557, %v2555
    %v2614 = vpack.c.b16 %v2558, %v2556
    %v2615 = vpack.c.b16 %v2561, %v2559
    %v2616 = vpack.c.b16 %v2562, %v2560
    %v2617 = vpack.c.b16 %v2565, %v2563
    %v2618 = vpack.c.b16 %v2566, %v2564
    %v2619 = vpack.c.b16 %v2569, %v2567
    %v2620 = vpack.c.b16 %v2570, %v2568
    %v2621 = vpack.c.b16 %v2573, %v2571
    %v2622 = vpack.c.b16 %v2574, %v2572
    %v2623 = vpack.c.b16 %v2577, %v2575
    %v2624 = vpack.c.b16 %v2578, %v2576
    %v2625 = vpack.c.b16 %v2581, %v2579
    %v2626 = vpack.c.b16 %v2582, %v2580
    %v2627 = vpack.c.b16 %v2585, %v2583
    %v2628 = vpack.c.b16 %v2586, %v2584
    %v2629 = vpack.c.b16 %v2589, %v2587
    %v2630 = vpack.c.b16 %v2590, %v2588
    %v2631 = vpack.c.b16 %v2593, %v2591
    %v2632 = vpack.c.b16 %v2594, %v2592
    %v2633 = vpack.c.b16 %v2597, %v2595
    %v2634 = vpack.c.b16 %v2598, %v2596
    %v2635 = vpack.c.b16 %v2601, %v2599
    %v2636 = vpack.c.b16 %v2602, %v2600
    %v2637 = vpack.c.b16 %v2605, %v2603
    %v2638 = vpack.c.b16 %v2606, %v2604
    %2671 = vmatprep.subr.bf16.mxu0 %v2608
    %2672 = vmatpush1.bf16.msra.mxu0 %v2607
    %2673 = vmatprep.subr.bf16.mxu0 %v2610
    %2674 = vmatpush1.bf16.msra.mxu0 %v2609
    %2675 = vmatprep.subr.bf16.mxu0 %v2612
    %2676 = vmatpush1.bf16.msra.mxu0 %v2611
    %2677 = vmatprep.subr.bf16.mxu0 %v2614
    %2678 = vmatpush1.bf16.msra.mxu0 %v2613
    %2679 = vmatprep.subr.bf16.mxu0 %v2616
    %2680 = vmatpush1.bf16.msra.mxu0 %v2615
    %2681 = vmatprep.subr.bf16.mxu0 %v2618
    %2682 = vmatpush1.bf16.msra.mxu0 %v2617
    %2683 = vmatprep.subr.bf16.mxu0 %v2620
    %2684 = vmatpush1.bf16.msra.mxu0 %v2619
    %2685 = vmatprep.subr.bf16.mxu0 %v2622
    %2686 = vmatpush1.bf16.msra.mxu0 %v2621
    %2687 = vmatprep.subr.bf16.mxu0 %v2624
    %2688 = vmatpush1.bf16.msra.mxu0 %v2623
    %2689 = vmatprep.subr.bf16.mxu0 %v2626
    %2690 = vmatpush1.bf16.msra.mxu0 %v2625
    %2691 = vmatprep.subr.bf16.mxu0 %v2628
    %2692 = vmatpush1.bf16.msra.mxu0 %v2627
    %2693 = vmatprep.subr.bf16.mxu0 %v2630
    %2694 = vmatpush1.bf16.msra.mxu0 %v2629
    %2695 = vmatprep.subr.bf16.mxu0 %v2632
    %2696 = vmatpush1.bf16.msra.mxu0 %v2631
    %2697 = vmatprep.subr.bf16.mxu0 %v2634
    %2698 = vmatpush1.bf16.msra.mxu0 %v2633
    %2699 = vmatprep.subr.bf16.mxu0 %v2636
    %2700 = vmatpush1.bf16.msra.mxu0 %v2635
    %2701 = vmatprep.subr.bf16.mxu0 %v2638
    %2702 = vmatpush1.bf16.msra.mxu0 %v2637
    %2703 = vmatprep.mubr.bf16.mxu0 %v2436
    %2704 = vmatmul.mubr.bf16.gmra.mrb[0].mxu0 %v2435
    %v2705 = vpop.f32.mrb[0].mxu0
    %v2706 = vadd.f32 %v2504, %v2705
    %v2707 = vpop.f32.mrb[0].mxu0
    %v2708 = vadd.f32 %v2508, %v2707
    %v2709 = vpop.f32.mrb[0].mxu0
    %v2710 = vadd.f32 %v2504, %v2709
    %v2711 = vpop.f32.mrb[0].mxu0
    %v2712 = vadd.f32 %v2508, %v2711
    %2713 = vmatprep.mubr.bf16.mxu0 %v2438
    %2714 = vmatmul.mubr.bf16.gmra.mrb[0].mxu0 %v2437
    %v2715 = vpop.f32.mrb[0].mxu0
    %v2716 = vadd.f32 %v2504, %v2715
    %v2717 = vpop.f32.mrb[0].mxu0
    %v2718 = vadd.f32 %v2508, %v2717
    %v2719 = vpop.f32.mrb[0].mxu0
    %v2720 = vadd.f32 %v2504, %v2719
    %v2721 = vpop.f32.mrb[0].mxu0
    %v2722 = vadd.f32 %v2508, %v2721
    %2723 = vmatprep.mubr.bf16.mxu0 %v2440
    %2724 = vmatmul.mubr.bf16.gmra.mrb[0].mxu0 %v2439
    %v2725 = vpop.f32.mrb[0].mxu0
    %v2726 = vadd.f32 %v2504, %v2725
    %v2727 = vpop.f32.mrb[0].mxu0
    %v2728 = vadd.f32 %v2508, %v2727
    %v2729 = vpop.f32.mrb[0].mxu0
    %v2730 = vadd.f32 %v2504, %v2729
    %v2731 = vpop.f32.mrb[0].mxu0
    %v2732 = vadd.f32 %v2508, %v2731
    %2733 = vmatprep.mubr.bf16.mxu0 %v2442
    %2734 = vmatmul.mubr.bf16.gmra.mrb[0].mxu0 %v2441
    %v2735 = vpop.f32.mrb[0].mxu0
    %v2736 = vadd.f32 %v2504, %v2735
    %v2737 = vpop.f32.mrb[0].mxu0
    %v2738 = vadd.f32 %v2508, %v2737
    %v2739 = vpop.f32.mrb[0].mxu0
    %v2740 = vadd.f32 %v2504, %v2739
    %v2741 = vpop.f32.mrb[0].mxu0
    %v2742 = vadd.f32 %v2508, %v2741
    %2743 = vmatprep.mubr.bf16.mxu0 %v2444
    %2744 = vmatmul.mubr.bf16.gmra.mrb[0].mxu0 %v2443
    %v2745 = vpop.f32.mrb[0].mxu0
    %v2746 = vadd.f32 %v2504, %v2745
    %v2747 = vpop.f32.mrb[0].mxu0
    %v2748 = vadd.f32 %v2508, %v2747
    %v2749 = vpop.f32.mrb[0].mxu0
    %v2750 = vadd.f32 %v2504, %v2749
    %v2751 = vpop.f32.mrb[0].mxu0
    %v2752 = vadd.f32 %v2508, %v2751
    %2753 = vmatprep.mubr.bf16.mxu0 %v2446
    %2754 = vmatmul.mubr.bf16.gmra.mrb[0].mxu0 %v2445
    %v2755 = vpop.f32.mrb[0].mxu0
    %v2756 = vadd.f32 %v2504, %v2755
    %v2757 = vpop.f32.mrb[0].mxu0
    %v2758 = vadd.f32 %v2508, %v2757
    %v2759 = vpop.f32.mrb[0].mxu0
    %v2760 = vadd.f32 %v2504, %v2759
    %v2761 = vpop.f32.mrb[0].mxu0
    %v2762 = vadd.f32 %v2508, %v2761
    %2763 = vmatprep.mubr.bf16.mxu0 %v2448
    %2764 = vmatmul.mubr.bf16.gmra.mrb[0].mxu0 %v2447
    %v2765 = vpop.f32.mrb[0].mxu0
    %v2766 = vadd.f32 %v2504, %v2765
    %v2767 = vpop.f32.mrb[0].mxu0
    %v2768 = vadd.f32 %v2508, %v2767
    %v2769 = vpop.f32.mrb[0].mxu0
    %v2770 = vadd.f32 %v2504, %v2769
    %v2771 = vpop.f32.mrb[0].mxu0
    %v2772 = vadd.f32 %v2508, %v2771
    %2773 = vmatprep.mubr.bf16.mxu0 %v2450
    %2774 = vmatmul.mubr.bf16.gmra.mrb[0].mxu0 %v2449
    %v2775 = vpop.f32.mrb[0].mxu0
    %v2776 = vadd.f32 %v2504, %v2775
    %v2777 = vpop.f32.mrb[0].mxu0
    %v2778 = vadd.f32 %v2508, %v2777
    %v2779 = vpop.f32.mrb[0].mxu0
    %v2780 = vadd.f32 %v2504, %v2779
    %v2781 = vpop.f32.mrb[0].mxu0
    %v2782 = vadd.f32 %v2508, %v2781
    %2783 = vmatprep.mubr.bf16.mxu0 %v2452
    %2784 = vmatmul.mubr.bf16.gmra.mrb[0].mxu0 %v2451
    %v2785 = vpop.f32.mrb[0].mxu0
    %v2786 = vadd.f32 %v2504, %v2785
    %v2787 = vpop.f32.mrb[0].mxu0
    %v2788 = vadd.f32 %v2508, %v2787
    %v2789 = vpop.f32.mrb[0].mxu0
    %v2790 = vadd.f32 %v2504, %v2789
    %v2791 = vpop.f32.mrb[0].mxu0
    %v2792 = vadd.f32 %v2508, %v2791
    %2793 = vmatprep.mubr.bf16.mxu0 %v2454
    %2794 = vmatmul.mubr.bf16.gmra.mrb[0].mxu0 %v2453
    %v2795 = vpop.f32.mrb[0].mxu0
    %v2796 = vadd.f32 %v2504, %v2795
    %v2797 = vpop.f32.mrb[0].mxu0
    %v2798 = vadd.f32 %v2508, %v2797
    %v2799 = vpop.f32.mrb[0].mxu0
    %v2800 = vadd.f32 %v2504, %v2799
    %v2801 = vpop.f32.mrb[0].mxu0
    %v2802 = vadd.f32 %v2508, %v2801
    %2803 = vmatprep.mubr.bf16.mxu0 %v2456
    %2804 = vmatmul.mubr.bf16.gmra.mrb[0].mxu0 %v2455
    %v2805 = vpop.f32.mrb[0].mxu0
    %v2806 = vadd.f32 %v2504, %v2805
    %v2807 = vpop.f32.mrb[0].mxu0
    %v2808 = vadd.f32 %v2508, %v2807
    %v2809 = vpop.f32.mrb[0].mxu0
    %v2810 = vadd.f32 %v2504, %v2809
    %v2811 = vpop.f32.mrb[0].mxu0
    %v2812 = vadd.f32 %v2508, %v2811
    %2813 = vmatprep.mubr.bf16.mxu0 %v2458
    %2814 = vmatmul.mubr.bf16.gmra.mrb[0].mxu0 %v2457
    %v2815 = vpop.f32.mrb[0].mxu0
    %v2816 = vadd.f32 %v2504, %v2815
    %v2817 = vpop.f32.mrb[0].mxu0
    %v2818 = vadd.f32 %v2508, %v2817
    %v2819 = vpop.f32.mrb[0].mxu0
    %v2820 = vadd.f32 %v2504, %v2819
    %v2821 = vpop.f32.mrb[0].mxu0
    %v2822 = vadd.f32 %v2508, %v2821
    %2823 = vmatprep.mubr.bf16.mxu0 %v2460
    %2824 = vmatmul.mubr.bf16.gmra.mrb[0].mxu0 %v2459
    %v2825 = vpop.f32.mrb[0].mxu0
    %v2826 = vadd.f32 %v2504, %v2825
    %v2827 = vpop.f32.mrb[0].mxu0
    %v2828 = vadd.f32 %v2508, %v2827
    %v2829 = vpop.f32.mrb[0].mxu0
    %v2830 = vadd.f32 %v2504, %v2829
    %v2831 = vpop.f32.mrb[0].mxu0
    %v2832 = vadd.f32 %v2508, %v2831
    %2833 = vmatprep.mubr.bf16.mxu0 %v2462
    %2834 = vmatmul.mubr.bf16.gmra.mrb[0].mxu0 %v2461
    %v2835 = vpop.f32.mrb[0].mxu0
    %v2836 = vadd.f32 %v2504, %v2835
    %v2837 = vpop.f32.mrb[0].mxu0
    %v2838 = vadd.f32 %v2508, %v2837
    %v2839 = vpop.f32.mrb[0].mxu0
    %v2840 = vadd.f32 %v2504, %v2839
    %v2841 = vpop.f32.mrb[0].mxu0
    %v2842 = vadd.f32 %v2508, %v2841
    %2843 = vmatprep.mubr.bf16.mxu0 %v2464
    %2844 = vmatmul.mubr.bf16.gmra.mrb[0].mxu0 %v2463
    %v2845 = vpop.f32.mrb[0].mxu0
    %v2846 = vadd.f32 %v2504, %v2845
    %v2847 = vpop.f32.mrb[0].mxu0
    %v2848 = vadd.f32 %v2508, %v2847
    %v2849 = vpop.f32.mrb[0].mxu0
    %v2850 = vadd.f32 %v2504, %v2849
    %v2851 = vpop.f32.mrb[0].mxu0
    %v2852 = vadd.f32 %v2508, %v2851
    %2853 = vmatprep.mubr.bf16.mxu0 %v2466
    %2854 = vmatmul.mubr.bf16.gmra.mrb[0].mxu0 %v2465
    %v2855 = vpop.f32.mrb[0].mxu0
    %v2856 = vadd.f32 %v2504, %v2855
    %v2857 = vpop.f32.mrb[0].mxu0
    %v2858 = vadd.f32 %v2508, %v2857
    %v2859 = vpop.f32.mrb[0].mxu0
    %v2860 = vadd.f32 %v2504, %v2859
    %v2861 = vpop.f32.mrb[0].mxu0
    %v2862 = vadd.f32 %v2508, %v2861
    %2863 = vdwg.mxu0
    %vm2864 = vcmp.gt.f32.partialorder %v2706, 0.0
    %vm2865 = vcmp.gt.f32.partialorder %v2708, 0.0
    %vm2866 = vcmp.gt.f32.partialorder %v2710, 0.0
    %vm2867 = vcmp.gt.f32.partialorder %v2712, 0.0
    %vm2868 = vcmp.gt.f32.partialorder %v2716, 0.0
    %vm2869 = vcmp.gt.f32.partialorder %v2718, 0.0
    %vm2870 = vcmp.gt.f32.partialorder %v2720, 0.0
    %vm2871 = vcmp.gt.f32.partialorder %v2722, 0.0
    %vm2872 = vcmp.gt.f32.partialorder %v2726, 0.0
    %vm2873 = vcmp.gt.f32.partialorder %v2728, 0.0
    %vm2874 = vcmp.gt.f32.partialorder %v2730, 0.0
    %vm2875 = vcmp.gt.f32.partialorder %v2732, 0.0
    %vm2876 = vcmp.gt.f32.partialorder %v2736, 0.0
    %vm2877 = vcmp.gt.f32.partialorder %v2738, 0.0
    %vm2878 = vcmp.gt.f32.partialorder %v2740, 0.0
    %vm2879 = vcmp.gt.f32.partialorder %v2742, 0.0
    %vm2880 = vcmp.gt.f32.partialorder %v2746, 0.0
    %vm2881 = vcmp.gt.f32.partialorder %v2748, 0.0
    %vm2882 = vcmp.gt.f32.partialorder %v2750, 0.0
    %vm2883 = vcmp.gt.f32.partialorder %v2752, 0.0
    %vm2884 = vcmp.gt.f32.partialorder %v2756, 0.0
    %vm2885 = vcmp.gt.f32.partialorder %v2758, 0.0
    %vm2886 = vcmp.gt.f32.partialorder %v2760, 0.0
    %vm2887 = vcmp.gt.f32.partialorder %v2762, 0.0
    %vm2888 = vcmp.gt.f32.partialorder %v2766, 0.0
    %vm2889 = vcmp.gt.f32.partialorder %v2768, 0.0
    %vm2890 = vcmp.gt.f32.partialorder %v2770, 0.0
    %vm2891 = vcmp.gt.f32.partialorder %v2772, 0.0
    %vm2892 = vcmp.gt.f32.partialorder %v2776, 0.0
    %vm2893 = vcmp.gt.f32.partialorder %v2778, 0.0
    %vm2894 = vcmp.gt.f32.partialorder %v2780, 0.0
    %vm2895 = vcmp.gt.f32.partialorder %v2782, 0.0
    %vm2896 = vcmp.gt.f32.partialorder %v2786, 0.0
    %vm2897 = vcmp.gt.f32.partialorder %v2788, 0.0
    %vm2898 = vcmp.gt.f32.partialorder %v2790, 0.0
    %vm2899 = vcmp.gt.f32.partialorder %v2792, 0.0
    %vm2900 = vcmp.gt.f32.partialorder %v2796, 0.0
    %vm2901 = vcmp.gt.f32.partialorder %v2798, 0.0
    %vm2902 = vcmp.gt.f32.partialorder %v2800, 0.0
    %vm2903 = vcmp.gt.f32.partialorder %v2802, 0.0
    %vm2904 = vcmp.gt.f32.partialorder %v2806, 0.0
    %vm2905 = vcmp.gt.f32.partialorder %v2808, 0.0
    %vm2906 = vcmp.gt.f32.partialorder %v2810, 0.0
    %vm2907 = vcmp.gt.f32.partialorder %v2812, 0.0
    %vm2908 = vcmp.gt.f32.partialorder %v2816, 0.0
    %vm2909 = vcmp.gt.f32.partialorder %v2818, 0.0
    %vm2910 = vcmp.gt.f32.partialorder %v2820, 0.0
    %vm2911 = vcmp.gt.f32.partialorder %v2822, 0.0
    %vm2912 = vcmp.gt.f32.partialorder %v2826, 0.0
    %vm2913 = vcmp.gt.f32.partialorder %v2828, 0.0
    %vm2914 = vcmp.gt.f32.partialorder %v2830, 0.0
    %vm2915 = vcmp.gt.f32.partialorder %v2832, 0.0
    %vm2916 = vcmp.gt.f32.partialorder %v2836, 0.0
    %vm2917 = vcmp.gt.f32.partialorder %v2838, 0.0
    %vm2918 = vcmp.gt.f32.partialorder %v2840, 0.0
    %vm2919 = vcmp.gt.f32.partialorder %v2842, 0.0
    %vm2920 = vcmp.gt.f32.partialorder %v2846, 0.0
    %vm2921 = vcmp.gt.f32.partialorder %v2848, 0.0
    %vm2922 = vcmp.gt.f32.partialorder %v2850, 0.0
    %vm2923 = vcmp.gt.f32.partialorder %v2852, 0.0
    %vm2924 = vcmp.gt.f32.partialorder %v2856, 0.0
    %vm2925 = vcmp.gt.f32.partialorder %v2858, 0.0
    %vm2926 = vcmp.gt.f32.partialorder %v2860, 0.0
    %vm2927 = vcmp.gt.f32.partialorder %v2862, 0.0
    %v2928 = vmul.f32 %v2706, 0.2
    %v2929 = vmul.f32 %v2708, 0.2
    %v2930 = vmul.f32 %v2710, 0.2
    %v2931 = vmul.f32 %v2712, 0.2
    %v2932 = vmul.f32 %v2716, 0.2
    %v2933 = vmul.f32 %v2718, 0.2
    %v2934 = vmul.f32 %v2720, 0.2
    %v2935 = vmul.f32 %v2722, 0.2
    %v2936 = vmul.f32 %v2726, 0.2
    %v2937 = vmul.f32 %v2728, 0.2
    %v2938 = vmul.f32 %v2730, 0.2
    %v2939 = vmul.f32 %v2732, 0.2
    %v2940 = vmul.f32 %v2736, 0.2
    %v2941 = vmul.f32 %v2738, 0.2
    %v2942 = vmul.f32 %v2740, 0.2
    %v2943 = vmul.f32 %v2742, 0.2
    %v2944 = vmul.f32 %v2746, 0.2
    %v2945 = vmul.f32 %v2748, 0.2
    %v2946 = vmul.f32 %v2750, 0.2
    %v2947 = vmul.f32 %v2752, 0.2
    %v2948 = vmul.f32 %v2756, 0.2
    %v2949 = vmul.f32 %v2758, 0.2
    %v2950 = vmul.f32 %v2760, 0.2
    %v2951 = vmul.f32 %v2762, 0.2
    %v2952 = vmul.f32 %v2766, 0.2
    %v2953 = vmul.f32 %v2768, 0.2
    %v2954 = vmul.f32 %v2770, 0.2
    %v2955 = vmul.f32 %v2772, 0.2
    %v2956 = vmul.f32 %v2776, 0.2
    %v2957 = vmul.f32 %v2778, 0.2
    %v2958 = vmul.f32 %v2780, 0.2
    %v2959 = vmul.f32 %v2782, 0.2
    %v2960 = vmul.f32 %v2786, 0.2
    %v2961 = vmul.f32 %v2788, 0.2
    %v2962 = vmul.f32 %v2790, 0.2
    %v2963 = vmul.f32 %v2792, 0.2
    %v2964 = vmul.f32 %v2796, 0.2
    %v2965 = vmul.f32 %v2798, 0.2
    %v2966 = vmul.f32 %v2800, 0.2
    %v2967 = vmul.f32 %v2802, 0.2
    %v2968 = vmul.f32 %v2806, 0.2
    %v2969 = vmul.f32 %v2808, 0.2
    %v2970 = vmul.f32 %v2810, 0.2
    %v2971 = vmul.f32 %v2812, 0.2
    %v2972 = vmul.f32 %v2816, 0.2
    %v2973 = vmul.f32 %v2818, 0.2
    %v2974 = vmul.f32 %v2820, 0.2
    %v2975 = vmul.f32 %v2822, 0.2
    %v2976 = vmul.f32 %v2826, 0.2
    %v2977 = vmul.f32 %v2828, 0.2
    %v2978 = vmul.f32 %v2830, 0.2
    %v2979 = vmul.f32 %v2832, 0.2
    %v2980 = vmul.f32 %v2836, 0.2
    %v2981 = vmul.f32 %v2838, 0.2
    %v2982 = vmul.f32 %v2840, 0.2
    %v2983 = vmul.f32 %v2842, 0.2
    %v2984 = vmul.f32 %v2846, 0.2
    %v2985 = vmul.f32 %v2848, 0.2
    %v2986 = vmul.f32 %v2850, 0.2
    %v2987 = vmul.f32 %v2852, 0.2
    %v2988 = vmul.f32 %v2856, 0.2
    %v2989 = vmul.f32 %v2858, 0.2
    %v2990 = vmul.f32 %v2860, 0.2
    %v2991 = vmul.f32 %v2862, 0.2
    %v2992 = vsel %vm2864, %v2706, %v2928
    %v2993 = vsel %vm2865, %v2708, %v2929
    %v2994 = vsel %vm2866, %v2710, %v2930
    %v2995 = vsel %vm2867, %v2712, %v2931
    %v2996 = vsel %vm2868, %v2716, %v2932
    %v2997 = vsel %vm2869, %v2718, %v2933
    %v2998 = vsel %vm2870, %v2720, %v2934
    %v2999 = vsel %vm2871, %v2722, %v2935
    %v3000 = vsel %vm2872, %v2726, %v2936
    %v3001 = vsel %vm2873, %v2728, %v2937
    %v3002 = vsel %vm2874, %v2730, %v2938
    %v3003 = vsel %vm2875, %v2732, %v2939
    %v3004 = vsel %vm2876, %v2736, %v2940
    %v3005 = vsel %vm2877, %v2738, %v2941
    %v3006 = vsel %vm2878, %v2740, %v2942
    %v3007 = vsel %vm2879, %v2742, %v2943
    %v3008 = vsel %vm2880, %v2746, %v2944
    %v3009 = vsel %vm2881, %v2748, %v2945
    %v3010 = vsel %vm2882, %v2750, %v2946
    %v3011 = vsel %vm2883, %v2752, %v2947
    %v3012 = vsel %vm2884, %v2756, %v2948
    %v3013 = vsel %vm2885, %v2758, %v2949
    %v3014 = vsel %vm2886, %v2760, %v2950
    %v3015 = vsel %vm2887, %v2762, %v2951
    %v3016 = vsel %vm2888, %v2766, %v2952
    %v3017 = vsel %vm2889, %v2768, %v2953
    %v3018 = vsel %vm2890, %v2770, %v2954
    %v3019 = vsel %vm2891, %v2772, %v2955
    %v3020 = vsel %vm2892, %v2776, %v2956
    %v3021 = vsel %vm2893, %v2778, %v2957
    %v3022 = vsel %vm2894, %v2780, %v2958
    %v3023 = vsel %vm2895, %v2782, %v2959
    %v3024 = vsel %vm2896, %v2786, %v2960
    %v3025 = vsel %vm2897, %v2788, %v2961
    %v3026 = vsel %vm2898, %v2790, %v2962
    %v3027 = vsel %vm2899, %v2792, %v2963
    %v3028 = vsel %vm2900, %v2796, %v2964
    %v3029 = vsel %vm2901, %v2798, %v2965
    %v3030 = vsel %vm2902, %v2800, %v2966
    %v3031 = vsel %vm2903, %v2802, %v2967
    %v3032 = vsel %vm2904, %v2806, %v2968
    %v3033 = vsel %vm2905, %v2808, %v2969
    %v3034 = vsel %vm2906, %v2810, %v2970
    %v3035 = vsel %vm2907, %v2812, %v2971
    %v3036 = vsel %vm2908, %v2816, %v2972
    %v3037 = vsel %vm2909, %v2818, %v2973
    %v3038 = vsel %vm2910, %v2820, %v2974
    %v3039 = vsel %vm2911, %v2822, %v2975
    %v3040 = vsel %vm2912, %v2826, %v2976
    %v3041 = vsel %vm2913, %v2828, %v2977
    %v3042 = vsel %vm2914, %v2830, %v2978
    %v3043 = vsel %vm2915, %v2832, %v2979
    %v3044 = vsel %vm2916, %v2836, %v2980
    %v3045 = vsel %vm2917, %v2838, %v2981
    %v3046 = vsel %vm2918, %v2840, %v2982
    %v3047 = vsel %vm2919, %v2842, %v2983
    %v3048 = vsel %vm2920, %v2846, %v2984
    %v3049 = vsel %vm2921, %v2848, %v2985
    %v3050 = vsel %vm2922, %v2850, %v2986
    %v3051 = vsel %vm2923, %v2852, %v2987
    %v3052 = vsel %vm2924, %v2856, %v2988
    %v3053 = vsel %vm2925, %v2858, %v2989
    %v3054 = vsel %vm2926, %v2860, %v2990
    %v3055 = vsel %vm2927, %v2862, %v2991
    %v3056 = vpack.c.bf16 %v2994, %v2992
    %v3057 = vpack.c.bf16 %v2995, %v2993
    %v3058 = vpack.c.bf16 %v2998, %v2996
    %v3059 = vpack.c.bf16 %v2999, %v2997
    %v3060 = vpack.c.bf16 %v3002, %v3000
    %v3061 = vpack.c.bf16 %v3003, %v3001
    %v3062 = vpack.c.bf16 %v3006, %v3004
    %v3063 = vpack.c.bf16 %v3007, %v3005
    %v3064 = vpack.c.bf16 %v3010, %v3008
    %v3065 = vpack.c.bf16 %v3011, %v3009
    %v3066 = vpack.c.bf16 %v3014, %v3012
    %v3067 = vpack.c.bf16 %v3015, %v3013
    %v3068 = vpack.c.bf16 %v3018, %v3016
    %v3069 = vpack.c.bf16 %v3019, %v3017
    %v3070 = vpack.c.bf16 %v3022, %v3020
    %v3071 = vpack.c.bf16 %v3023, %v3021
    %v3072 = vpack.c.bf16 %v3026, %v3024
    %v3073 = vpack.c.bf16 %v3027, %v3025
    %v3074 = vpack.c.bf16 %v3030, %v3028
    %v3075 = vpack.c.bf16 %v3031, %v3029
    %v3076 = vpack.c.bf16 %v3034, %v3032
    %v3077 = vpack.c.bf16 %v3035, %v3033
    %v3078 = vpack.c.bf16 %v3038, %v3036
    %v3079 = vpack.c.bf16 %v3039, %v3037
    %v3080 = vpack.c.bf16 %v3042, %v3040
    %v3081 = vpack.c.bf16 %v3043, %v3041
    %v3082 = vpack.c.bf16 %v3046, %v3044
    %v3083 = vpack.c.bf16 %v3047, %v3045
    %v3084 = vpack.c.bf16 %v3050, %v3048
    %v3085 = vpack.c.bf16 %v3051, %v3049
    %v3086 = vpack.c.bf16 %v3054, %v3052
    %v3087 = vpack.c.bf16 %v3055, %v3053
    %v3088 = vld [vmem:[#allocation8] sm:$0xf]
    %v3089 = vld [vmem:[#allocation8 + $0x4] sm:$0xf]
    %v3090 = vld [vmem:[#allocation8 + $0x8] sm:$0xf]
    %v3091 = vld [vmem:[#allocation8 + $0xc] sm:$0xf]
    %v3092 = vld [vmem:[#allocation8 + $0x10] sm:$0xf]
    %v3093 = vld [vmem:[#allocation8 + $0x14] sm:$0xf]
    %v3094 = vld [vmem:[#allocation8 + $0x18] sm:$0xf]
    %v3095 = vld [vmem:[#allocation8 + $0x1c] sm:$0xf]
    %v3096 = vld [vmem:[#allocation8 + $0x20] sm:$0xf]
    %v3097 = vld [vmem:[#allocation8 + $0x24] sm:$0xf]
    %v3098 = vld [vmem:[#allocation8 + $0x28] sm:$0xf]
    %v3099 = vld [vmem:[#allocation8 + $0x2c] sm:$0xf]
    %v3100 = vld [vmem:[#allocation8 + $0x30] sm:$0xf]
    %v3101 = vld [vmem:[#allocation8 + $0x34] sm:$0xf]
    %v3102 = vld [vmem:[#allocation8 + $0x38] sm:$0xf]
    %v3103 = vld [vmem:[#allocation8 + $0x3c] sm:$0xf]
    %v3104 = vld [vmem:[#allocation8 + $0x40] sm:$0xf]
    %v3105 = vld [vmem:[#allocation8 + $0x44] sm:$0xf]
    %v3106 = vld [vmem:[#allocation8 + $0x48] sm:$0xf]
    %v3107 = vld [vmem:[#allocation8 + $0x4c] sm:$0xf]
    %v3108 = vld [vmem:[#allocation8 + $0x50] sm:$0xf]
    %v3109 = vld [vmem:[#allocation8 + $0x54] sm:$0xf]
    %v3110 = vld [vmem:[#allocation8 + $0x58] sm:$0xf]
    %v3111 = vld [vmem:[#allocation8 + $0x5c] sm:$0xf]
    %v3112 = vld [vmem:[#allocation8 + $0x60] sm:$0xf]
    %v3113 = vld [vmem:[#allocation8 + $0x64] sm:$0xf]
    %v3114 = vld [vmem:[#allocation8 + $0x68] sm:$0xf]
    %v3115 = vld [vmem:[#allocation8 + $0x6c] sm:$0xf]
    %v3116 = vld [vmem:[#allocation8 + $0x70] sm:$0xf]
    %v3117 = vld [vmem:[#allocation8 + $0x74] sm:$0xf]
    %v3118 = vld [vmem:[#allocation8 + $0x78] sm:$0xf]
    %v3119 = vld [vmem:[#allocation8 + $0x7c] sm:$0xf]
    %v3120 = vld [vmem:[%s6] sm:$0x1]
    %v3122 = vlaneseq
    %v3123 = vshrl.u32 %v3122, 7
    %v3124 = vsub.s32 0, %v3123
    %v3125 = vrot.slane %v3120, %v3124
    %v3159 = vunpack.c.l.b16 %v3088
    %v3160 = vunpack.c.l.b16 %v3089
    %v3161 = vunpack.c.l.b16 %v3090
    %v3162 = vunpack.c.l.b16 %v3091
    %v3163 = vunpack.c.l.b16 %v3092
    %v3164 = vunpack.c.l.b16 %v3093
    %v3165 = vunpack.c.l.b16 %v3094
    %v3166 = vunpack.c.l.b16 %v3095
    %v3167 = vunpack.c.l.b16 %v3096
    %v3168 = vunpack.c.l.b16 %v3097
    %v3169 = vunpack.c.l.b16 %v3098
    %v3170 = vunpack.c.l.b16 %v3099
    %v3171 = vunpack.c.l.b16 %v3100
    %v3172 = vunpack.c.l.b16 %v3101
    %v3173 = vunpack.c.l.b16 %v3102
    %v3174 = vunpack.c.l.b16 %v3103
    %v3175 = vunpack.c.l.b16 %v3104
    %v3176 = vunpack.c.l.b16 %v3105
    %v3177 = vunpack.c.l.b16 %v3106
    %v3178 = vunpack.c.l.b16 %v3107
    %v3179 = vunpack.c.l.b16 %v3108
    %v3180 = vunpack.c.l.b16 %v3109
    %v3181 = vunpack.c.l.b16 %v3110
    %v3182 = vunpack.c.l.b16 %v3111
    %v3183 = vunpack.c.l.b16 %v3112
    %v3184 = vunpack.c.l.b16 %v3113
    %v3185 = vunpack.c.l.b16 %v3114
    %v3186 = vunpack.c.l.b16 %v3115
    %v3187 = vunpack.c.l.b16 %v3116
    %v3188 = vunpack.c.l.b16 %v3117
    %v3189 = vunpack.c.l.b16 %v3118
    %v3190 = vunpack.c.l.b16 %v3119
    %v3191 = vpack.c.b16 %v3160, %v3159
    %v3192 = vpack.c.b16 %v3162, %v3161
    %v3193 = vpack.c.b16 %v3164, %v3163
    %v3194 = vpack.c.b16 %v3166, %v3165
    %v3195 = vpack.c.b16 %v3168, %v3167
    %v3196 = vpack.c.b16 %v3170, %v3169
    %v3197 = vpack.c.b16 %v3172, %v3171
    %v3198 = vpack.c.b16 %v3174, %v3173
    %v3199 = vpack.c.b16 %v3176, %v3175
    %v3200 = vpack.c.b16 %v3178, %v3177
    %v3201 = vpack.c.b16 %v3180, %v3179
    %v3202 = vpack.c.b16 %v3182, %v3181
    %v3203 = vpack.c.b16 %v3184, %v3183
    %v3204 = vpack.c.b16 %v3186, %v3185
    %v3205 = vpack.c.b16 %v3188, %v3187
    %v3206 = vpack.c.b16 %v3190, %v3189
    %3223 = vmatprep.subr.bf16.mxu0 0
    %3224 = vmatpush1.bf16.msra.mxu0 %v3191
    %3225 = vmatprep.subr.bf16.mxu0 0
    %3226 = vmatpush1.bf16.msra.mxu0 %v3192
    %3227 = vmatprep.subr.bf16.mxu0 0
    %3228 = vmatpush1.bf16.msra.mxu0 %v3193
    %3229 = vmatprep.subr.bf16.mxu0 0
    %3230 = vmatpush1.bf16.msra.mxu0 %v3194
    %3231 = vmatprep.subr.bf16.mxu0 0
    %3232 = vmatpush1.bf16.msra.mxu0 %v3195
    %3233 = vmatprep.subr.bf16.mxu0 0
    %3234 = vmatpush1.bf16.msra.mxu0 %v3196
    %3235 = vmatprep.subr.bf16.mxu0 0
    %3236 = vmatpush1.bf16.msra.mxu0 %v3197
    %3237 = vmatprep.subr.bf16.mxu0 0
    %3238 = vmatpush1.bf16.msra.mxu0 %v3198
    %3239 = vmatprep.subr.bf16.mxu0 0
    %3240 = vmatpush1.bf16.msra.mxu0 %v3199
    %3241 = vmatprep.subr.bf16.mxu0 0
    %3242 = vmatpush1.bf16.msra.mxu0 %v3200
    %3243 = vmatprep.subr.bf16.mxu0 0
    %3244 = vmatpush1.bf16.msra.mxu0 %v3201
    %3245 = vmatprep.subr.bf16.mxu0 0
    %3246 = vmatpush1.bf16.msra.mxu0 %v3202
    %3247 = vmatprep.subr.bf16.mxu0 0
    %3248 = vmatpush1.bf16.msra.mxu0 %v3203
    %3249 = vmatprep.subr.bf16.mxu0 0
    %3250 = vmatpush1.bf16.msra.mxu0 %v3204
    %3251 = vmatprep.subr.bf16.mxu0 0
    %3252 = vmatpush1.bf16.msra.mxu0 %v3205
    %3253 = vmatprep.subr.bf16.mxu0 0
    %3254 = vmatpush1.bf16.msra.mxu0 %v3206
    %3255 = vmatprep.mubr.bf16.mxu0 %v3057
    %3256 = vmatmul.mubr.bf16.gmra.mrb[0].mxu0 %v3056
    %v3257 = vpop.f32.mrb[0].mxu0
    %v3258 = vadd.f32 %v3125, %v3257
    %v3259 = vpop.f32.mrb[0].mxu0
    %v3260 = vpop.f32.mrb[0].mxu0
    %v3261 = vadd.f32 %v3125, %v3260
    %v3262 = vpop.f32.mrb[0].mxu0
    %3263 = vmatprep.mubr.bf16.mxu0 %v3059
    %3264 = vmatmul.mubr.bf16.gmra.mrb[0].mxu0 %v3058
    %v3265 = vpop.f32.mrb[0].mxu0
    %v3266 = vadd.f32 %v3125, %v3265
    %v3267 = vpop.f32.mrb[0].mxu0
    %v3268 = vpop.f32.mrb[0].mxu0
    %v3269 = vadd.f32 %v3125, %v3268
    %v3270 = vpop.f32.mrb[0].mxu0
    %3271 = vmatprep.mubr.bf16.mxu0 %v3061
    %3272 = vmatmul.mubr.bf16.gmra.mrb[0].mxu0 %v3060
    %v3273 = vpop.f32.mrb[0].mxu0
    %v3274 = vadd.f32 %v3125, %v3273
    %v3275 = vpop.f32.mrb[0].mxu0
    %v3276 = vpop.f32.mrb[0].mxu0
    %v3277 = vadd.f32 %v3125, %v3276
    %v3278 = vpop.f32.mrb[0].mxu0
    %3279 = vmatprep.mubr.bf16.mxu0 %v3063
    %3280 = vmatmul.mubr.bf16.gmra.mrb[0].mxu0 %v3062
    %v3281 = vpop.f32.mrb[0].mxu0
    %v3282 = vadd.f32 %v3125, %v3281
    %v3283 = vpop.f32.mrb[0].mxu0
    %v3284 = vpop.f32.mrb[0].mxu0
    %v3285 = vadd.f32 %v3125, %v3284
    %v3286 = vpop.f32.mrb[0].mxu0
    %3287 = vmatprep.mubr.bf16.mxu0 %v3065
    %3288 = vmatmul.mubr.bf16.gmra.mrb[0].mxu0 %v3064
    %v3289 = vpop.f32.mrb[0].mxu0
    %v3290 = vadd.f32 %v3125, %v3289
    %v3291 = vpop.f32.mrb[0].mxu0
    %v3292 = vpop.f32.mrb[0].mxu0
    %v3293 = vadd.f32 %v3125, %v3292
    %v3294 = vpop.f32.mrb[0].mxu0
    %3295 = vmatprep.mubr.bf16.mxu0 %v3067
    %3296 = vmatmul.mubr.bf16.gmra.mrb[0].mxu0 %v3066
    %v3297 = vpop.f32.mrb[0].mxu0
    %v3298 = vadd.f32 %v3125, %v3297
    %v3299 = vpop.f32.mrb[0].mxu0
    %v3300 = vpop.f32.mrb[0].mxu0
    %v3301 = vadd.f32 %v3125, %v3300
    %v3302 = vpop.f32.mrb[0].mxu0
    %3303 = vmatprep.mubr.bf16.mxu0 %v3069
    %3304 = vmatmul.mubr.bf16.gmra.mrb[0].mxu0 %v3068
    %v3305 = vpop.f32.mrb[0].mxu0
    %v3306 = vadd.f32 %v3125, %v3305
    %v3307 = vpop.f32.mrb[0].mxu0
    %v3308 = vpop.f32.mrb[0].mxu0
    %v3309 = vadd.f32 %v3125, %v3308
    %v3310 = vpop.f32.mrb[0].mxu0
    %3311 = vmatprep.mubr.bf16.mxu0 %v3071
    %3312 = vmatmul.mubr.bf16.gmra.mrb[0].mxu0 %v3070
    %v3313 = vpop.f32.mrb[0].mxu0
    %v3314 = vadd.f32 %v3125, %v3313
    %v3315 = vpop.f32.mrb[0].mxu0
    %v3316 = vpop.f32.mrb[0].mxu0
    %v3317 = vadd.f32 %v3125, %v3316
    %v3318 = vpop.f32.mrb[0].mxu0
    %3319 = vmatprep.mubr.bf16.mxu0 %v3073
    %3320 = vmatmul.mubr.bf16.gmra.mrb[0].mxu0 %v3072
    %v3321 = vpop.f32.mrb[0].mxu0
    %v3322 = vadd.f32 %v3125, %v3321
    %v3323 = vpop.f32.mrb[0].mxu0
    %v3324 = vpop.f32.mrb[0].mxu0
    %v3325 = vadd.f32 %v3125, %v3324
    %v3326 = vpop.f32.mrb[0].mxu0
    %3327 = vmatprep.mubr.bf16.mxu0 %v3075
    %3328 = vmatmul.mubr.bf16.gmra.mrb[0].mxu0 %v3074
    %v3329 = vpop.f32.mrb[0].mxu0
    %v3330 = vadd.f32 %v3125, %v3329
    %v3331 = vpop.f32.mrb[0].mxu0
    %v3332 = vpop.f32.mrb[0].mxu0
    %v3333 = vadd.f32 %v3125, %v3332
    %v3334 = vpop.f32.mrb[0].mxu0
    %3335 = vmatprep.mubr.bf16.mxu0 %v3077
    %3336 = vmatmul.mubr.bf16.gmra.mrb[0].mxu0 %v3076
    %v3337 = vpop.f32.mrb[0].mxu0
    %v3338 = vadd.f32 %v3125, %v3337
    %v3339 = vpop.f32.mrb[0].mxu0
    %v3340 = vpop.f32.mrb[0].mxu0
    %v3341 = vadd.f32 %v3125, %v3340
    %v3342 = vpop.f32.mrb[0].mxu0
    %3343 = vmatprep.mubr.bf16.mxu0 %v3079
    %3344 = vmatmul.mubr.bf16.gmra.mrb[0].mxu0 %v3078
    %v3345 = vpop.f32.mrb[0].mxu0
    %v3346 = vadd.f32 %v3125, %v3345
    %v3347 = vpop.f32.mrb[0].mxu0
    %v3348 = vpop.f32.mrb[0].mxu0
    %v3349 = vadd.f32 %v3125, %v3348
    %v3350 = vpop.f32.mrb[0].mxu0
    %3351 = vmatprep.mubr.bf16.mxu0 %v3081
    %3352 = vmatmul.mubr.bf16.gmra.mrb[0].mxu0 %v3080
    %v3353 = vpop.f32.mrb[0].mxu0
    %v3354 = vadd.f32 %v3125, %v3353
    %v3355 = vpop.f32.mrb[0].mxu0
    %v3356 = vpop.f32.mrb[0].mxu0
    %v3357 = vadd.f32 %v3125, %v3356
    %v3358 = vpop.f32.mrb[0].mxu0
    %3359 = vmatprep.mubr.bf16.mxu0 %v3083
    %3360 = vmatmul.mubr.bf16.gmra.mrb[0].mxu0 %v3082
    %v3361 = vpop.f32.mrb[0].mxu0
    %v3362 = vadd.f32 %v3125, %v3361
    %v3363 = vpop.f32.mrb[0].mxu0
    %v3364 = vpop.f32.mrb[0].mxu0
    %v3365 = vadd.f32 %v3125, %v3364
    %v3366 = vpop.f32.mrb[0].mxu0
    %3367 = vmatprep.mubr.bf16.mxu0 %v3085
    %3368 = vmatmul.mubr.bf16.gmra.mrb[0].mxu0 %v3084
    %v3369 = vpop.f32.mrb[0].mxu0
    %v3370 = vadd.f32 %v3125, %v3369
    %v3371 = vpop.f32.mrb[0].mxu0
    %v3372 = vpop.f32.mrb[0].mxu0
    %v3373 = vadd.f32 %v3125, %v3372
    %v3374 = vpop.f32.mrb[0].mxu0
    %3375 = vmatprep.mubr.bf16.mxu0 %v3087
    %3376 = vmatmul.mubr.bf16.gmra.mrb[0].mxu0 %v3086
    %v3377 = vpop.f32.mrb[0].mxu0
    %v3378 = vadd.f32 %v3125, %v3377
    %v3379 = vpop.f32.mrb[0].mxu0
    %v3380 = vpop.f32.mrb[0].mxu0
    %v3381 = vadd.f32 %v3125, %v3380
    %v3382 = vpop.f32.mrb[0].mxu0
    %3383 = vdwg.mxu0
    %v3384 = vxor.u32 %v3258, 2147483648
    %v3385 = vxor.u32 %v3261, 2147483648
    %v3386 = vxor.u32 %v3266, 2147483648
    %v3387 = vxor.u32 %v3269, 2147483648
    %v3388 = vxor.u32 %v3274, 2147483648
    %v3389 = vxor.u32 %v3277, 2147483648
    %v3390 = vxor.u32 %v3282, 2147483648
    %v3391 = vxor.u32 %v3285, 2147483648
    %v3392 = vxor.u32 %v3290, 2147483648
    %v3393 = vxor.u32 %v3293, 2147483648
    %v3394 = vxor.u32 %v3298, 2147483648
    %v3395 = vxor.u32 %v3301, 2147483648
    %v3396 = vxor.u32 %v3306, 2147483648
    %v3397 = vxor.u32 %v3309, 2147483648
    %v3398 = vxor.u32 %v3314, 2147483648
    %v3399 = vxor.u32 %v3317, 2147483648
    %v3400 = vxor.u32 %v3322, 2147483648
    %v3401 = vxor.u32 %v3325, 2147483648
    %v3402 = vxor.u32 %v3330, 2147483648
    %v3403 = vxor.u32 %v3333, 2147483648
    %v3404 = vxor.u32 %v3338, 2147483648
    %v3405 = vxor.u32 %v3341, 2147483648
    %v3406 = vxor.u32 %v3346, 2147483648
    %v3407 = vxor.u32 %v3349, 2147483648
    %v3408 = vxor.u32 %v3354, 2147483648
    %v3409 = vxor.u32 %v3357, 2147483648
    %v3410 = vxor.u32 %v3362, 2147483648
    %v3411 = vxor.u32 %v3365, 2147483648
    %v3412 = vxor.u32 %v3370, 2147483648
    %v3413 = vxor.u32 %v3373, 2147483648
    %v3414 = vxor.u32 %v3378, 2147483648
    %v3415 = vxor.u32 %v3381, 2147483648
    %v3416 = vmul.f32 %v3384, 1.442695
    %v3417 = vpow.pop %v3416
    %v3418 = vmul.f32 %v3385, 1.442695
    %v3419 = vpow.pop %v3418
    %v3420 = vmul.f32 %v3386, 1.442695
    %v3421 = vpow.pop %v3420
    %v3422 = vmul.f32 %v3387, 1.442695
    %v3423 = vpow.pop %v3422
    %v3424 = vmul.f32 %v3388, 1.442695
    %v3425 = vpow.pop %v3424
    %v3426 = vmul.f32 %v3389, 1.442695
    %v3427 = vpow.pop %v3426
    %v3428 = vmul.f32 %v3390, 1.442695
    %v3429 = vpow.pop %v3428
    %v3430 = vmul.f32 %v3391, 1.442695
    %v3431 = vpow.pop %v3430
    %v3432 = vmul.f32 %v3392, 1.442695
    %v3433 = vpow.pop %v3432
    %v3434 = vmul.f32 %v3393, 1.442695
    %v3435 = vpow.pop %v3434
    %v3436 = vmul.f32 %v3394, 1.442695
    %v3437 = vpow.pop %v3436
    %v3438 = vmul.f32 %v3395, 1.442695
    %v3439 = vpow.pop %v3438
    %v3440 = vmul.f32 %v3396, 1.442695
    %v3441 = vpow.pop %v3440
    %v3442 = vmul.f32 %v3397, 1.442695
    %v3443 = vpow.pop %v3442
    %v3444 = vmul.f32 %v3398, 1.442695
    %v3445 = vpow.pop %v3444
    %v3446 = vmul.f32 %v3399, 1.442695
    %v3447 = vpow.pop %v3446
    %v3448 = vmul.f32 %v3400, 1.442695
    %v3449 = vpow.pop %v3448
    %v3450 = vmul.f32 %v3401, 1.442695
    %v3451 = vpow.pop %v3450
    %v3452 = vmul.f32 %v3402, 1.442695
    %v3453 = vpow.pop %v3452
    %v3454 = vmul.f32 %v3403, 1.442695
    %v3455 = vpow.pop %v3454
    %v3456 = vmul.f32 %v3404, 1.442695
    %v3457 = vpow.pop %v3456
    %v3458 = vmul.f32 %v3405, 1.442695
    %v3459 = vpow.pop %v3458
    %v3460 = vmul.f32 %v3406, 1.442695
    %v3461 = vpow.pop %v3460
    %v3462 = vmul.f32 %v3407, 1.442695
    %v3463 = vpow.pop %v3462
    %v3464 = vmul.f32 %v3408, 1.442695
    %v3465 = vpow.pop %v3464
    %v3466 = vmul.f32 %v3409, 1.442695
    %v3467 = vpow.pop %v3466
    %v3468 = vmul.f32 %v3410, 1.442695
    %v3469 = vpow.pop %v3468
    %v3470 = vmul.f32 %v3411, 1.442695
    %v3471 = vpow.pop %v3470
    %v3472 = vmul.f32 %v3412, 1.442695
    %v3473 = vpow.pop %v3472
    %v3474 = vmul.f32 %v3413, 1.442695
    %v3475 = vpow.pop %v3474
    %v3476 = vmul.f32 %v3414, 1.442695
    %v3477 = vpow.pop %v3476
    %v3478 = vmul.f32 %v3415, 1.442695
    %v3479 = vpow.pop %v3478
    %v3480 = vadd.f32 %v3417, 1.0
    %v3481 = vadd.f32 %v3419, 1.0
    %v3482 = vadd.f32 %v3421, 1.0
    %v3483 = vadd.f32 %v3423, 1.0
    %v3484 = vadd.f32 %v3425, 1.0
    %v3485 = vadd.f32 %v3427, 1.0
    %v3486 = vadd.f32 %v3429, 1.0
    %v3487 = vadd.f32 %v3431, 1.0
    %v3488 = vadd.f32 %v3433, 1.0
    %v3489 = vadd.f32 %v3435, 1.0
    %v3490 = vadd.f32 %v3437, 1.0
    %v3491 = vadd.f32 %v3439, 1.0
    %v3492 = vadd.f32 %v3441, 1.0
    %v3493 = vadd.f32 %v3443, 1.0
    %v3494 = vadd.f32 %v3445, 1.0
    %v3495 = vadd.f32 %v3447, 1.0
    %v3496 = vadd.f32 %v3449, 1.0
    %v3497 = vadd.f32 %v3451, 1.0
    %v3498 = vadd.f32 %v3453, 1.0
    %v3499 = vadd.f32 %v3455, 1.0
    %v3500 = vadd.f32 %v3457, 1.0
    %v3501 = vadd.f32 %v3459, 1.0
    %v3502 = vadd.f32 %v3461, 1.0
    %v3503 = vadd.f32 %v3463, 1.0
    %v3504 = vadd.f32 %v3465, 1.0
    %v3505 = vadd.f32 %v3467, 1.0
    %v3506 = vadd.f32 %v3469, 1.0
    %v3507 = vadd.f32 %v3471, 1.0
    %v3508 = vadd.f32 %v3473, 1.0
    %v3509 = vadd.f32 %v3475, 1.0
    %v3510 = vadd.f32 %v3477, 1.0
    %v3511 = vadd.f32 %v3479, 1.0
    %v3512 = vrcp.pop %v3480
    %v3513 = vmul.f32 1.0, %v3512
    %v3514 = vrcp.pop %v3481
    %v3515 = vmul.f32 1.0, %v3514
    %v3516 = vrcp.pop %v3482
    %v3517 = vmul.f32 1.0, %v3516
    %v3518 = vrcp.pop %v3483
    %v3519 = vmul.f32 1.0, %v3518
    %v3520 = vrcp.pop %v3484
    %v3521 = vmul.f32 1.0, %v3520
    %v3522 = vrcp.pop %v3485
    %v3523 = vmul.f32 1.0, %v3522
    %v3524 = vrcp.pop %v3486
    %v3525 = vmul.f32 1.0, %v3524
    %v3526 = vrcp.pop %v3487
    %v3527 = vmul.f32 1.0, %v3526
    %v3528 = vrcp.pop %v3488
    %v3529 = vmul.f32 1.0, %v3528
    %v3530 = vrcp.pop %v3489
    %v3531 = vmul.f32 1.0, %v3530
    %v3532 = vrcp.pop %v3490
    %v3533 = vmul.f32 1.0, %v3532
    %v3534 = vrcp.pop %v3491
    %v3535 = vmul.f32 1.0, %v3534
    %v3536 = vrcp.pop %v3492
    %v3537 = vmul.f32 1.0, %v3536
    %v3538 = vrcp.pop %v3493
    %v3539 = vmul.f32 1.0, %v3538
    %v3540 = vrcp.pop %v3494
    %v3541 = vmul.f32 1.0, %v3540
    %v3542 = vrcp.pop %v3495
    %v3543 = vmul.f32 1.0, %v3542
    %v3544 = vrcp.pop %v3496
    %v3545 = vmul.f32 1.0, %v3544
    %v3546 = vrcp.pop %v3497
    %v3547 = vmul.f32 1.0, %v3546
    %v3548 = vrcp.pop %v3498
    %v3549 = vmul.f32 1.0, %v3548
    %v3550 = vrcp.pop %v3499
    %v3551 = vmul.f32 1.0, %v3550
    %v3552 = vrcp.pop %v3500
    %v3553 = vmul.f32 1.0, %v3552
    %v3554 = vrcp.pop %v3501
    %v3555 = vmul.f32 1.0, %v3554
    %v3556 = vrcp.pop %v3502
    %v3557 = vmul.f32 1.0, %v3556
    %v3558 = vrcp.pop %v3503
    %v3559 = vmul.f32 1.0, %v3558
    %v3560 = vrcp.pop %v3504
    %v3561 = vmul.f32 1.0, %v3560
    %v3562 = vrcp.pop %v3505
    %v3563 = vmul.f32 1.0, %v3562
    %v3564 = vrcp.pop %v3506
    %v3565 = vmul.f32 1.0, %v3564
    %v3566 = vrcp.pop %v3507
    %v3567 = vmul.f32 1.0, %v3566
    %v3568 = vrcp.pop %v3508
    %v3569 = vmul.f32 1.0, %v3568
    %v3570 = vrcp.pop %v3509
    %v3571 = vmul.f32 1.0, %v3570
    %v3572 = vrcp.pop %v3510
    %v3573 = vmul.f32 1.0, %v3572
    %v3574 = vrcp.pop %v3511
    %v3575 = vmul.f32 1.0, %v3574
    %3576 = vst [vmem:[#allocation10] sm:$0xff] %v3513
    %3577 = vst [vmem:[#allocation10 + $0x8] sm:$0xff] %v3515
    %3578 = vst [vmem:[#allocation10 + $0x10] sm:$0xff] %v3517
    %3579 = vst [vmem:[#allocation10 + $0x18] sm:$0xff] %v3519
    %3580 = vst [vmem:[#allocation10 + $0x20] sm:$0xff] %v3521
    %3581 = vst [vmem:[#allocation10 + $0x28] sm:$0xff] %v3523
    %3582 = vst [vmem:[#allocation10 + $0x30] sm:$0xff] %v3525
    %3583 = vst [vmem:[#allocation10 + $0x38] sm:$0xff] %v3527
    %3584 = vst [vmem:[#allocation10 + $0x40] sm:$0xff] %v3529
    %3585 = vst [vmem:[#allocation10 + $0x48] sm:$0xff] %v3531
    %3586 = vst [vmem:[#allocation10 + $0x50] sm:$0xff] %v3533
    %3587 = vst [vmem:[#allocation10 + $0x58] sm:$0xff] %v3535
    %3588 = vst [vmem:[#allocation10 + $0x60] sm:$0xff] %v3537
    %3589 = vst [vmem:[#allocation10 + $0x68] sm:$0xff] %v3539
    %3590 = vst [vmem:[#allocation10 + $0x70] sm:$0xff] %v3541
    %3591 = vst [vmem:[#allocation10 + $0x78] sm:$0xff] %v3543
    %3592 = vst [vmem:[#allocation10 + $0x80] sm:$0xff] %v3545
    %3593 = vst [vmem:[#allocation10 + $0x88] sm:$0xff] %v3547
    %3594 = vst [vmem:[#allocation10 + $0x90] sm:$0xff] %v3549
    %3595 = vst [vmem:[#allocation10 + $0x98] sm:$0xff] %v3551
    %3596 = vst [vmem:[#allocation10 + $0xa0] sm:$0xff] %v3553
    %3597 = vst [vmem:[#allocation10 + $0xa8] sm:$0xff] %v3555
    %3598 = vst [vmem:[#allocation10 + $0xb0] sm:$0xff] %v3557
    %3599 = vst [vmem:[#allocation10 + $0xb8] sm:$0xff] %v3559
    %3600 = vst [vmem:[#allocation10 + $0xc0] sm:$0xff] %v3561
    %3601 = vst [vmem:[#allocation10 + $0xc8] sm:$0xff] %v3563
    %3602 = vst [vmem:[#allocation10 + $0xd0] sm:$0xff] %v3565
    %3603 = vst [vmem:[#allocation10 + $0xd8] sm:$0xff] %v3567
    %3604 = vst [vmem:[#allocation10 + $0xe0] sm:$0xff] %v3569
    %3605 = vst [vmem:[#allocation10 + $0xe8] sm:$0xff] %v3571
    %3606 = vst [vmem:[#allocation10 + $0xf0] sm:$0xff] %v3573
    %3607 = vst [vmem:[#allocation10 + $0xf8] sm:$0xff] %v3575
    // Predicated region
    $region46: #{tpu_custom_call.1} parent=1 // pred_check
      _
    $region47: #{tpu_custom_call.1} parent=1 // pred_check_branch
      %3609 = sbr.rel (0) target = $region49
    $region48: #{tpu_custom_call.1} parent=1 // pred_region
      %s3611 = ssub.s32 4096, 4096
      %3612 = vsyncadd [#allocation4], %s3611
      %s3613 = sshll.u32 [#allocation10], 4
      %s3614 = int_to_ptr.vmem [resolvable:$true] %s3613
      %3619 = dma.vmem_to_hbm [thread:$0]  %s3614, 4096, %s7, [#allocation4], 128, 128, 8
    $region49: #{tpu_custom_call.1} parent=1 // pred_fallthru
      _
    // Predicated region
    $region50: #{tpu_custom_call.1} parent=1 // pred_check
      _
    $region51: #{tpu_custom_call.1} parent=1 // pred_check_branch
      %3621 = sbr.rel (0) target = $region53
    $region52: #{tpu_custom_call.1} parent=1 // pred_region
      %3622 = dma.done [#allocation4], 4096
    $region53: #{tpu_custom_call.1} parent=1 // pred_fallthru
      _
    %3623 = vsyncpa [#allocation3], 1
    %3624 = vsyncpa [#allocation6], 1
    %3625 = vsyncpa [#allocation9], 1
    %3626 = vsyncpa [#allocation4], 1

</llo_original>
